<compile_context>
chip_gen: v5e
topology: v5e:2x2
jax: 0.10.0
libtpu: 0.0.40
codegen_flags: <defaults>
</compile_context>

<pallas_src>
import functools

import jax
import jax.numpy as jnp
from jax.experimental import pallas as pl
from jax.experimental.pallas import tpu as pltpu

EPS = 1e-5
CP = 128   # MXU / lane width: per-tap channel block inside the im2col slab


def down_kernel(xc_ref, w1_ref, w2_ref, bn_ref, out_ref, padh_ref, col_ref):
    # xc_ref  (4, N*Hp, Wp, cin) bf16     padh_ref (N, Hp+2, Wp, CP) bf16
    # w*_ref  (9*CP, CP) bf16             col_ref  (R, 9*CP)        bf16
    # bn_ref  (8, CP) f32                 out_ref  (R, CP)          f32
    _, _, _, cin = xc_ref.shape
    n, hp2, wp, _ = padh_ref.shape
    hp = hp2 - 2
    r = n * hp * wp            # flat output rows (N*Hp*Wp)
    f = n * hp2 * wp           # flat rows of the H-padded buffer
    inv_r = 1.0 / r

    # --- MaxPool2d(2): elementwise max of the 4 stacked pool corners (VPU) ---
    pooled = jnp.maximum(jnp.maximum(xc_ref[0], xc_ref[1]),
                         jnp.maximum(xc_ref[2], xc_ref[3]))    # (N*Hp, Wp, cin)

    # --- Shared H-padded bf16 buffer, zeroed ONCE: zero H-halo rows for BOTH
    #     convs and the cin->CP lane padding needed by conv1.  conv2 later
    #     overwrites the full-lane interior, so no re-zeroing.     [items 1, 2]
    padh_ref[...] = jnp.zeros(padh_ref.shape, padh_ref.dtype)
    padh_ref[:, 1:hp + 1, :, 0:cin] = pooled.reshape(n, hp, wp, cin)

    # W-column masks for the +/-1 taps: a flat +/-1 row shift wraps into the
    # neighbouring image row exactly where w == 0 / w == Wp-1, so mask there.
    w_idx = jax.lax.broadcasted_iota(jnp.int32, (f, 1), 0) % wp
    not_first = w_idx != 0              # rows whose w-1 neighbour exists
    not_last = w_idx != (wp - 1)        # rows whose w+1 neighbour exists

    def conv3x3(w_ref):
        """3x3 conv (pad=1): lane-dense bf16 im2col slab + ONE K=9*CP MXU dot."""
        slab = padh_ref[...]                                  # (N, Hp+2, Wp, CP)
        flat = slab.reshape(f, CP)
        zrow = jnp.zeros((1, CP), flat.dtype)
        # Two whole-slab W shifts instead of 6 per-tap misaligned reshapes.
        # TODO(synk): pltpu.roll could move these shifts onto the XLU.
        left = jnp.where(not_first,
                         jnp.concatenate([zrow, flat[:-1, :]], axis=0), 0)
        right = jnp.where(not_last,
                          jnp.concatenate([flat[1:, :], zrow], axis=0), 0)
        slabs = (left.reshape(slab.shape), slab, right.reshape(slab.shape))
        for dh in range(3):        # H taps: tile-granular slices (whole Wp rows)
            for dw in range(3):    # W taps: the three pre-shifted slabs
                t = dh * 3 + dw
                col_ref[:, t * CP:(t + 1) * CP] = (
                    slabs[dw][:, dh:dh + hp].reshape(r, CP))
        # Single long-K matmul feeds the 256-wide MXUs on v6e/v7x.   [item 8]
        return jnp.dot(col_ref[...], w_ref[...],
                       preferred_element_type=jnp.float32)        # (R, CP) f32

    def bn_relu(acc, gamma, beta):
        """Training-mode BatchNorm2d (batch mean, biased var, eps=1e-5) + ReLU.

        One traversal: sum & sum-of-squares, var = E[x^2]-E[x]^2 clamped >= 0,
        all in f32.  Padded channels have gamma == 0 -> output exactly 0.
        """
        s1 = jnp.sum(acc, axis=0, keepdims=True)
        s2 = jnp.sum(acc * acc, axis=0, keepdims=True)
        mean = s1 * inv_r
        var = jnp.maximum(s2 * inv_r - mean * mean, 0.0)
        scale = gamma * jax.lax.rsqrt(var + EPS)
        shift = beta - mean * scale
        return jnp.maximum(acc * scale + shift, 0.0)

    # --- conv1 -> BN1 -> ReLU (everything stays in VMEM) ---------------------
    y1 = bn_relu(conv3x3(w1_ref), bn_ref[0:1, :], bn_ref[1:2, :])

    # --- conv2 -> BN2 -> ReLU (intermediate never touches HBM) ---------------
    # Full-lane interior overwrite; halo rows are still zero from the init.
    padh_ref[:, 1:hp + 1, :, :] = y1.reshape(n, hp, wp, CP).astype(padh_ref.dtype)
    y2 = bn_relu(conv3x3(w2_ref), bn_ref[2:3, :], bn_ref[3:4, :])

    out_ref[...] = y2.astype(out_ref.dtype)        # lane-dense (R, 128) store


def _down_call(xc, w1, w2, bn, n, hp, wp):
    r = n * hp * wp
    vmem = pl.BlockSpec(memory_space=pltpu.MemorySpace.VMEM)
    flops = 2 * (2 * r * (9 * CP) * CP)            # two K = 9*CP matmuls
    bytes_accessed = (xc.size * 2 + (w1.size + w2.size) * 2
                      + bn.size * 4 + r * CP * 4)
    return pl.pallas_call(
        down_kernel,
        out_shape=jax.ShapeDtypeStruct((r, CP), jnp.float32),
        in_specs=[vmem] * 4,
        out_specs=vmem,
        scratch_shapes=[pltpu.VMEM((n, hp + 2, wp, CP), jnp.bfloat16),  # padded act
                        pltpu.VMEM((r, 9 * CP), jnp.bfloat16)],         # im2col slab
        compiler_params=pltpu.CompilerParams(vmem_limit_bytes=32 * 1024 * 1024),
        cost_estimate=pl.CostEstimate(flops=flops, transcendentals=2 * CP,
                                      bytes_accessed=bytes_accessed),
    )(xc, w1, w2, bn)


@functools.partial(jax.jit, static_argnames=("cout",))
def down_forward(x_nchw, params, cout):
    """Forward pass of Down. Input (N, Cin, H, W) NCHW -> (N, cout, H/2, W/2)."""
    n, cin, h, w = x_nchw.shape
    assert h % 2 == 0 and w % 2 == 0, "MaxPool2d(2) needs even spatial dims"
    hp, wp = h // 2, w // 2
    assert wp % 8 == 0, "toy gridless kernel keeps Wp a full sublane multiple"
    assert cin <= CP and cout <= CP

    # One fused relayout (the NCHW->NHWC transpose we need anyway): stack the
    # four 2x2 pool corners on a leading axis, keep only the real cin channels
    # (no 128-lane padding in HBM) and cast to bf16.        [review items 4+5]
    x = jnp.transpose(x_nchw, (0, 2, 3, 1))                     # (N, H, W, Cin)
    x = x.reshape(n, hp, 2, wp, 2, cin)
    xc = jnp.transpose(x, (2, 4, 0, 1, 3, 5)).reshape(4, n * hp, wp, cin)
    xc = xc.astype(jnp.bfloat16)

    y = _down_call(xc, params["w1"], params["w2"], params["bn"], n, hp, wp)
    y = y.reshape(n, hp, wp, CP)[..., :cout]
    # TODO(synk): when chaining Down blocks, keep NHWC (optionally bf16)
    # between layers instead of slicing + transposing back to NCHW here.
    return jnp.transpose(y, (0, 3, 1, 2))                       # NCHW f32


def init_params(key, cin, cout):
    """Deterministic init matching Down(in_channels, out_channels) in .train()."""
    cmid = cout                # DoubleConv default: mid_channels = out_channels
    k1, k2 = jax.random.split(key)

    def conv_w(k, ci, co):
        # PyTorch Conv2d default init: U(-1/sqrt(fan_in), 1/sqrt(fan_in)), fan_in=9*ci
        bound = 1.0 / jnp.sqrt(ci * 9.0)
        w = jax.random.uniform(k, (co, ci, 3, 3), jnp.float32, -bound, bound)
        w = jnp.transpose(w, (2, 3, 1, 0)).reshape(9, ci, co)   # (tap, ci, co)
        w = jnp.pad(w, ((0, 0), (0, CP - ci), (0, CP - co)))    # zero-pad lanes
        return w.reshape(9 * CP, CP).astype(jnp.bfloat16)       # long-K layout

    # Conv2d bias intentionally omitted: training-mode BatchNorm subtracts the
    # batch mean, which cancels a per-channel constant bias exactly.
    # Packed BN constants, rows: [gamma1, beta1, gamma2, beta2, 0, 0, 0, 0].
    bn = jnp.zeros((8, CP), jnp.float32)
    bn = bn.at[0, :cmid].set(1.0)   # BatchNorm2d init: weight = 1, bias = 0
    bn = bn.at[2, :cout].set(1.0)   # padded channels keep gamma = 0
    return dict(w1=conv_w(k1, cin, cmid), w2=conv_w(k2, cmid, cout), bn=bn)


if __name__ == "__main__":
    key = jax.random.PRNGKey(0)
    kx, kp = jax.random.split(key)

    N, C_IN, H, W = 2, 4, 16, 16
    C_OUT = 8

    x = jax.random.normal(kx, (N, C_IN, H, W), jnp.float32)     # NCHW, like PyTorch
    params = init_params(kp, C_IN, C_OUT)

    out = down_forward(x, params, cout=C_OUT)
    out = jax.block_until_ready(out)
    assert out.shape == (N, C_OUT, H // 2, W // 2), out.shape
    assert bool(jnp.all(jnp.isfinite(out)))
    print("KERNEL_OK")
</pallas_src>

<mosaic_0001>
module attributes {stable_mosaic.version = 11 : i64} {
  func.func @down_kernel(%arg0: memref<4x16x8x4xbf16, #tpu.memory_space<vmem>>, %arg1: memref<1152x128xbf16, #tpu.memory_space<vmem>>, %arg2: memref<1152x128xbf16, #tpu.memory_space<vmem>>, %arg3: memref<8x128xf32, #tpu.memory_space<vmem>>, %arg4: memref<128x128xf32, #tpu.memory_space<vmem>>, %arg5: memref<2x10x8x128xbf16, #tpu.memory_space<vmem>>, %arg6: memref<128x1152xbf16, #tpu.memory_space<vmem>>) attributes {dimension_semantics = [], scalar_prefetch = 0 : i64, scratch_operands = 2 : i64, tpu.core_type = #tpu.core_type<tc>} {
    %c0 = arith.constant 0 : index
    %c0_0 = arith.constant 0 : index
    %c0_1 = arith.constant 0 : index
    %c0_2 = arith.constant 0 : index
    %0 = vector.load %arg0[%c0, %c0_0, %c0_1, %c0_2] : memref<4x16x8x4xbf16, #tpu.memory_space<vmem>>, vector<1x16x8x4xbf16>
    %1 = vector.shape_cast %0 : vector<1x16x8x4xbf16> to vector<16x8x4xbf16>
    %c1 = arith.constant 1 : index
    %c0_3 = arith.constant 0 : index
    %c0_4 = arith.constant 0 : index
    %c0_5 = arith.constant 0 : index
    %2 = vector.load %arg0[%c1, %c0_3, %c0_4, %c0_5] : memref<4x16x8x4xbf16, #tpu.memory_space<vmem>>, vector<1x16x8x4xbf16>
    %3 = vector.shape_cast %2 : vector<1x16x8x4xbf16> to vector<16x8x4xbf16>
    %4 = arith.maximumf %1, %3 : vector<16x8x4xbf16>
    %c2 = arith.constant 2 : index
    %c0_6 = arith.constant 0 : index
    %c0_7 = arith.constant 0 : index
    %c0_8 = arith.constant 0 : index
    %5 = vector.load %arg0[%c2, %c0_6, %c0_7, %c0_8] : memref<4x16x8x4xbf16, #tpu.memory_space<vmem>>, vector<1x16x8x4xbf16>
    %6 = vector.shape_cast %5 : vector<1x16x8x4xbf16> to vector<16x8x4xbf16>
    %c3 = arith.constant 3 : index
    %c0_9 = arith.constant 0 : index
    %c0_10 = arith.constant 0 : index
    %c0_11 = arith.constant 0 : index
    %7 = vector.load %arg0[%c3, %c0_9, %c0_10, %c0_11] : memref<4x16x8x4xbf16, #tpu.memory_space<vmem>>, vector<1x16x8x4xbf16>
    %8 = vector.shape_cast %7 : vector<1x16x8x4xbf16> to vector<16x8x4xbf16>
    %9 = arith.maximumf %6, %8 : vector<16x8x4xbf16>
    %10 = arith.maximumf %4, %9 : vector<16x8x4xbf16>
    %cst = arith.constant 0.000000e+00 : bf16
    %11 = vector.broadcast %cst : bf16 to vector<2x10x8x128xbf16>
    %c0_12 = arith.constant 0 : index
    %c0_13 = arith.constant 0 : index
    %c0_14 = arith.constant 0 : index
    %c0_15 = arith.constant 0 : index
    %12 = vector.load %arg5[%c0_12, %c0_13, %c0_14, %c0_15] : memref<2x10x8x128xbf16, #tpu.memory_space<vmem>>, vector<2x10x8x128xbf16>
    tpu.vector_store %arg5[%c0_12, %c0_13, %c0_14, %c0_15], %11 {strides = array<i32>} : memref<2x10x8x128xbf16, #tpu.memory_space<vmem>>, vector<2x10x8x128xbf16>,
    %13 = vector.shape_cast %10 : vector<16x8x4xbf16> to vector<2x8x8x4xbf16>
    %c0_16 = arith.constant 0 : index
    %c1_17 = arith.constant 1 : index
    %c0_18 = arith.constant 0 : index
    %c0_19 = arith.constant 0 : index
    %14 = vector.load %arg5[%c0_16, %c1_17, %c0_18, %c0_19] : memref<2x10x8x128xbf16, #tpu.memory_space<vmem>>, vector<2x8x8x4xbf16>
    tpu.vector_store %arg5[%c0_16, %c1_17, %c0_18, %c0_19], %13 {strides = array<i32>} : memref<2x10x8x128xbf16, #tpu.memory_space<vmem>>, vector<2x8x8x4xbf16>,
    %15 = tpu.iota {dimensions = array<i32: 0>} : vector<160x1xi32>
    %c8_i32 = arith.constant 8 : i32
    %c0_i32 = arith.constant 0 : i32
    %16 = arith.cmpi eq, %c8_i32, %c0_i32 : i32
    %c1_i32 = arith.constant 1 : i32
    %17 = arith.select %16, %c1_i32, %c8_i32 : i32
    %18 = vector.broadcast %17 : i32 to vector<160x1xi32>
    %19 = arith.remsi %15, %18 : vector<160x1xi32>
    %c0_i32_20 = arith.constant 0 : i32
    %20 = vector.broadcast %c0_i32_20 : i32 to vector<160x1xi32>
    %21 = arith.cmpi ne, %19, %20 : vector<160x1xi32>
    %c0_i32_21 = arith.constant 0 : i32
    %22 = vector.broadcast %c0_i32_21 : i32 to vector<160x1xi32>
    %23 = arith.cmpi slt, %19, %22 : vector<160x1xi32>
    %c0_i32_22 = arith.constant 0 : i32
    %24 = arith.cmpi slt, %17, %c0_i32_22 : i32
    %25 = vector.broadcast %24 : i1 to vector<160x1xi1>
    %26 = vector.broadcast %25 : vector<160x1xi1> to vector<160x1xi1>
    %27 = arith.xori %23, %26 : vector<160x1xi1>
    %28 = arith.andi %27, %21 : vector<160x1xi1>
    %29 = vector.broadcast %17 : i32 to vector<160x1xi32>
    %30 = arith.addi %19, %29 : vector<160x1xi32>
    %31 = arith.select %28, %30, %19 : vector<160x1xi1>, vector<160x1xi32>
    %c0_i32_23 = arith.constant 0 : i32
    %32 = vector.broadcast %c0_i32_23 : i32 to vector<160x1xi32>
    %33 = arith.cmpi ne, %31, %32 : vector<160x1xi32>
    %c7_i32 = arith.constant 7 : i32
    %34 = vector.broadcast %c7_i32 : i32 to vector<160x1xi32>
    %35 = arith.cmpi ne, %31, %34 : vector<160x1xi32>
    %c0_24 = arith.constant 0 : index
    %c0_25 = arith.constant 0 : index
    %c0_26 = arith.constant 0 : index
    %c0_27 = arith.constant 0 : index
    %36 = vector.load %arg5[%c0_24, %c0_25, %c0_26, %c0_27] : memref<2x10x8x128xbf16, #tpu.memory_space<vmem>>, vector<2x10x8x128xbf16>
    %37 = vector.shape_cast %36 : vector<2x10x8x128xbf16> to vector<160x128xbf16>
    %cst_28 = arith.constant 0.000000e+00 : bf16
    %38 = vector.broadcast %cst_28 : bf16 to vector<1x128xbf16>
    %39 = vector.extract_strided_slice %37 {offsets = [0, 0], sizes = [159, 128], strides = [1, 1]} : vector<160x128xbf16> to vector<159x128xbf16>
    %40 = tpu.concatenate %38, %39 in 0 : vector<1x128xbf16>, vector<159x128xbf16> -> vector<160x128xbf16>
    %c0_i32_29 = arith.constant 0 : i32
    %41 = arith.sitofp %c0_i32_29 : i32 to bf16
    %42 = vector.shape_cast %33 : vector<160x1xi1> to vector<160x1xi1>
    %43 = vector.broadcast %42 : vector<160x1xi1> to vector<160x128xi1>
    %44 = vector.broadcast %41 : bf16 to vector<160x128xbf16>
    %45 = arith.select %43, %40, %44 : vector<160x128xi1>, vector<160x128xbf16>
    %46 = vector.extract_strided_slice %37 {offsets = [1, 0], sizes = [159, 128], strides = [1, 1]} : vector<160x128xbf16> to vector<159x128xbf16>
    %47 = tpu.concatenate %46, %38 in 0 : vector<159x128xbf16>, vector<1x128xbf16> -> vector<160x128xbf16>
    %c0_i32_30 = arith.constant 0 : i32
    %48 = arith.sitofp %c0_i32_30 : i32 to bf16
    %49 = vector.shape_cast %35 : vector<160x1xi1> to vector<160x1xi1>
    %50 = vector.broadcast %49 : vector<160x1xi1> to vector<160x128xi1>
    %51 = vector.broadcast %48 : bf16 to vector<160x128xbf16>
    %52 = arith.select %50, %47, %51 : vector<160x128xi1>, vector<160x128xbf16>
    %53 = vector.shape_cast %45 : vector<160x128xbf16> to vector<2x10x8x128xbf16>
    %54 = vector.shape_cast %52 : vector<160x128xbf16> to vector<2x10x8x128xbf16>
    %55 = vector.extract_strided_slice %53 {offsets = [0, 0, 0, 0], sizes = [2, 8, 8, 128], strides = [1, 1, 1, 1]} : vector<2x10x8x128xbf16> to vector<2x8x8x128xbf16>
    %56 = vector.shape_cast %55 : vector<2x8x8x128xbf16> to vector<128x128xbf16>
    %c0_31 = arith.constant 0 : index
    %c0_32 = arith.constant 0 : index
    %57 = vector.load %arg6[%c0_31, %c0_32] : memref<128x1152xbf16, #tpu.memory_space<vmem>>, vector<128x128xbf16>
    tpu.vector_store %arg6[%c0_31, %c0_32], %56 {strides = array<i32>} : memref<128x1152xbf16, #tpu.memory_space<vmem>>, vector<128x128xbf16>,
    %58 = vector.extract_strided_slice %36 {offsets = [0, 0, 0, 0], sizes = [2, 8, 8, 128], strides = [1, 1, 1, 1]} : vector<2x10x8x128xbf16> to vector<2x8x8x128xbf16>
    %59 = vector.shape_cast %58 : vector<2x8x8x128xbf16> to vector<128x128xbf16>
    %c0_33 = arith.constant 0 : index
    %c128 = arith.constant 128 : index
    %60 = vector.load %arg6[%c0_33, %c128] : memref<128x1152xbf16, #tpu.memory_space<vmem>>, vector<128x128xbf16>
    tpu.vector_store %arg6[%c0_33, %c128], %59 {strides = array<i32>} : memref<128x1152xbf16, #tpu.memory_space<vmem>>, vector<128x128xbf16>,
    %61 = vector.extract_strided_slice %54 {offsets = [0, 0, 0, 0], sizes = [2, 8, 8, 128], strides = [1, 1, 1, 1]} : vector<2x10x8x128xbf16> to vector<2x8x8x128xbf16>
    %62 = vector.shape_cast %61 : vector<2x8x8x128xbf16> to vector<128x128xbf16>
    %c0_34 = arith.constant 0 : index
    %c256 = arith.constant 256 : index
    %63 = vector.load %arg6[%c0_34, %c256] : memref<128x1152xbf16, #tpu.memory_space<vmem>>, vector<128x128xbf16>
    tpu.vector_store %arg6[%c0_34, %c256], %62 {strides = array<i32>} : memref<128x1152xbf16, #tpu.memory_space<vmem>>, vector<128x128xbf16>,
    %64 = vector.extract_strided_slice %53 {offsets = [0, 1, 0, 0], sizes = [2, 8, 8, 128], strides = [1, 1, 1, 1]} : vector<2x10x8x128xbf16> to vector<2x8x8x128xbf16>
    %65 = vector.shape_cast %64 : vector<2x8x8x128xbf16> to vector<128x128xbf16>
    %c0_35 = arith.constant 0 : index
    %c384 = arith.constant 384 : index
    %66 = vector.load %arg6[%c0_35, %c384] : memref<128x1152xbf16, #tpu.memory_space<vmem>>, vector<128x128xbf16>
    tpu.vector_store %arg6[%c0_35, %c384], %65 {strides = array<i32>} : memref<128x1152xbf16, #tpu.memory_space<vmem>>, vector<128x128xbf16>,
    %67 = vector.extract_strided_slice %36 {offsets = [0, 1, 0, 0], sizes = [2, 8, 8, 128], strides = [1, 1, 1, 1]} : vector<2x10x8x128xbf16> to vector<2x8x8x128xbf16>
    %68 = vector.shape_cast %67 : vector<2x8x8x128xbf16> to vector<128x128xbf16>
    %c0_36 = arith.constant 0 : index
    %c512 = arith.constant 512 : index
    %69 = vector.load %arg6[%c0_36, %c512] : memref<128x1152xbf16, #tpu.memory_space<vmem>>, vector<128x128xbf16>
    tpu.vector_store %arg6[%c0_36, %c512], %68 {strides = array<i32>} : memref<128x1152xbf16, #tpu.memory_space<vmem>>, vector<128x128xbf16>,
    %70 = vector.extract_strided_slice %54 {offsets = [0, 1, 0, 0], sizes = [2, 8, 8, 128], strides = [1, 1, 1, 1]} : vector<2x10x8x128xbf16> to vector<2x8x8x128xbf16>
    %71 = vector.shape_cast %70 : vector<2x8x8x128xbf16> to vector<128x128xbf16>
    %c0_37 = arith.constant 0 : index
    %c640 = arith.constant 640 : index
    %72 = vector.load %arg6[%c0_37, %c640] : memref<128x1152xbf16, #tpu.memory_space<vmem>>, vector<128x128xbf16>
    tpu.vector_store %arg6[%c0_37, %c640], %71 {strides = array<i32>} : memref<128x1152xbf16, #tpu.memory_space<vmem>>, vector<128x128xbf16>,
    %73 = vector.extract_strided_slice %53 {offsets = [0, 2, 0, 0], sizes = [2, 8, 8, 128], strides = [1, 1, 1, 1]} : vector<2x10x8x128xbf16> to vector<2x8x8x128xbf16>
    %74 = vector.shape_cast %73 : vector<2x8x8x128xbf16> to vector<128x128xbf16>
    %c0_38 = arith.constant 0 : index
    %c768 = arith.constant 768 : index
    %75 = vector.load %arg6[%c0_38, %c768] : memref<128x1152xbf16, #tpu.memory_space<vmem>>, vector<128x128xbf16>
    tpu.vector_store %arg6[%c0_38, %c768], %74 {strides = array<i32>} : memref<128x1152xbf16, #tpu.memory_space<vmem>>, vector<128x128xbf16>,
    %76 = vector.extract_strided_slice %36 {offsets = [0, 2, 0, 0], sizes = [2, 8, 8, 128], strides = [1, 1, 1, 1]} : vector<2x10x8x128xbf16> to vector<2x8x8x128xbf16>
    %77 = vector.shape_cast %76 : vector<2x8x8x128xbf16> to vector<128x128xbf16>
    %c0_39 = arith.constant 0 : index
    %c896 = arith.constant 896 : index
    %78 = vector.load %arg6[%c0_39, %c896] : memref<128x1152xbf16, #tpu.memory_space<vmem>>, vector<128x128xbf16>
    tpu.vector_store %arg6[%c0_39, %c896], %77 {strides = array<i32>} : memref<128x1152xbf16, #tpu.memory_space<vmem>>, vector<128x128xbf16>,
    %79 = vector.extract_strided_slice %54 {offsets = [0, 2, 0, 0], sizes = [2, 8, 8, 128], strides = [1, 1, 1, 1]} : vector<2x10x8x128xbf16> to vector<2x8x8x128xbf16>
    %80 = vector.shape_cast %79 : vector<2x8x8x128xbf16> to vector<128x128xbf16>
    %c0_40 = arith.constant 0 : index
    %c1024 = arith.constant 1024 : index
    %81 = vector.load %arg6[%c0_40, %c1024] : memref<128x1152xbf16, #tpu.memory_space<vmem>>, vector<128x128xbf16>
    tpu.vector_store %arg6[%c0_40, %c1024], %80 {strides = array<i32>} : memref<128x1152xbf16, #tpu.memory_space<vmem>>, vector<128x128xbf16>,
    %c0_41 = arith.constant 0 : index
    %c0_42 = arith.constant 0 : index
    %82 = vector.load %arg6[%c0_41, %c0_42] : memref<128x1152xbf16, #tpu.memory_space<vmem>>, vector<128x1152xbf16>
    %c0_43 = arith.constant 0 : index
    %c0_44 = arith.constant 0 : index
    %83 = vector.load %arg1[%c0_43, %c0_44] : memref<1152x128xbf16, #tpu.memory_space<vmem>>, vector<1152x128xbf16>
    %cst_45 = arith.constant dense<0.000000e+00> : vector<128x128xf32>
    %84 = tpu.matmul %82, %83, %cst_45 {dimension_numbers = #tpu.dot_dimension_numbers<[1], [0], [0], [1], [0, 0, 1, 1], [], []>} : vector<128x1152xbf16>, vector<1152x128xbf16>, vector<128x128xf32> -> vector<128x128xf32>
    %c0_46 = arith.constant 0 : index
    %c0_47 = arith.constant 0 : index
    %85 = vector.load %arg3[%c0_46, %c0_47] : memref<8x128xf32, #tpu.memory_space<vmem>>, vector<1x128xf32>
    %c1_48 = arith.constant 1 : index
    %c0_49 = arith.constant 0 : index
    %86 = vector.load %arg3[%c1_48, %c0_49] : memref<8x128xf32, #tpu.memory_space<vmem>>, vector<1x128xf32>
    %cst_50 = arith.constant dense<0.000000e+00> : vector<128xf32>
    %87 = vector.multi_reduction <add>, %84, %cst_50 [0] : vector<128x128xf32> to vector<128xf32>
    %88 = vector.shape_cast %87 : vector<128xf32> to vector<1x128xf32>
    %89 = arith.mulf %84, %84 : vector<128x128xf32>
    %cst_51 = arith.constant dense<0.000000e+00> : vector<128xf32>
    %90 = vector.multi_reduction <add>, %89, %cst_51 [0] : vector<128x128xf32> to vector<128xf32>
    %91 = vector.shape_cast %90 : vector<128xf32> to vector<1x128xf32>
    %cst_52 = arith.constant 7.812500e-03 : f32
    %92 = vector.broadcast %cst_52 : f32 to vector<1x128xf32>
    %93 = arith.mulf %88, %92 : vector<1x128xf32>
    %cst_53 = arith.constant 7.812500e-03 : f32
    %94 = vector.broadcast %cst_53 : f32 to vector<1x128xf32>
    %95 = arith.mulf %91, %94 : vector<1x128xf32>
    %96 = arith.mulf %93, %93 : vector<1x128xf32>
    %97 = arith.subf %95, %96 : vector<1x128xf32>
    %cst_54 = arith.constant 0.000000e+00 : f32
    %98 = vector.broadcast %cst_54 : f32 to vector<1x128xf32>
    %99 = arith.maximumf %97, %98 : vector<1x128xf32>
    %cst_55 = arith.constant 9.99999974E-6 : f32
    %100 = vector.broadcast %cst_55 : f32 to vector<1x128xf32>
    %101 = arith.addf %99, %100 : vector<1x128xf32>
    %102 = math.rsqrt %101 : vector<1x128xf32>
    %103 = arith.mulf %85, %102 : vector<1x128xf32>
    %104 = arith.mulf %93, %103 : vector<1x128xf32>
    %105 = arith.subf %86, %104 : vector<1x128xf32>
    %106 = vector.broadcast %103 : vector<1x128xf32> to vector<128x128xf32>
    %107 = arith.mulf %84, %106 : vector<128x128xf32>
    %108 = vector.broadcast %105 : vector<1x128xf32> to vector<128x128xf32>
    %109 = arith.addf %107, %108 : vector<128x128xf32>
    %cst_56 = arith.constant 0.000000e+00 : f32
    %110 = vector.broadcast %cst_56 : f32 to vector<128x128xf32>
    %111 = arith.maximumf %109, %110 : vector<128x128xf32>
    %112 = vector.shape_cast %111 : vector<128x128xf32> to vector<2x8x8x128xf32>
    %113 = arith.truncf %112 : vector<2x8x8x128xf32> to vector<2x8x8x128xbf16>
    %c0_57 = arith.constant 0 : index
    %c1_58 = arith.constant 1 : index
    %c0_59 = arith.constant 0 : index
    %c0_60 = arith.constant 0 : index
    %114 = vector.load %arg5[%c0_57, %c1_58, %c0_59, %c0_60] : memref<2x10x8x128xbf16, #tpu.memory_space<vmem>>, vector<2x8x8x128xbf16>
    tpu.vector_store %arg5[%c0_57, %c1_58, %c0_59, %c0_60], %113 {strides = array<i32>} : memref<2x10x8x128xbf16, #tpu.memory_space<vmem>>, vector<2x8x8x128xbf16>,
    %c0_61 = arith.constant 0 : index
    %c0_62 = arith.constant 0 : index
    %c0_63 = arith.constant 0 : index
    %c0_64 = arith.constant 0 : index
    %115 = vector.load %arg5[%c0_61, %c0_62, %c0_63, %c0_64] : memref<2x10x8x128xbf16, #tpu.memory_space<vmem>>, vector<2x10x8x128xbf16>
    %116 = vector.shape_cast %115 : vector<2x10x8x128xbf16> to vector<160x128xbf16>
    %cst_65 = arith.constant 0.000000e+00 : bf16
    %117 = vector.broadcast %cst_65 : bf16 to vector<1x128xbf16>
    %118 = vector.extract_strided_slice %116 {offsets = [0, 0], sizes = [159, 128], strides = [1, 1]} : vector<160x128xbf16> to vector<159x128xbf16>
    %119 = tpu.concatenate %117, %118 in 0 : vector<1x128xbf16>, vector<159x128xbf16> -> vector<160x128xbf16>
    %c0_i32_66 = arith.constant 0 : i32
    %120 = arith.sitofp %c0_i32_66 : i32 to bf16
    %121 = vector.shape_cast %33 : vector<160x1xi1> to vector<160x1xi1>
    %122 = vector.broadcast %121 : vector<160x1xi1> to vector<160x128xi1>
    %123 = vector.broadcast %120 : bf16 to vector<160x128xbf16>
    %124 = arith.select %122, %119, %123 : vector<160x128xi1>, vector<160x128xbf16>
    %125 = vector.extract_strided_slice %116 {offsets = [1, 0], sizes = [159, 128], strides = [1, 1]} : vector<160x128xbf16> to vector<159x128xbf16>
    %126 = tpu.concatenate %125, %117 in 0 : vector<159x128xbf16>, vector<1x128xbf16> -> vector<160x128xbf16>
    %c0_i32_67 = arith.constant 0 : i32
    %127 = arith.sitofp %c0_i32_67 : i32 to bf16
    %128 = vector.shape_cast %35 : vector<160x1xi1> to vector<160x1xi1>
    %129 = vector.broadcast %128 : vector<160x1xi1> to vector<160x128xi1>
    %130 = vector.broadcast %127 : bf16 to vector<160x128xbf16>
    %131 = arith.select %129, %126, %130 : vector<160x128xi1>, vector<160x128xbf16>
    %132 = vector.shape_cast %124 : vector<160x128xbf16> to vector<2x10x8x128xbf16>
    %133 = vector.shape_cast %131 : vector<160x128xbf16> to vector<2x10x8x128xbf16>
    %134 = vector.extract_strided_slice %132 {offsets = [0, 0, 0, 0], sizes = [2, 8, 8, 128], strides = [1, 1, 1, 1]} : vector<2x10x8x128xbf16> to vector<2x8x8x128xbf16>
    %135 = vector.shape_cast %134 : vector<2x8x8x128xbf16> to vector<128x128xbf16>
    %c0_68 = arith.constant 0 : index
    %c0_69 = arith.constant 0 : index
    %136 = vector.load %arg6[%c0_68, %c0_69] : memref<128x1152xbf16, #tpu.memory_space<vmem>>, vector<128x128xbf16>
    tpu.vector_store %arg6[%c0_68, %c0_69], %135 {strides = array<i32>} : memref<128x1152xbf16, #tpu.memory_space<vmem>>, vector<128x128xbf16>,
    %137 = vector.extract_strided_slice %115 {offsets = [0, 0, 0, 0], sizes = [2, 8, 8, 128], strides = [1, 1, 1, 1]} : vector<2x10x8x128xbf16> to vector<2x8x8x128xbf16>
    %138 = vector.shape_cast %137 : vector<2x8x8x128xbf16> to vector<128x128xbf16>
    %c0_70 = arith.constant 0 : index
    %c128_71 = arith.constant 128 : index
    %139 = vector.load %arg6[%c0_70, %c128_71] : memref<128x1152xbf16, #tpu.memory_space<vmem>>, vector<128x128xbf16>
    tpu.vector_store %arg6[%c0_70, %c128_71], %138 {strides = array<i32>} : memref<128x1152xbf16, #tpu.memory_space<vmem>>, vector<128x128xbf16>,
    %140 = vector.extract_strided_slice %133 {offsets = [0, 0, 0, 0], sizes = [2, 8, 8, 128], strides = [1, 1, 1, 1]} : vector<2x10x8x128xbf16> to vector<2x8x8x128xbf16>
    %141 = vector.shape_cast %140 : vector<2x8x8x128xbf16> to vector<128x128xbf16>
    %c0_72 = arith.constant 0 : index
    %c256_73 = arith.constant 256 : index
    %142 = vector.load %arg6[%c0_72, %c256_73] : memref<128x1152xbf16, #tpu.memory_space<vmem>>, vector<128x128xbf16>
    tpu.vector_store %arg6[%c0_72, %c256_73], %141 {strides = array<i32>} : memref<128x1152xbf16, #tpu.memory_space<vmem>>, vector<128x128xbf16>,
    %143 = vector.extract_strided_slice %132 {offsets = [0, 1, 0, 0], sizes = [2, 8, 8, 128], strides = [1, 1, 1, 1]} : vector<2x10x8x128xbf16> to vector<2x8x8x128xbf16>
    %144 = vector.shape_cast %143 : vector<2x8x8x128xbf16> to vector<128x128xbf16>
    %c0_74 = arith.constant 0 : index
    %c384_75 = arith.constant 384 : index
    %145 = vector.load %arg6[%c0_74, %c384_75] : memref<128x1152xbf16, #tpu.memory_space<vmem>>, vector<128x128xbf16>
    tpu.vector_store %arg6[%c0_74, %c384_75], %144 {strides = array<i32>} : memref<128x1152xbf16, #tpu.memory_space<vmem>>, vector<128x128xbf16>,
    %146 = vector.extract_strided_slice %115 {offsets = [0, 1, 0, 0], sizes = [2, 8, 8, 128], strides = [1, 1, 1, 1]} : vector<2x10x8x128xbf16> to vector<2x8x8x128xbf16>
    %147 = vector.shape_cast %146 : vector<2x8x8x128xbf16> to vector<128x128xbf16>
    %c0_76 = arith.constant 0 : index
    %c512_77 = arith.constant 512 : index
    %148 = vector.load %arg6[%c0_76, %c512_77] : memref<128x1152xbf16, #tpu.memory_space<vmem>>, vector<128x128xbf16>
    tpu.vector_store %arg6[%c0_76, %c512_77], %147 {strides = array<i32>} : memref<128x1152xbf16, #tpu.memory_space<vmem>>, vector<128x128xbf16>,
    %149 = vector.extract_strided_slice %133 {offsets = [0, 1, 0, 0], sizes = [2, 8, 8, 128], strides = [1, 1, 1, 1]} : vector<2x10x8x128xbf16> to vector<2x8x8x128xbf16>
    %150 = vector.shape_cast %149 : vector<2x8x8x128xbf16> to vector<128x128xbf16>
    %c0_78 = arith.constant 0 : index
    %c640_79 = arith.constant 640 : index
    %151 = vector.load %arg6[%c0_78, %c640_79] : memref<128x1152xbf16, #tpu.memory_space<vmem>>, vector<128x128xbf16>
    tpu.vector_store %arg6[%c0_78, %c640_79], %150 {strides = array<i32>} : memref<128x1152xbf16, #tpu.memory_space<vmem>>, vector<128x128xbf16>,
    %152 = vector.extract_strided_slice %132 {offsets = [0, 2, 0, 0], sizes = [2, 8, 8, 128], strides = [1, 1, 1, 1]} : vector<2x10x8x128xbf16> to vector<2x8x8x128xbf16>
    %153 = vector.shape_cast %152 : vector<2x8x8x128xbf16> to vector<128x128xbf16>
    %c0_80 = arith.constant 0 : index
    %c768_81 = arith.constant 768 : index
    %154 = vector.load %arg6[%c0_80, %c768_81] : memref<128x1152xbf16, #tpu.memory_space<vmem>>, vector<128x128xbf16>
    tpu.vector_store %arg6[%c0_80, %c768_81], %153 {strides = array<i32>} : memref<128x1152xbf16, #tpu.memory_space<vmem>>, vector<128x128xbf16>,
    %155 = vector.extract_strided_slice %115 {offsets = [0, 2, 0, 0], sizes = [2, 8, 8, 128], strides = [1, 1, 1, 1]} : vector<2x10x8x128xbf16> to vector<2x8x8x128xbf16>
    %156 = vector.shape_cast %155 : vector<2x8x8x128xbf16> to vector<128x128xbf16>
    %c0_82 = arith.constant 0 : index
    %c896_83 = arith.constant 896 : index
    %157 = vector.load %arg6[%c0_82, %c896_83] : memref<128x1152xbf16, #tpu.memory_space<vmem>>, vector<128x128xbf16>
    tpu.vector_store %arg6[%c0_82, %c896_83], %156 {strides = array<i32>} : memref<128x1152xbf16, #tpu.memory_space<vmem>>, vector<128x128xbf16>,
    %158 = vector.extract_strided_slice %133 {offsets = [0, 2, 0, 0], sizes = [2, 8, 8, 128], strides = [1, 1, 1, 1]} : vector<2x10x8x128xbf16> to vector<2x8x8x128xbf16>
    %159 = vector.shape_cast %158 : vector<2x8x8x128xbf16> to vector<128x128xbf16>
    %c0_84 = arith.constant 0 : index
    %c1024_85 = arith.constant 1024 : index
    %160 = vector.load %arg6[%c0_84, %c1024_85] : memref<128x1152xbf16, #tpu.memory_space<vmem>>, vector<128x128xbf16>
    tpu.vector_store %arg6[%c0_84, %c1024_85], %159 {strides = array<i32>} : memref<128x1152xbf16, #tpu.memory_space<vmem>>, vector<128x128xbf16>,
    %c0_86 = arith.constant 0 : index
    %c0_87 = arith.constant 0 : index
    %161 = vector.load %arg6[%c0_86, %c0_87] : memref<128x1152xbf16, #tpu.memory_space<vmem>>, vector<128x1152xbf16>
    %c0_88 = arith.constant 0 : index
    %c0_89 = arith.constant 0 : index
    %162 = vector.load %arg2[%c0_88, %c0_89] : memref<1152x128xbf16, #tpu.memory_space<vmem>>, vector<1152x128xbf16>
    %cst_90 = arith.constant dense<0.000000e+00> : vector<128x128xf32>
    %163 = tpu.matmul %161, %162, %cst_90 {dimension_numbers = #tpu.dot_dimension_numbers<[1], [0], [0], [1], [0, 0, 1, 1], [], []>} : vector<128x1152xbf16>, vector<1152x128xbf16>, vector<128x128xf32> -> vector<128x128xf32>
    %c2_91 = arith.constant 2 : index
    %c0_92 = arith.constant 0 : index
    %164 = vector.load %arg3[%c2_91, %c0_92] : memref<8x128xf32, #tpu.memory_space<vmem>>, vector<1x128xf32>
    %c3_93 = arith.constant 3 : index
    %c0_94 = arith.constant 0 : index
    %165 = vector.load %arg3[%c3_93, %c0_94] : memref<8x128xf32, #tpu.memory_space<vmem>>, vector<1x128xf32>
    %cst_95 = arith.constant dense<0.000000e+00> : vector<128xf32>
    %166 = vector.multi_reduction <add>, %163, %cst_95 [0] : vector<128x128xf32> to vector<128xf32>
    %167 = vector.shape_cast %166 : vector<128xf32> to vector<1x128xf32>
    %168 = arith.mulf %163, %163 : vector<128x128xf32>
    %cst_96 = arith.constant dense<0.000000e+00> : vector<128xf32>
    %169 = vector.multi_reduction <add>, %168, %cst_96 [0] : vector<128x128xf32> to vector<128xf32>
    %170 = vector.shape_cast %169 : vector<128xf32> to vector<1x128xf32>
    %cst_97 = arith.constant 7.812500e-03 : f32
    %171 = vector.broadcast %cst_97 : f32 to vector<1x128xf32>
    %172 = arith.mulf %167, %171 : vector<1x128xf32>
    %cst_98 = arith.constant 7.812500e-03 : f32
    %173 = vector.broadcast %cst_98 : f32 to vector<1x128xf32>
    %174 = arith.mulf %170, %173 : vector<1x128xf32>
    %175 = arith.mulf %172, %172 : vector<1x128xf32>
    %176 = arith.subf %174, %175 : vector<1x128xf32>
    %cst_99 = arith.constant 0.000000e+00 : f32
    %177 = vector.broadcast %cst_99 : f32 to vector<1x128xf32>
    %178 = arith.maximumf %176, %177 : vector<1x128xf32>
    %cst_100 = arith.constant 9.99999974E-6 : f32
    %179 = vector.broadcast %cst_100 : f32 to vector<1x128xf32>
    %180 = arith.addf %178, %179 : vector<1x128xf32>
    %181 = math.rsqrt %180 : vector<1x128xf32>
    %182 = arith.mulf %164, %181 : vector<1x128xf32>
    %183 = arith.mulf %172, %182 : vector<1x128xf32>
    %184 = arith.subf %165, %183 : vector<1x128xf32>
    %185 = vector.broadcast %182 : vector<1x128xf32> to vector<128x128xf32>
    %186 = arith.mulf %163, %185 : vector<128x128xf32>
    %187 = vector.broadcast %184 : vector<1x128xf32> to vector<128x128xf32>
    %188 = arith.addf %186, %187 : vector<128x128xf32>
    %cst_101 = arith.constant 0.000000e+00 : f32
    %189 = vector.broadcast %cst_101 : f32 to vector<128x128xf32>
    %190 = arith.maximumf %188, %189 : vector<128x128xf32>
    %c0_102 = arith.constant 0 : index
    %c0_103 = arith.constant 0 : index
    %191 = vector.load %arg4[%c0_102, %c0_103] : memref<128x128xf32, #tpu.memory_space<vmem>>, vector<128x128xf32>
    tpu.vector_store %arg4[%c0_102, %c0_103], %190 {strides = array<i32>} : memref<128x128xf32, #tpu.memory_space<vmem>>, vector<128x128xf32>,
    return
  }
}

</mosaic_0001>

<llo_original>
// kernel: down_forward.1
$region0: #{down_forward.1}
  #allocation0 [shape = 'u32[]', space=smem, size = 0x4, offset = 0x4, fixed_abs, tag = 'smem constant byte address 0x4 - core index']
  #allocation1 [shape = 'u32[72,128]{1,0:T(1,128)}', space=vmem, size = 0x9000, scoped, tag = 'internal scratch']
  #allocation2 [shape = 'bf16[2,10,8,128]{3,2,1,0:T(8,128)(2,1)}', space=vmem, size = 0xa000, scoped, tag = 'scratch operand']
  #allocation3 [shape = 'bf16[128,1152]{1,0:T(8,128)(2,1)}', space=vmem, size = 0x48000, scoped, tag = 'scratch operand']
  %s0 = inlined_call_operand.vmem [shape: bf16[4,16,8,4], index: 0, kind: input, shape index: {}]
  %s1 = inlined_call_operand.vmem [shape: bf16[1152,128], index: 1, kind: input, shape index: {}]
  %s2 = inlined_call_operand.hbm [shape: bf16[1152,128], index: 2, kind: input, shape index: {}]
  %s3 = inlined_call_operand.vmem [shape: f32[8,128], index: 3, kind: input, shape index: {}]
  %s4 = inlined_call_operand.vmem [shape: f32[128,128], index: 4, kind: output, shape index: {}]
  %s5 = sld [smem:[#allocation0]]
  $region30: #{down_forward.1} parent=0
    _
  %s7 = ssub.s32 1, %s5
  %s8 = scalar_select 0, %s7, %s5
  $region1: #{down_forward.1} parent=0
    #allocation4 [shape = 'u8[294912]{0}', space=vmem, size = 0x48000, scoped, tag = 'input window, operand 2, single buffered']
    #allocation5 [shape = 's32[1]{0}', space=sflag, size = 0x4, scoped, tag = 'scoped memory for down_forward.1']
    %9 = vsyncpa [#allocation5], 0
    // Predicated region
    $region2: #{down_forward.1} parent=1 // pred_check
      _
    $region3: #{down_forward.1} parent=1 // pred_check_branch
      %11 = sbr.rel (0) target = $region5
    $region4: #{down_forward.1} parent=1 // pred_region
      _
    $region5: #{down_forward.1} parent=1 // pred_fallthru
      _
    // Predicated region
    $region6: #{down_forward.1} parent=1 // pred_check
      _
    $region7: #{down_forward.1} parent=1 // pred_check_branch
      %13 = sbr.rel (0) target = $region9
    $region8: #{down_forward.1} parent=1 // pred_region
      _
    $region9: #{down_forward.1} parent=1 // pred_fallthru
      _
    // Predicated region
    $region10: #{down_forward.1} parent=1 // pred_check
      _
    $region11: #{down_forward.1} parent=1 // pred_check_branch
      %15 = sbr.rel (0) target = $region13
    $region12: #{down_forward.1} parent=1 // pred_region
      %17 = vsyncadd [#allocation5], 0
      %s18 = sshll.u32 %s2, 4
      %s19 = int_to_ptr.hbm [resolvable:$true] %s18
      %s20 = sshll.u32 [#allocation4], 4
      %s21 = int_to_ptr.vmem [resolvable:$true] %s20
      %26 = dma.hbm_to_vmem [thread:$0]  %s19, 9216, %s21, [#allocation5], 64, 64, 4
    $region13: #{down_forward.1} parent=1 // pred_fallthru
      _
    // Predicated region
    $region14: #{down_forward.1} parent=1 // pred_check
      _
    $region15: #{down_forward.1} parent=1 // pred_check_branch
      %28 = sbr.rel (0) target = $region17
    $region16: #{down_forward.1} parent=1 // pred_region
      _
    $region17: #{down_forward.1} parent=1 // pred_fallthru
      _
    // Predicated region
    $region18: #{down_forward.1} parent=1 // pred_check
      _
    $region19: #{down_forward.1} parent=1 // pred_check_branch
      %30 = sbr.rel (0) target = $region21
    $region20: #{down_forward.1} parent=1 // pred_region
      %32 = dma.done [#allocation5], 9216
    $region21: #{down_forward.1} parent=1 // pred_fallthru
      _
    %v36 = vld [vmem:[%s0] sm:$0xf]
    %v37 = vld [vmem:[%s0 + $0x4] sm:$0xf]
    %v38 = vld [vmem:[%s0 + $0x8] sm:$0xf]
    %v39 = vld [vmem:[%s0 + $0xc] sm:$0xf]
    %v40 = vld [vmem:[%s0 + $0x10] sm:$0xf]
    %v41 = vld [vmem:[%s0 + $0x14] sm:$0xf]
    %v42 = vld [vmem:[%s0 + $0x18] sm:$0xf]
    %v43 = vld [vmem:[%s0 + $0x1c] sm:$0xf]
    %v44 = vld [vmem:[%s0 + $0x20] sm:$0xf]
    %v45 = vld [vmem:[%s0 + $0x24] sm:$0xf]
    %v46 = vld [vmem:[%s0 + $0x28] sm:$0xf]
    %v47 = vld [vmem:[%s0 + $0x2c] sm:$0xf]
    %v48 = vld [vmem:[%s0 + $0x30] sm:$0xf]
    %v49 = vld [vmem:[%s0 + $0x34] sm:$0xf]
    %v50 = vld [vmem:[%s0 + $0x38] sm:$0xf]
    %v51 = vld [vmem:[%s0 + $0x3c] sm:$0xf]
    %s52 = scalar_lea.vmem %s0, 64
    %v53 = vld [vmem:[%s52] sm:$0xf]
    %v54 = vld [vmem:[%s52 + $0x4] sm:$0xf]
    %v55 = vld [vmem:[%s52 + $0x8] sm:$0xf]
    %v56 = vld [vmem:[%s52 + $0xc] sm:$0xf]
    %v57 = vld [vmem:[%s52 + $0x10] sm:$0xf]
    %v58 = vld [vmem:[%s52 + $0x14] sm:$0xf]
    %v59 = vld [vmem:[%s52 + $0x18] sm:$0xf]
    %v60 = vld [vmem:[%s52 + $0x1c] sm:$0xf]
    %v61 = vld [vmem:[%s52 + $0x20] sm:$0xf]
    %v62 = vld [vmem:[%s52 + $0x24] sm:$0xf]
    %v63 = vld [vmem:[%s52 + $0x28] sm:$0xf]
    %v64 = vld [vmem:[%s52 + $0x2c] sm:$0xf]
    %v65 = vld [vmem:[%s52 + $0x30] sm:$0xf]
    %v66 = vld [vmem:[%s52 + $0x34] sm:$0xf]
    %v67 = vld [vmem:[%s52 + $0x38] sm:$0xf]
    %v68 = vld [vmem:[%s52 + $0x3c] sm:$0xf]
    %v69 = vunpack.c.l.bf16 %v36
    %v70 = vunpack.c.l.bf16 %v37
    %v71 = vunpack.c.l.bf16 %v38
    %v72 = vunpack.c.l.bf16 %v39
    %v73 = vunpack.c.l.bf16 %v40
    %v74 = vunpack.c.l.bf16 %v41
    %v75 = vunpack.c.l.bf16 %v42
    %v76 = vunpack.c.l.bf16 %v43
    %v77 = vunpack.c.l.bf16 %v44
    %v78 = vunpack.c.l.bf16 %v45
    %v79 = vunpack.c.l.bf16 %v46
    %v80 = vunpack.c.l.bf16 %v47
    %v81 = vunpack.c.l.bf16 %v48
    %v82 = vunpack.c.l.bf16 %v49
    %v83 = vunpack.c.l.bf16 %v50
    %v84 = vunpack.c.l.bf16 %v51
    %v85 = vunpack.c.l.bf16 %v53
    %v86 = vunpack.c.l.bf16 %v54
    %v87 = vunpack.c.l.bf16 %v55
    %v88 = vunpack.c.l.bf16 %v56
    %v89 = vunpack.c.l.bf16 %v57
    %v90 = vunpack.c.l.bf16 %v58
    %v91 = vunpack.c.l.bf16 %v59
    %v92 = vunpack.c.l.bf16 %v60
    %v93 = vunpack.c.l.bf16 %v61
    %v94 = vunpack.c.l.bf16 %v62
    %v95 = vunpack.c.l.bf16 %v63
    %v96 = vunpack.c.l.bf16 %v64
    %v97 = vunpack.c.l.bf16 %v65
    %v98 = vunpack.c.l.bf16 %v66
    %v99 = vunpack.c.l.bf16 %v67
    %v100 = vunpack.c.l.bf16 %v68
    %v101 = vmax.f32 %v69, %v85
    %v102 = vmax.f32 %v70, %v86
    %v103 = vmax.f32 %v71, %v87
    %v104 = vmax.f32 %v72, %v88
    %v105 = vmax.f32 %v73, %v89
    %v106 = vmax.f32 %v74, %v90
    %v107 = vmax.f32 %v75, %v91
    %v108 = vmax.f32 %v76, %v92
    %v109 = vmax.f32 %v77, %v93
    %v110 = vmax.f32 %v78, %v94
    %v111 = vmax.f32 %v79, %v95
    %v112 = vmax.f32 %v80, %v96
    %v113 = vmax.f32 %v81, %v97
    %v114 = vmax.f32 %v82, %v98
    %v115 = vmax.f32 %v83, %v99
    %v116 = vmax.f32 %v84, %v100
    %v117 = vpack.c.bf16 %v101, %v101
    %v118 = vpack.c.bf16 %v102, %v102
    %v119 = vpack.c.bf16 %v103, %v103
    %v120 = vpack.c.bf16 %v104, %v104
    %v121 = vpack.c.bf16 %v105, %v105
    %v122 = vpack.c.bf16 %v106, %v106
    %v123 = vpack.c.bf16 %v107, %v107
    %v124 = vpack.c.bf16 %v108, %v108
    %v125 = vpack.c.bf16 %v109, %v109
    %v126 = vpack.c.bf16 %v110, %v110
    %v127 = vpack.c.bf16 %v111, %v111
    %v128 = vpack.c.bf16 %v112, %v112
    %v129 = vpack.c.bf16 %v113, %v113
    %v130 = vpack.c.bf16 %v114, %v114
    %v131 = vpack.c.bf16 %v115, %v115
    %v132 = vpack.c.bf16 %v116, %v116
    %s133 = scalar_lea.vmem %s0, 128
    %v134 = vld [vmem:[%s133] sm:$0xf]
    %v135 = vld [vmem:[%s133 + $0x4] sm:$0xf]
    %v136 = vld [vmem:[%s133 + $0x8] sm:$0xf]
    %v137 = vld [vmem:[%s133 + $0xc] sm:$0xf]
    %v138 = vld [vmem:[%s133 + $0x10] sm:$0xf]
    %v139 = vld [vmem:[%s133 + $0x14] sm:$0xf]
    %v140 = vld [vmem:[%s133 + $0x18] sm:$0xf]
    %v141 = vld [vmem:[%s133 + $0x1c] sm:$0xf]
    %v142 = vld [vmem:[%s133 + $0x20] sm:$0xf]
    %v143 = vld [vmem:[%s133 + $0x24] sm:$0xf]
    %v144 = vld [vmem:[%s133 + $0x28] sm:$0xf]
    %v145 = vld [vmem:[%s133 + $0x2c] sm:$0xf]
    %v146 = vld [vmem:[%s133 + $0x30] sm:$0xf]
    %v147 = vld [vmem:[%s133 + $0x34] sm:$0xf]
    %v148 = vld [vmem:[%s133 + $0x38] sm:$0xf]
    %v149 = vld [vmem:[%s133 + $0x3c] sm:$0xf]
    %s150 = scalar_lea.vmem %s0, 192
    %v151 = vld [vmem:[%s150] sm:$0xf]
    %v152 = vld [vmem:[%s150 + $0x4] sm:$0xf]
    %v153 = vld [vmem:[%s150 + $0x8] sm:$0xf]
    %v154 = vld [vmem:[%s150 + $0xc] sm:$0xf]
    %v155 = vld [vmem:[%s150 + $0x10] sm:$0xf]
    %v156 = vld [vmem:[%s150 + $0x14] sm:$0xf]
    %v157 = vld [vmem:[%s150 + $0x18] sm:$0xf]
    %v158 = vld [vmem:[%s150 + $0x1c] sm:$0xf]
    %v159 = vld [vmem:[%s150 + $0x20] sm:$0xf]
    %v160 = vld [vmem:[%s150 + $0x24] sm:$0xf]
    %v161 = vld [vmem:[%s150 + $0x28] sm:$0xf]
    %v162 = vld [vmem:[%s150 + $0x2c] sm:$0xf]
    %v163 = vld [vmem:[%s150 + $0x30] sm:$0xf]
    %v164 = vld [vmem:[%s150 + $0x34] sm:$0xf]
    %v165 = vld [vmem:[%s150 + $0x38] sm:$0xf]
    %v166 = vld [vmem:[%s150 + $0x3c] sm:$0xf]
    %v167 = vunpack.c.l.bf16 %v134
    %v168 = vunpack.c.l.bf16 %v135
    %v169 = vunpack.c.l.bf16 %v136
    %v170 = vunpack.c.l.bf16 %v137
    %v171 = vunpack.c.l.bf16 %v138
    %v172 = vunpack.c.l.bf16 %v139
    %v173 = vunpack.c.l.bf16 %v140
    %v174 = vunpack.c.l.bf16 %v141
    %v175 = vunpack.c.l.bf16 %v142
    %v176 = vunpack.c.l.bf16 %v143
    %v177 = vunpack.c.l.bf16 %v144
    %v178 = vunpack.c.l.bf16 %v145
    %v179 = vunpack.c.l.bf16 %v146
    %v180 = vunpack.c.l.bf16 %v147
    %v181 = vunpack.c.l.bf16 %v148
    %v182 = vunpack.c.l.bf16 %v149
    %v183 = vunpack.c.l.bf16 %v151
    %v184 = vunpack.c.l.bf16 %v152
    %v185 = vunpack.c.l.bf16 %v153
    %v186 = vunpack.c.l.bf16 %v154
    %v187 = vunpack.c.l.bf16 %v155
    %v188 = vunpack.c.l.bf16 %v156
    %v189 = vunpack.c.l.bf16 %v157
    %v190 = vunpack.c.l.bf16 %v158
    %v191 = vunpack.c.l.bf16 %v159
    %v192 = vunpack.c.l.bf16 %v160
    %v193 = vunpack.c.l.bf16 %v161
    %v194 = vunpack.c.l.bf16 %v162
    %v195 = vunpack.c.l.bf16 %v163
    %v196 = vunpack.c.l.bf16 %v164
    %v197 = vunpack.c.l.bf16 %v165
    %v198 = vunpack.c.l.bf16 %v166
    %v199 = vmax.f32 %v167, %v183
    %v200 = vmax.f32 %v168, %v184
    %v201 = vmax.f32 %v169, %v185
    %v202 = vmax.f32 %v170, %v186
    %v203 = vmax.f32 %v171, %v187
    %v204 = vmax.f32 %v172, %v188
    %v205 = vmax.f32 %v173, %v189
    %v206 = vmax.f32 %v174, %v190
    %v207 = vmax.f32 %v175, %v191
    %v208 = vmax.f32 %v176, %v192
    %v209 = vmax.f32 %v177, %v193
    %v210 = vmax.f32 %v178, %v194
    %v211 = vmax.f32 %v179, %v195
    %v212 = vmax.f32 %v180, %v196
    %v213 = vmax.f32 %v181, %v197
    %v214 = vmax.f32 %v182, %v198
    %v215 = vpack.c.bf16 %v199, %v199
    %v216 = vpack.c.bf16 %v200, %v200
    %v217 = vpack.c.bf16 %v201, %v201
    %v218 = vpack.c.bf16 %v202, %v202
    %v219 = vpack.c.bf16 %v203, %v203
    %v220 = vpack.c.bf16 %v204, %v204
    %v221 = vpack.c.bf16 %v205, %v205
    %v222 = vpack.c.bf16 %v206, %v206
    %v223 = vpack.c.bf16 %v207, %v207
    %v224 = vpack.c.bf16 %v208, %v208
    %v225 = vpack.c.bf16 %v209, %v209
    %v226 = vpack.c.bf16 %v210, %v210
    %v227 = vpack.c.bf16 %v211, %v211
    %v228 = vpack.c.bf16 %v212, %v212
    %v229 = vpack.c.bf16 %v213, %v213
    %v230 = vpack.c.bf16 %v214, %v214
    %v231 = vunpack.c.l.bf16 %v117
    %v232 = vunpack.c.l.bf16 %v118
    %v233 = vunpack.c.l.bf16 %v119
    %v234 = vunpack.c.l.bf16 %v120
    %v235 = vunpack.c.l.bf16 %v121
    %v236 = vunpack.c.l.bf16 %v122
    %v237 = vunpack.c.l.bf16 %v123
    %v238 = vunpack.c.l.bf16 %v124
    %v239 = vunpack.c.l.bf16 %v125
    %v240 = vunpack.c.l.bf16 %v126
    %v241 = vunpack.c.l.bf16 %v127
    %v242 = vunpack.c.l.bf16 %v128
    %v243 = vunpack.c.l.bf16 %v129
    %v244 = vunpack.c.l.bf16 %v130
    %v245 = vunpack.c.l.bf16 %v131
    %v246 = vunpack.c.l.bf16 %v132
    %v247 = vunpack.c.l.bf16 %v215
    %v248 = vunpack.c.l.bf16 %v216
    %v249 = vunpack.c.l.bf16 %v217
    %v250 = vunpack.c.l.bf16 %v218
    %v251 = vunpack.c.l.bf16 %v219
    %v252 = vunpack.c.l.bf16 %v220
    %v253 = vunpack.c.l.bf16 %v221
    %v254 = vunpack.c.l.bf16 %v222
    %v255 = vunpack.c.l.bf16 %v223
    %v256 = vunpack.c.l.bf16 %v224
    %v257 = vunpack.c.l.bf16 %v225
    %v258 = vunpack.c.l.bf16 %v226
    %v259 = vunpack.c.l.bf16 %v227
    %v260 = vunpack.c.l.bf16 %v228
    %v261 = vunpack.c.l.bf16 %v229
    %v262 = vunpack.c.l.bf16 %v230
    %v263 = vmax.f32 %v231, %v247
    %v264 = vmax.f32 %v232, %v248
    %v265 = vmax.f32 %v233, %v249
    %v266 = vmax.f32 %v234, %v250
    %v267 = vmax.f32 %v235, %v251
    %v268 = vmax.f32 %v236, %v252
    %v269 = vmax.f32 %v237, %v253
    %v270 = vmax.f32 %v238, %v254
    %v271 = vmax.f32 %v239, %v255
    %v272 = vmax.f32 %v240, %v256
    %v273 = vmax.f32 %v241, %v257
    %v274 = vmax.f32 %v242, %v258
    %v275 = vmax.f32 %v243, %v259
    %v276 = vmax.f32 %v244, %v260
    %v277 = vmax.f32 %v245, %v261
    %v278 = vmax.f32 %v246, %v262
    %v279 = vpack.c.bf16 %v263, %v263
    %v280 = vpack.c.bf16 %v264, %v264
    %v281 = vpack.c.bf16 %v265, %v265
    %v282 = vpack.c.bf16 %v266, %v266
    %v283 = vpack.c.bf16 %v267, %v267
    %v284 = vpack.c.bf16 %v268, %v268
    %v285 = vpack.c.bf16 %v269, %v269
    %v286 = vpack.c.bf16 %v270, %v270
    %v287 = vpack.c.bf16 %v271, %v271
    %v288 = vpack.c.bf16 %v272, %v272
    %v289 = vpack.c.bf16 %v273, %v273
    %v290 = vpack.c.bf16 %v274, %v274
    %v291 = vpack.c.bf16 %v275, %v275
    %v292 = vpack.c.bf16 %v276, %v276
    %v293 = vpack.c.bf16 %v277, %v277
    %v294 = vpack.c.bf16 %v278, %v278
    %295 = vst [vmem:[#allocation2] sm:$0xf] 0
    %296 = vst [vmem:[#allocation2 + $0x4] sm:$0xf] 0
    %297 = vst [vmem:[#allocation2 + $0x8] sm:$0xf] 0
    %298 = vst [vmem:[#allocation2 + $0xc] sm:$0xf] 0
    %299 = vst [vmem:[#allocation2 + $0x10] sm:$0xf] 0
    %300 = vst [vmem:[#allocation2 + $0x14] sm:$0xf] 0
    %301 = vst [vmem:[#allocation2 + $0x18] sm:$0xf] 0
    %302 = vst [vmem:[#allocation2 + $0x1c] sm:$0xf] 0
    %303 = vst [vmem:[#allocation2 + $0x20] sm:$0xf] 0
    %304 = vst [vmem:[#allocation2 + $0x24] sm:$0xf] 0
    %305 = vst [vmem:[#allocation2 + $0x28] sm:$0xf] 0
    %306 = vst [vmem:[#allocation2 + $0x2c] sm:$0xf] 0
    %307 = vst [vmem:[#allocation2 + $0x30] sm:$0xf] 0
    %308 = vst [vmem:[#allocation2 + $0x34] sm:$0xf] 0
    %309 = vst [vmem:[#allocation2 + $0x38] sm:$0xf] 0
    %310 = vst [vmem:[#allocation2 + $0x3c] sm:$0xf] 0
    %311 = vst [vmem:[#allocation2 + $0x40] sm:$0xf] 0
    %312 = vst [vmem:[#allocation2 + $0x44] sm:$0xf] 0
    %313 = vst [vmem:[#allocation2 + $0x48] sm:$0xf] 0
    %314 = vst [vmem:[#allocation2 + $0x4c] sm:$0xf] 0
    %s315 = scalar_lea.vmem [#allocation2], 4
    %vm316 = vcmask 27648
    %317 = vst.msk [vmem:[%s315] sm:$0xf] %vm316, %v279
    %318 = vst.msk [vmem:[%s315 + $0x4] sm:$0xf] %vm316, %v280
    %319 = vst.msk [vmem:[%s315 + $0x8] sm:$0xf] %vm316, %v281
    %320 = vst.msk [vmem:[%s315 + $0xc] sm:$0xf] %vm316, %v282
    %321 = vst.msk [vmem:[%s315 + $0x10] sm:$0xf] %vm316, %v283
    %322 = vst.msk [vmem:[%s315 + $0x14] sm:$0xf] %vm316, %v284
    %323 = vst.msk [vmem:[%s315 + $0x18] sm:$0xf] %vm316, %v285
    %324 = vst.msk [vmem:[%s315 + $0x1c] sm:$0xf] %vm316, %v286
    %325 = vst.msk [vmem:[%s315 + $0x28] sm:$0xf] %vm316, %v287
    %326 = vst.msk [vmem:[%s315 + $0x2c] sm:$0xf] %vm316, %v288
    %327 = vst.msk [vmem:[%s315 + $0x30] sm:$0xf] %vm316, %v289
    %328 = vst.msk [vmem:[%s315 + $0x34] sm:$0xf] %vm316, %v290
    %329 = vst.msk [vmem:[%s315 + $0x38] sm:$0xf] %vm316, %v291
    %330 = vst.msk [vmem:[%s315 + $0x3c] sm:$0xf] %vm316, %v292
    %331 = vst.msk [vmem:[%s315 + $0x40] sm:$0xf] %vm316, %v293
    %332 = vst.msk [vmem:[%s315 + $0x44] sm:$0xf] %vm316, %v294
    %v333 = vlaneseq
    %v334 = vshrl.u32 %v333, 7
    %v335 = vadd.s32 %v334, 8
    %v336 = vadd.s32 %v334, 16
    %v337 = vadd.s32 %v334, 24
    %v338 = vadd.s32 %v334, 32
    %v339 = vadd.s32 %v334, 40
    %v340 = vadd.s32 %v334, 48
    %v341 = vadd.s32 %v334, 56
    %v342 = vadd.s32 %v334, 64
    %v343 = vadd.s32 %v334, 72
    %v344 = vadd.s32 %v334, 80
    %v345 = vadd.s32 %v334, 88
    %v346 = vadd.s32 %v334, 96
    %v347 = vadd.s32 %v334, 104
    %v348 = vadd.s32 %v334, 112
    %v349 = vadd.s32 %v334, 120
    %v350 = vadd.s32 %v334, 128
    %v351 = vadd.s32 %v334, 136
    %v352 = vadd.s32 %v334, 144
    %v353 = vadd.s32 %v334, 152
    %vm354 = vcmp.lt.s32.totalorder %v334, 0
    %v355 = vsub.s32 0, %v334
    %v356 = vsel %vm354, %v355, %v334
    %v357 = vshrl.u32 %v356, 3
    %v358 = vand.u32 %v356, 7
    %v359 = vsub.s32 0, %v358
    %v360 = vsel %vm354, %v359, %v358
    %vm361 = vcmp.lt.s32.totalorder %v335, 0
    %v362 = vsub.s32 0, %v335
    %v363 = vsel %vm361, %v362, %v335
    %v364 = vshrl.u32 %v363, 3
    %v365 = vand.u32 %v363, 7
    %v366 = vsub.s32 0, %v365
    %v367 = vsel %vm361, %v366, %v365
    %vm368 = vcmp.lt.s32.totalorder %v336, 0
    %v369 = vsub.s32 0, %v336
    %v370 = vsel %vm368, %v369, %v336
    %v371 = vshrl.u32 %v370, 3
    %v372 = vand.u32 %v370, 7
    %v373 = vsub.s32 0, %v372
    %v374 = vsel %vm368, %v373, %v372
    %vm375 = vcmp.lt.s32.totalorder %v337, 0
    %v376 = vsub.s32 0, %v337
    %v377 = vsel %vm375, %v376, %v337
    %v378 = vshrl.u32 %v377, 3
    %v379 = vand.u32 %v377, 7
    %v380 = vsub.s32 0, %v379
    %v381 = vsel %vm375, %v380, %v379
    %vm382 = vcmp.lt.s32.totalorder %v338, 0
    %v383 = vsub.s32 0, %v338
    %v384 = vsel %vm382, %v383, %v338
    %v385 = vshrl.u32 %v384, 3
    %v386 = vand.u32 %v384, 7
    %v387 = vsub.s32 0, %v386
    %v388 = vsel %vm382, %v387, %v386
    %vm389 = vcmp.lt.s32.totalorder %v339, 0
    %v390 = vsub.s32 0, %v339
    %v391 = vsel %vm389, %v390, %v339
    %v392 = vshrl.u32 %v391, 3
    %v393 = vand.u32 %v391, 7
    %v394 = vsub.s32 0, %v393
    %v395 = vsel %vm389, %v394, %v393
    %vm396 = vcmp.lt.s32.totalorder %v340, 0
    %v397 = vsub.s32 0, %v340
    %v398 = vsel %vm396, %v397, %v340
    %v399 = vshrl.u32 %v398, 3
    %v400 = vand.u32 %v398, 7
    %v401 = vsub.s32 0, %v400
    %v402 = vsel %vm396, %v401, %v400
    %vm403 = vcmp.lt.s32.totalorder %v341, 0
    %v404 = vsub.s32 0, %v341
    %v405 = vsel %vm403, %v404, %v341
    %v406 = vshrl.u32 %v405, 3
    %v407 = vand.u32 %v405, 7
    %v408 = vsub.s32 0, %v407
    %v409 = vsel %vm403, %v408, %v407
    %vm410 = vcmp.lt.s32.totalorder %v342, 0
    %v411 = vsub.s32 0, %v342
    %v412 = vsel %vm410, %v411, %v342
    %v413 = vshrl.u32 %v412, 3
    %v414 = vand.u32 %v412, 7
    %v415 = vsub.s32 0, %v414
    %v416 = vsel %vm410, %v415, %v414
    %vm417 = vcmp.lt.s32.totalorder %v343, 0
    %v418 = vsub.s32 0, %v343
    %v419 = vsel %vm417, %v418, %v343
    %v420 = vshrl.u32 %v419, 3
    %v421 = vand.u32 %v419, 7
    %v422 = vsub.s32 0, %v421
    %v423 = vsel %vm417, %v422, %v421
    %vm424 = vcmp.lt.s32.totalorder %v344, 0
    %v425 = vsub.s32 0, %v344
    %v426 = vsel %vm424, %v425, %v344
    %v427 = vshrl.u32 %v426, 3
    %v428 = vand.u32 %v426, 7
    %v429 = vsub.s32 0, %v428
    %v430 = vsel %vm424, %v429, %v428
    %vm431 = vcmp.lt.s32.totalorder %v345, 0
    %v432 = vsub.s32 0, %v345
    %v433 = vsel %vm431, %v432, %v345
    %v434 = vshrl.u32 %v433, 3
    %v435 = vand.u32 %v433, 7
    %v436 = vsub.s32 0, %v435
    %v437 = vsel %vm431, %v436, %v435
    %vm438 = vcmp.lt.s32.totalorder %v346, 0
    %v439 = vsub.s32 0, %v346
    %v440 = vsel %vm438, %v439, %v346
    %v441 = vshrl.u32 %v440, 3
    %v442 = vand.u32 %v440, 7
    %v443 = vsub.s32 0, %v442
    %v444 = vsel %vm438, %v443, %v442
    %vm445 = vcmp.lt.s32.totalorder %v347, 0
    %v446 = vsub.s32 0, %v347
    %v447 = vsel %vm445, %v446, %v347
    %v448 = vshrl.u32 %v447, 3
    %v449 = vand.u32 %v447, 7
    %v450 = vsub.s32 0, %v449
    %v451 = vsel %vm445, %v450, %v449
    %vm452 = vcmp.lt.s32.totalorder %v348, 0
    %v453 = vsub.s32 0, %v348
    %v454 = vsel %vm452, %v453, %v348
    %v455 = vshrl.u32 %v454, 3
    %v456 = vand.u32 %v454, 7
    %v457 = vsub.s32 0, %v456
    %v458 = vsel %vm452, %v457, %v456
    %vm459 = vcmp.lt.s32.totalorder %v349, 0
    %v460 = vsub.s32 0, %v349
    %v461 = vsel %vm459, %v460, %v349
    %v462 = vshrl.u32 %v461, 3
    %v463 = vand.u32 %v461, 7
    %v464 = vsub.s32 0, %v463
    %v465 = vsel %vm459, %v464, %v463
    %vm466 = vcmp.lt.s32.totalorder %v350, 0
    %v467 = vsub.s32 0, %v350
    %v468 = vsel %vm466, %v467, %v350
    %v469 = vshrl.u32 %v468, 3
    %v470 = vand.u32 %v468, 7
    %v471 = vsub.s32 0, %v470
    %v472 = vsel %vm466, %v471, %v470
    %vm473 = vcmp.lt.s32.totalorder %v351, 0
    %v474 = vsub.s32 0, %v351
    %v475 = vsel %vm473, %v474, %v351
    %v476 = vshrl.u32 %v475, 3
    %v477 = vand.u32 %v475, 7
    %v478 = vsub.s32 0, %v477
    %v479 = vsel %vm473, %v478, %v477
    %vm480 = vcmp.lt.s32.totalorder %v352, 0
    %v481 = vsub.s32 0, %v352
    %v482 = vsel %vm480, %v481, %v352
    %v483 = vshrl.u32 %v482, 3
    %v484 = vand.u32 %v482, 7
    %v485 = vsub.s32 0, %v484
    %v486 = vsel %vm480, %v485, %v484
    %vm487 = vcmp.lt.s32.totalorder %v353, 0
    %v488 = vsub.s32 0, %v353
    %v489 = vsel %vm487, %v488, %v353
    %v490 = vshrl.u32 %v489, 3
    %v491 = vand.u32 %v489, 7
    %v492 = vsub.s32 0, %v491
    %v493 = vsel %vm487, %v492, %v491
    %vm494 = vcmp.ne.s32.totalorder %v360, 0
    %vm495 = vcmp.ne.s32.totalorder %v367, 0
    %vm496 = vcmp.ne.s32.totalorder %v374, 0
    %vm497 = vcmp.ne.s32.totalorder %v381, 0
    %vm498 = vcmp.ne.s32.totalorder %v388, 0
    %vm499 = vcmp.ne.s32.totalorder %v395, 0
    %vm500 = vcmp.ne.s32.totalorder %v402, 0
    %vm501 = vcmp.ne.s32.totalorder %v409, 0
    %vm502 = vcmp.ne.s32.totalorder %v416, 0
    %vm503 = vcmp.ne.s32.totalorder %v423, 0
    %vm504 = vcmp.ne.s32.totalorder %v430, 0
    %vm505 = vcmp.ne.s32.totalorder %v437, 0
    %vm506 = vcmp.ne.s32.totalorder %v444, 0
    %vm507 = vcmp.ne.s32.totalorder %v451, 0
    %vm508 = vcmp.ne.s32.totalorder %v458, 0
    %vm509 = vcmp.ne.s32.totalorder %v465, 0
    %vm510 = vcmp.ne.s32.totalorder %v472, 0
    %vm511 = vcmp.ne.s32.totalorder %v479, 0
    %vm512 = vcmp.ne.s32.totalorder %v486, 0
    %vm513 = vcmp.ne.s32.totalorder %v493, 0
    %vm514 = vcmp.lt.s32.totalorder %v360, 0
    %vm515 = vcmp.lt.s32.totalorder %v367, 0
    %vm516 = vcmp.lt.s32.totalorder %v374, 0
    %vm517 = vcmp.lt.s32.totalorder %v381, 0
    %vm518 = vcmp.lt.s32.totalorder %v388, 0
    %vm519 = vcmp.lt.s32.totalorder %v395, 0
    %vm520 = vcmp.lt.s32.totalorder %v402, 0
    %vm521 = vcmp.lt.s32.totalorder %v409, 0
    %vm522 = vcmp.lt.s32.totalorder %v416, 0
    %vm523 = vcmp.lt.s32.totalorder %v423, 0
    %vm524 = vcmp.lt.s32.totalorder %v430, 0
    %vm525 = vcmp.lt.s32.totalorder %v437, 0
    %vm526 = vcmp.lt.s32.totalorder %v444, 0
    %vm527 = vcmp.lt.s32.totalorder %v451, 0
    %vm528 = vcmp.lt.s32.totalorder %v458, 0
    %vm529 = vcmp.lt.s32.totalorder %v465, 0
    %vm530 = vcmp.lt.s32.totalorder %v472, 0
    %vm531 = vcmp.lt.s32.totalorder %v479, 0
    %vm532 = vcmp.lt.s32.totalorder %v486, 0
    %vm533 = vcmp.lt.s32.totalorder %v493, 0
    %vm534 = vmand %vm514, %vm494
    %vm535 = vmand %vm515, %vm495
    %vm536 = vmand %vm516, %vm496
    %vm537 = vmand %vm517, %vm497
    %vm538 = vmand %vm518, %vm498
    %vm539 = vmand %vm519, %vm499
    %vm540 = vmand %vm520, %vm500
    %vm541 = vmand %vm521, %vm501
    %vm542 = vmand %vm522, %vm502
    %vm543 = vmand %vm523, %vm503
    %vm544 = vmand %vm524, %vm504
    %vm545 = vmand %vm525, %vm505
    %vm546 = vmand %vm526, %vm506
    %vm547 = vmand %vm527, %vm507
    %vm548 = vmand %vm528, %vm508
    %vm549 = vmand %vm529, %vm509
    %vm550 = vmand %vm530, %vm510
    %vm551 = vmand %vm531, %vm511
    %vm552 = vmand %vm532, %vm512
    %vm553 = vmand %vm533, %vm513
    %v554 = vadd.s32 %v360, 8
    %v555 = vadd.s32 %v367, 8
    %v556 = vadd.s32 %v374, 8
    %v557 = vadd.s32 %v381, 8
    %v558 = vadd.s32 %v388, 8
    %v559 = vadd.s32 %v395, 8
    %v560 = vadd.s32 %v402, 8
    %v561 = vadd.s32 %v409, 8
    %v562 = vadd.s32 %v416, 8
    %v563 = vadd.s32 %v423, 8
    %v564 = vadd.s32 %v430, 8
    %v565 = vadd.s32 %v437, 8
    %v566 = vadd.s32 %v444, 8
    %v567 = vadd.s32 %v451, 8
    %v568 = vadd.s32 %v458, 8
    %v569 = vadd.s32 %v465, 8
    %v570 = vadd.s32 %v472, 8
    %v571 = vadd.s32 %v479, 8
    %v572 = vadd.s32 %v486, 8
    %v573 = vadd.s32 %v493, 8
    %v574 = vsel %vm534, %v554, %v360
    %v575 = vsel %vm535, %v555, %v367
    %v576 = vsel %vm536, %v556, %v374
    %v577 = vsel %vm537, %v557, %v381
    %v578 = vsel %vm538, %v558, %v388
    %v579 = vsel %vm539, %v559, %v395
    %v580 = vsel %vm540, %v560, %v402
    %v581 = vsel %vm541, %v561, %v409
    %v582 = vsel %vm542, %v562, %v416
    %v583 = vsel %vm543, %v563, %v423
    %v584 = vsel %vm544, %v564, %v430
    %v585 = vsel %vm545, %v565, %v437
    %v586 = vsel %vm546, %v566, %v444
    %v587 = vsel %vm547, %v567, %v451
    %v588 = vsel %vm548, %v568, %v458
    %v589 = vsel %vm549, %v569, %v465
    %v590 = vsel %vm550, %v570, %v472
    %v591 = vsel %vm551, %v571, %v479
    %v592 = vsel %vm552, %v572, %v486
    %v593 = vsel %vm553, %v573, %v493
    %vm594 = vcmp.ne.s32.totalorder %v574, 0
    %vm595 = vcmp.ne.s32.totalorder %v575, 0
    %vm596 = vcmp.ne.s32.totalorder %v576, 0
    %vm597 = vcmp.ne.s32.totalorder %v577, 0
    %vm598 = vcmp.ne.s32.totalorder %v578, 0
    %vm599 = vcmp.ne.s32.totalorder %v579, 0
    %vm600 = vcmp.ne.s32.totalorder %v580, 0
    %vm601 = vcmp.ne.s32.totalorder %v581, 0
    %vm602 = vcmp.ne.s32.totalorder %v582, 0
    %vm603 = vcmp.ne.s32.totalorder %v583, 0
    %vm604 = vcmp.ne.s32.totalorder %v584, 0
    %vm605 = vcmp.ne.s32.totalorder %v585, 0
    %vm606 = vcmp.ne.s32.totalorder %v586, 0
    %vm607 = vcmp.ne.s32.totalorder %v587, 0
    %vm608 = vcmp.ne.s32.totalorder %v588, 0
    %vm609 = vcmp.ne.s32.totalorder %v589, 0
    %vm610 = vcmp.ne.s32.totalorder %v590, 0
    %vm611 = vcmp.ne.s32.totalorder %v591, 0
    %vm612 = vcmp.ne.s32.totalorder %v592, 0
    %vm613 = vcmp.ne.s32.totalorder %v593, 0
    %vm614 = vcmp.ne.s32.totalorder %v574, 7
    %vm615 = vcmp.ne.s32.totalorder %v575, 7
    %vm616 = vcmp.ne.s32.totalorder %v576, 7
    %vm617 = vcmp.ne.s32.totalorder %v577, 7
    %vm618 = vcmp.ne.s32.totalorder %v578, 7
    %vm619 = vcmp.ne.s32.totalorder %v579, 7
    %vm620 = vcmp.ne.s32.totalorder %v580, 7
    %vm621 = vcmp.ne.s32.totalorder %v581, 7
    %vm622 = vcmp.ne.s32.totalorder %v582, 7
    %vm623 = vcmp.ne.s32.totalorder %v583, 7
    %vm624 = vcmp.ne.s32.totalorder %v584, 7
    %vm625 = vcmp.ne.s32.totalorder %v585, 7
    %vm626 = vcmp.ne.s32.totalorder %v586, 7
    %vm627 = vcmp.ne.s32.totalorder %v587, 7
    %vm628 = vcmp.ne.s32.totalorder %v588, 7
    %vm629 = vcmp.ne.s32.totalorder %v589, 7
    %vm630 = vcmp.ne.s32.totalorder %v590, 7
    %vm631 = vcmp.ne.s32.totalorder %v591, 7
    %vm632 = vcmp.ne.s32.totalorder %v592, 7
    %vm633 = vcmp.ne.s32.totalorder %v593, 7
    %v634 = vld [vmem:[#allocation2] sm:$0xf]
    %v635 = vld [vmem:[#allocation2 + $0x4] sm:$0xf]
    %v636 = vld [vmem:[#allocation2 + $0x8] sm:$0xf]
    %v637 = vld [vmem:[#allocation2 + $0xc] sm:$0xf]
    %v638 = vld [vmem:[#allocation2 + $0x10] sm:$0xf]
    %v639 = vld [vmem:[#allocation2 + $0x14] sm:$0xf]
    %v640 = vld [vmem:[#allocation2 + $0x18] sm:$0xf]
    %v641 = vld [vmem:[#allocation2 + $0x1c] sm:$0xf]
    %v642 = vld [vmem:[#allocation2 + $0x20] sm:$0xf]
    %v643 = vld [vmem:[#allocation2 + $0x24] sm:$0xf]
    %v644 = vld [vmem:[#allocation2 + $0x28] sm:$0xf]
    %v645 = vld [vmem:[#allocation2 + $0x2c] sm:$0xf]
    %v646 = vld [vmem:[#allocation2 + $0x30] sm:$0xf]
    %v647 = vld [vmem:[#allocation2 + $0x34] sm:$0xf]
    %v648 = vld [vmem:[#allocation2 + $0x38] sm:$0xf]
    %v649 = vld [vmem:[#allocation2 + $0x3c] sm:$0xf]
    %v650 = vld [vmem:[#allocation2 + $0x40] sm:$0xf]
    %v651 = vld [vmem:[#allocation2 + $0x44] sm:$0xf]
    %v652 = vld [vmem:[#allocation2 + $0x48] sm:$0xf]
    %v653 = vld [vmem:[#allocation2 + $0x4c] sm:$0xf]
    %v674 = vunpack.c.l.b16 %v634
    %v675 = vunpack.c.l.b16 %v635
    %v676 = vunpack.c.l.b16 %v636
    %v677 = vunpack.c.l.b16 %v637
    %v678 = vunpack.c.l.b16 %v638
    %v679 = vunpack.c.l.b16 %v639
    %v680 = vunpack.c.l.b16 %v640
    %v681 = vunpack.c.l.b16 %v641
    %v682 = vunpack.c.l.b16 %v642
    %v683 = vunpack.c.l.b16 %v643
    %v684 = vunpack.c.l.b16 %v644
    %v685 = vunpack.c.l.b16 %v645
    %v686 = vunpack.c.l.b16 %v646
    %v687 = vunpack.c.l.b16 %v647
    %v688 = vunpack.c.l.b16 %v648
    %v689 = vunpack.c.l.b16 %v649
    %v690 = vunpack.c.l.b16 %v650
    %v691 = vunpack.c.l.b16 %v651
    %v692 = vunpack.c.l.b16 %v652
    %v693 = vunpack.c.l.b16 %v653
    %v694 = vpack.c.b16 %v675, %v674
    %v695 = vpack.c.b16 %v677, %v676
    %v696 = vpack.c.b16 %v679, %v678
    %v697 = vpack.c.b16 %v681, %v680
    %v698 = vpack.c.b16 %v683, %v682
    %v699 = vpack.c.b16 %v685, %v684
    %v700 = vpack.c.b16 %v687, %v686
    %v701 = vpack.c.b16 %v689, %v688
    %v702 = vpack.c.b16 %v691, %v690
    %v703 = vpack.c.b16 %v693, %v692
    %vm704 = vsmask.f32 256
    %v706 = vshrl.u32 %v694, 16
    %v708 = vrot.slane %v706, 7
    %v709 = vshll.u32 %v694, 16
    %v711 = vor.u32 %v708, %v709
    %v713 = vshrl.u32 %v695, 16
    %v715 = vrot.slane %v713, 7
    %v716 = vshll.u32 %v695, 16
    %v718 = vor.u32 %v715, %v716
    %v719 = vsel %vm704, %v708, %v718
    %v721 = vshrl.u32 %v696, 16
    %v723 = vrot.slane %v721, 7
    %v724 = vshll.u32 %v696, 16
    %v726 = vor.u32 %v723, %v724
    %v727 = vsel %vm704, %v715, %v726
    %v729 = vshrl.u32 %v697, 16
    %v731 = vrot.slane %v729, 7
    %v732 = vshll.u32 %v697, 16
    %v734 = vor.u32 %v731, %v732
    %v735 = vsel %vm704, %v723, %v734
    %v737 = vshrl.u32 %v698, 16
    %v739 = vrot.slane %v737, 7
    %v740 = vshll.u32 %v698, 16
    %v742 = vor.u32 %v739, %v740
    %v743 = vsel %vm704, %v731, %v742
    %v745 = vshrl.u32 %v699, 16
    %v747 = vrot.slane %v745, 7
    %v748 = vshll.u32 %v699, 16
    %v750 = vor.u32 %v747, %v748
    %v751 = vsel %vm704, %v739, %v750
    %v753 = vshrl.u32 %v700, 16
    %v755 = vrot.slane %v753, 7
    %v756 = vshll.u32 %v700, 16
    %v758 = vor.u32 %v755, %v756
    %v759 = vsel %vm704, %v747, %v758
    %v761 = vshrl.u32 %v701, 16
    %v763 = vrot.slane %v761, 7
    %v764 = vshll.u32 %v701, 16
    %v766 = vor.u32 %v763, %v764
    %v767 = vsel %vm704, %v755, %v766
    %v769 = vshrl.u32 %v702, 16
    %v771 = vrot.slane %v769, 7
    %v772 = vshll.u32 %v702, 16
    %v774 = vor.u32 %v771, %v772
    %v775 = vsel %vm704, %v763, %v774
    %v777 = vshrl.u32 %v703, 16
    %v779 = vrot.slane %v777, 7
    %v780 = vshll.u32 %v703, 16
    %v782 = vor.u32 %v779, %v780
    %v783 = vsel %vm704, %v771, %v782
    %vm794 = vcmask 1040384
    %vm795 = vmand %vm794, %vm704
    %v796 = vsel %vm795, 0, %v711
    %v797 = vsel %vm594, 1, 0
    %v798 = vsel %vm595, 1, 0
    %v799 = vsel %vm596, 1, 0
    %v800 = vsel %vm597, 1, 0
    %v801 = vsel %vm598, 1, 0
    %v802 = vsel %vm599, 1, 0
    %v803 = vsel %vm600, 1, 0
    %v804 = vsel %vm601, 1, 0
    %v805 = vsel %vm602, 1, 0
    %v806 = vsel %vm603, 1, 0
    %v807 = vsel %vm604, 1, 0
    %v808 = vsel %vm605, 1, 0
    %v809 = vsel %vm606, 1, 0
    %v810 = vsel %vm607, 1, 0
    %v811 = vsel %vm608, 1, 0
    %v812 = vsel %vm609, 1, 0
    %v813 = vsel %vm610, 1, 0
    %v814 = vsel %vm611, 1, 0
    %v815 = vsel %vm612, 1, 0
    %v816 = vsel %vm613, 1, 0
    %vm817 = vcmp.eq.s32.totalorder %v797, 1
    %vm818 = vcmp.eq.s32.totalorder %v798, 1
    %vm819 = vcmp.eq.s32.totalorder %v799, 1
    %vm820 = vcmp.eq.s32.totalorder %v800, 1
    %vm821 = vcmp.eq.s32.totalorder %v801, 1
    %vm822 = vcmp.eq.s32.totalorder %v802, 1
    %vm823 = vcmp.eq.s32.totalorder %v803, 1
    %vm824 = vcmp.eq.s32.totalorder %v804, 1
    %vm825 = vcmp.eq.s32.totalorder %v805, 1
    %vm826 = vcmp.eq.s32.totalorder %v806, 1
    %vm827 = vcmp.eq.s32.totalorder %v807, 1
    %vm828 = vcmp.eq.s32.totalorder %v808, 1
    %vm829 = vcmp.eq.s32.totalorder %v809, 1
    %vm830 = vcmp.eq.s32.totalorder %v810, 1
    %vm831 = vcmp.eq.s32.totalorder %v811, 1
    %vm832 = vcmp.eq.s32.totalorder %v812, 1
    %vm833 = vcmp.eq.s32.totalorder %v813, 1
    %vm834 = vcmp.eq.s32.totalorder %v814, 1
    %vm835 = vcmp.eq.s32.totalorder %v815, 1
    %vm836 = vcmp.eq.s32.totalorder %v816, 1
    %vm837 = vmpackc.low %vm817, %vm817
    %vm838 = vmpackc.low %vm818, %vm818
    %vm839 = vmpackc.low %vm819, %vm819
    %vm840 = vmpackc.low %vm820, %vm820
    %vm841 = vmpackc.low %vm821, %vm821
    %vm842 = vmpackc.low %vm822, %vm822
    %vm843 = vmpackc.low %vm823, %vm823
    %vm844 = vmpackc.low %vm824, %vm824
    %vm845 = vmpackc.low %vm825, %vm825
    %vm846 = vmpackc.low %vm826, %vm826
    %vm847 = vmpackc.low %vm827, %vm827
    %vm848 = vmpackc.low %vm828, %vm828
    %vm849 = vmpackc.low %vm829, %vm829
    %vm850 = vmpackc.low %vm830, %vm830
    %vm851 = vmpackc.low %vm831, %vm831
    %vm852 = vmpackc.low %vm832, %vm832
    %vm853 = vmpackc.low %vm833, %vm833
    %vm854 = vmpackc.low %vm834, %vm834
    %vm855 = vmpackc.low %vm835, %vm835
    %vm856 = vmpackc.low %vm836, %vm836
    %v857 = vsel %vm837, 65537, 0
    %v858 = vsel %vm838, 65537, 0
    %v859 = vsel %vm839, 65537, 0
    %v860 = vsel %vm840, 65537, 0
    %v861 = vsel %vm841, 65537, 0
    %v862 = vsel %vm842, 65537, 0
    %v863 = vsel %vm843, 65537, 0
    %v864 = vsel %vm844, 65537, 0
    %v865 = vsel %vm845, 65537, 0
    %v866 = vsel %vm846, 65537, 0
    %v867 = vsel %vm847, 65537, 0
    %v868 = vsel %vm848, 65537, 0
    %v869 = vsel %vm849, 65537, 0
    %v870 = vsel %vm850, 65537, 0
    %v871 = vsel %vm851, 65537, 0
    %v872 = vsel %vm852, 65537, 0
    %v873 = vsel %vm853, 65537, 0
    %v874 = vsel %vm854, 65537, 0
    %v875 = vsel %vm855, 65537, 0
    %v876 = vsel %vm856, 65537, 0
    %v877 = vunpack.c.l.b16 %v857
    %v878 = vunpack.c.l.b16 %v858
    %v879 = vunpack.c.l.b16 %v859
    %v880 = vunpack.c.l.b16 %v860
    %v881 = vunpack.c.l.b16 %v861
    %v882 = vunpack.c.l.b16 %v862
    %v883 = vunpack.c.l.b16 %v863
    %v884 = vunpack.c.l.b16 %v864
    %v885 = vunpack.c.l.b16 %v865
    %v886 = vunpack.c.l.b16 %v866
    %v887 = vunpack.c.l.b16 %v867
    %v888 = vunpack.c.l.b16 %v868
    %v889 = vunpack.c.l.b16 %v869
    %v890 = vunpack.c.l.b16 %v870
    %v891 = vunpack.c.l.b16 %v871
    %v892 = vunpack.c.l.b16 %v872
    %v893 = vunpack.c.l.b16 %v873
    %v894 = vunpack.c.l.b16 %v874
    %v895 = vunpack.c.l.b16 %v875
    %v896 = vunpack.c.l.b16 %v876
    %v897 = vpack.c.b16 %v878, %v877
    %v898 = vpack.c.b16 %v880, %v879
    %v899 = vpack.c.b16 %v882, %v881
    %v900 = vpack.c.b16 %v884, %v883
    %v901 = vpack.c.b16 %v886, %v885
    %v902 = vpack.c.b16 %v888, %v887
    %v903 = vpack.c.b16 %v890, %v889
    %v904 = vpack.c.b16 %v892, %v891
    %v905 = vpack.c.b16 %v894, %v893
    %v906 = vpack.c.b16 %v896, %v895
    %v907 = vunpack.c.l.b16 %v897
    %v908 = vunpack.c.h.b16 %v897
    %v909 = vunpack.c.l.b16 0
    %v910 = vunpack.c.h.b16 0
    %vm911 = vcmp.ne.s32.totalorder %v907, %v909
    %vm912 = vcmp.ne.s32.totalorder %v908, %v910
    %vm913 = vmpackc.low %vm912, %vm911
    %v914 = vunpack.c.l.b16 %v898
    %v915 = vunpack.c.h.b16 %v898
    %v916 = vunpack.c.l.b16 0
    %v917 = vunpack.c.h.b16 0
    %vm918 = vcmp.ne.s32.totalorder %v914, %v916
    %vm919 = vcmp.ne.s32.totalorder %v915, %v917
    %vm920 = vmpackc.low %vm919, %vm918
    %v921 = vunpack.c.l.b16 %v899
    %v922 = vunpack.c.h.b16 %v899
    %v923 = vunpack.c.l.b16 0
    %v924 = vunpack.c.h.b16 0
    %vm925 = vcmp.ne.s32.totalorder %v921, %v923
    %vm926 = vcmp.ne.s32.totalorder %v922, %v924
    %vm927 = vmpackc.low %vm926, %vm925
    %v928 = vunpack.c.l.b16 %v900
    %v929 = vunpack.c.h.b16 %v900
    %v930 = vunpack.c.l.b16 0
    %v931 = vunpack.c.h.b16 0
    %vm932 = vcmp.ne.s32.totalorder %v928, %v930
    %vm933 = vcmp.ne.s32.totalorder %v929, %v931
    %vm934 = vmpackc.low %vm933, %vm932
    %v935 = vunpack.c.l.b16 %v901
    %v936 = vunpack.c.h.b16 %v901
    %v937 = vunpack.c.l.b16 0
    %v938 = vunpack.c.h.b16 0
    %vm939 = vcmp.ne.s32.totalorder %v935, %v937
    %vm940 = vcmp.ne.s32.totalorder %v936, %v938
    %vm941 = vmpackc.low %vm940, %vm939
    %v942 = vunpack.c.l.b16 %v902
    %v943 = vunpack.c.h.b16 %v902
    %v944 = vunpack.c.l.b16 0
    %v945 = vunpack.c.h.b16 0
    %vm946 = vcmp.ne.s32.totalorder %v942, %v944
    %vm947 = vcmp.ne.s32.totalorder %v943, %v945
    %vm948 = vmpackc.low %vm947, %vm946
    %v949 = vunpack.c.l.b16 %v903
    %v950 = vunpack.c.h.b16 %v903
    %v951 = vunpack.c.l.b16 0
    %v952 = vunpack.c.h.b16 0
    %vm953 = vcmp.ne.s32.totalorder %v949, %v951
    %vm954 = vcmp.ne.s32.totalorder %v950, %v952
    %vm955 = vmpackc.low %vm954, %vm953
    %v956 = vunpack.c.l.b16 %v904
    %v957 = vunpack.c.h.b16 %v904
    %v958 = vunpack.c.l.b16 0
    %v959 = vunpack.c.h.b16 0
    %vm960 = vcmp.ne.s32.totalorder %v956, %v958
    %vm961 = vcmp.ne.s32.totalorder %v957, %v959
    %vm962 = vmpackc.low %vm961, %vm960
    %v963 = vunpack.c.l.b16 %v905
    %v964 = vunpack.c.h.b16 %v905
    %v965 = vunpack.c.l.b16 0
    %v966 = vunpack.c.h.b16 0
    %vm967 = vcmp.ne.s32.totalorder %v963, %v965
    %vm968 = vcmp.ne.s32.totalorder %v964, %v966
    %vm969 = vmpackc.low %vm968, %vm967
    %v970 = vunpack.c.l.b16 %v906
    %v971 = vunpack.c.h.b16 %v906
    %v972 = vunpack.c.l.b16 0
    %v973 = vunpack.c.h.b16 0
    %vm974 = vcmp.ne.s32.totalorder %v970, %v972
    %vm975 = vcmp.ne.s32.totalorder %v971, %v973
    %vm976 = vmpackc.low %vm975, %vm974
    %v977 = vsel %vm913, %v796, 0
    %v978 = vsel %vm920, %v719, 0
    %v979 = vsel %vm927, %v727, 0
    %v980 = vsel %vm934, %v735, 0
    %v981 = vsel %vm941, %v743, 0
    %v982 = vsel %vm948, %v751, 0
    %v983 = vsel %vm955, %v759, 0
    %v984 = vsel %vm962, %v767, 0
    %v985 = vsel %vm969, %v775, 0
    %v986 = vsel %vm976, %v783, 0
    %vm987 = vsmask.f32 7424
    %v988 = vrot.slane %v709, 1
    %v989 = vor.u32 %v706, %v988
    %v990 = vrot.slane %v716, 1
    %v991 = vsel %vm987, %v989, %v990
    %v992 = vor.u32 %v713, %v990
    %v993 = vrot.slane %v724, 1
    %v994 = vsel %vm987, %v992, %v993
    %v995 = vor.u32 %v721, %v993
    %v996 = vrot.slane %v732, 1
    %v997 = vsel %vm987, %v995, %v996
    %v998 = vor.u32 %v729, %v996
    %v999 = vrot.slane %v740, 1
    %v1000 = vsel %vm987, %v998, %v999
    %v1001 = vor.u32 %v737, %v999
    %v1002 = vrot.slane %v748, 1
    %v1003 = vsel %vm987, %v1001, %v1002
    %v1004 = vor.u32 %v745, %v1002
    %v1005 = vrot.slane %v756, 1
    %v1006 = vsel %vm987, %v1004, %v1005
    %v1007 = vor.u32 %v753, %v1005
    %v1008 = vrot.slane %v764, 1
    %v1009 = vsel %vm987, %v1007, %v1008
    %v1010 = vor.u32 %v761, %v1008
    %v1011 = vrot.slane %v772, 1
    %v1012 = vsel %vm987, %v1010, %v1011
    %v1013 = vor.u32 %v769, %v1011
    %v1014 = vrot.slane %v780, 1
    %v1015 = vsel %vm987, %v1013, %v1014
    %v1016 = vor.u32 %v777, %v1014
    %vm1027 = vcmask 1047552
    %vm1028 = vmand %vm1027, %vm987
    %v1029 = vsel %vm1028, %v1016, 0
    %v1030 = vsel %vm614, 1, 0
    %v1031 = vsel %vm615, 1, 0
    %v1032 = vsel %vm616, 1, 0
    %v1033 = vsel %vm617, 1, 0
    %v1034 = vsel %vm618, 1, 0
    %v1035 = vsel %vm619, 1, 0
    %v1036 = vsel %vm620, 1, 0
    %v1037 = vsel %vm621, 1, 0
    %v1038 = vsel %vm622, 1, 0
    %v1039 = vsel %vm623, 1, 0
    %v1040 = vsel %vm624, 1, 0
    %v1041 = vsel %vm625, 1, 0
    %v1042 = vsel %vm626, 1, 0
    %v1043 = vsel %vm627, 1, 0
    %v1044 = vsel %vm628, 1, 0
    %v1045 = vsel %vm629, 1, 0
    %v1046 = vsel %vm630, 1, 0
    %v1047 = vsel %vm631, 1, 0
    %v1048 = vsel %vm632, 1, 0
    %v1049 = vsel %vm633, 1, 0
    %vm1050 = vcmp.eq.s32.totalorder %v1030, 1
    %vm1051 = vcmp.eq.s32.totalorder %v1031, 1
    %vm1052 = vcmp.eq.s32.totalorder %v1032, 1
    %vm1053 = vcmp.eq.s32.totalorder %v1033, 1
    %vm1054 = vcmp.eq.s32.totalorder %v1034, 1
    %vm1055 = vcmp.eq.s32.totalorder %v1035, 1
    %vm1056 = vcmp.eq.s32.totalorder %v1036, 1
    %vm1057 = vcmp.eq.s32.totalorder %v1037, 1
    %vm1058 = vcmp.eq.s32.totalorder %v1038, 1
    %vm1059 = vcmp.eq.s32.totalorder %v1039, 1
    %vm1060 = vcmp.eq.s32.totalorder %v1040, 1
    %vm1061 = vcmp.eq.s32.totalorder %v1041, 1
    %vm1062 = vcmp.eq.s32.totalorder %v1042, 1
    %vm1063 = vcmp.eq.s32.totalorder %v1043, 1
    %vm1064 = vcmp.eq.s32.totalorder %v1044, 1
    %vm1065 = vcmp.eq.s32.totalorder %v1045, 1
    %vm1066 = vcmp.eq.s32.totalorder %v1046, 1
    %vm1067 = vcmp.eq.s32.totalorder %v1047, 1
    %vm1068 = vcmp.eq.s32.totalorder %v1048, 1
    %vm1069 = vcmp.eq.s32.totalorder %v1049, 1
    %vm1070 = vmpackc.low %vm1050, %vm1050
    %vm1071 = vmpackc.low %vm1051, %vm1051
    %vm1072 = vmpackc.low %vm1052, %vm1052
    %vm1073 = vmpackc.low %vm1053, %vm1053
    %vm1074 = vmpackc.low %vm1054, %vm1054
    %vm1075 = vmpackc.low %vm1055, %vm1055
    %vm1076 = vmpackc.low %vm1056, %vm1056
    %vm1077 = vmpackc.low %vm1057, %vm1057
    %vm1078 = vmpackc.low %vm1058, %vm1058
    %vm1079 = vmpackc.low %vm1059, %vm1059
    %vm1080 = vmpackc.low %vm1060, %vm1060
    %vm1081 = vmpackc.low %vm1061, %vm1061
    %vm1082 = vmpackc.low %vm1062, %vm1062
    %vm1083 = vmpackc.low %vm1063, %vm1063
    %vm1084 = vmpackc.low %vm1064, %vm1064
    %vm1085 = vmpackc.low %vm1065, %vm1065
    %vm1086 = vmpackc.low %vm1066, %vm1066
    %vm1087 = vmpackc.low %vm1067, %vm1067
    %vm1088 = vmpackc.low %vm1068, %vm1068
    %vm1089 = vmpackc.low %vm1069, %vm1069
    %v1090 = vsel %vm1070, 65537, 0
    %v1091 = vsel %vm1071, 65537, 0
    %v1092 = vsel %vm1072, 65537, 0
    %v1093 = vsel %vm1073, 65537, 0
    %v1094 = vsel %vm1074, 65537, 0
    %v1095 = vsel %vm1075, 65537, 0
    %v1096 = vsel %vm1076, 65537, 0
    %v1097 = vsel %vm1077, 65537, 0
    %v1098 = vsel %vm1078, 65537, 0
    %v1099 = vsel %vm1079, 65537, 0
    %v1100 = vsel %vm1080, 65537, 0
    %v1101 = vsel %vm1081, 65537, 0
    %v1102 = vsel %vm1082, 65537, 0
    %v1103 = vsel %vm1083, 65537, 0
    %v1104 = vsel %vm1084, 65537, 0
    %v1105 = vsel %vm1085, 65537, 0
    %v1106 = vsel %vm1086, 65537, 0
    %v1107 = vsel %vm1087, 65537, 0
    %v1108 = vsel %vm1088, 65537, 0
    %v1109 = vsel %vm1089, 65537, 0
    %v1110 = vunpack.c.l.b16 %v1090
    %v1111 = vunpack.c.l.b16 %v1091
    %v1112 = vunpack.c.l.b16 %v1092
    %v1113 = vunpack.c.l.b16 %v1093
    %v1114 = vunpack.c.l.b16 %v1094
    %v1115 = vunpack.c.l.b16 %v1095
    %v1116 = vunpack.c.l.b16 %v1096
    %v1117 = vunpack.c.l.b16 %v1097
    %v1118 = vunpack.c.l.b16 %v1098
    %v1119 = vunpack.c.l.b16 %v1099
    %v1120 = vunpack.c.l.b16 %v1100
    %v1121 = vunpack.c.l.b16 %v1101
    %v1122 = vunpack.c.l.b16 %v1102
    %v1123 = vunpack.c.l.b16 %v1103
    %v1124 = vunpack.c.l.b16 %v1104
    %v1125 = vunpack.c.l.b16 %v1105
    %v1126 = vunpack.c.l.b16 %v1106
    %v1127 = vunpack.c.l.b16 %v1107
    %v1128 = vunpack.c.l.b16 %v1108
    %v1129 = vunpack.c.l.b16 %v1109
    %v1130 = vpack.c.b16 %v1111, %v1110
    %v1131 = vpack.c.b16 %v1113, %v1112
    %v1132 = vpack.c.b16 %v1115, %v1114
    %v1133 = vpack.c.b16 %v1117, %v1116
    %v1134 = vpack.c.b16 %v1119, %v1118
    %v1135 = vpack.c.b16 %v1121, %v1120
    %v1136 = vpack.c.b16 %v1123, %v1122
    %v1137 = vpack.c.b16 %v1125, %v1124
    %v1138 = vpack.c.b16 %v1127, %v1126
    %v1139 = vpack.c.b16 %v1129, %v1128
    %v1140 = vunpack.c.l.b16 %v1130
    %v1141 = vunpack.c.h.b16 %v1130
    %v1142 = vunpack.c.l.b16 0
    %v1143 = vunpack.c.h.b16 0
    %vm1144 = vcmp.ne.s32.totalorder %v1140, %v1142
    %vm1145 = vcmp.ne.s32.totalorder %v1141, %v1143
    %vm1146 = vmpackc.low %vm1145, %vm1144
    %v1147 = vunpack.c.l.b16 %v1131
    %v1148 = vunpack.c.h.b16 %v1131
    %v1149 = vunpack.c.l.b16 0
    %v1150 = vunpack.c.h.b16 0
    %vm1151 = vcmp.ne.s32.totalorder %v1147, %v1149
    %vm1152 = vcmp.ne.s32.totalorder %v1148, %v1150
    %vm1153 = vmpackc.low %vm1152, %vm1151
    %v1154 = vunpack.c.l.b16 %v1132
    %v1155 = vunpack.c.h.b16 %v1132
    %v1156 = vunpack.c.l.b16 0
    %v1157 = vunpack.c.h.b16 0
    %vm1158 = vcmp.ne.s32.totalorder %v1154, %v1156
    %vm1159 = vcmp.ne.s32.totalorder %v1155, %v1157
    %vm1160 = vmpackc.low %vm1159, %vm1158
    %v1161 = vunpack.c.l.b16 %v1133
    %v1162 = vunpack.c.h.b16 %v1133
    %v1163 = vunpack.c.l.b16 0
    %v1164 = vunpack.c.h.b16 0
    %vm1165 = vcmp.ne.s32.totalorder %v1161, %v1163
    %vm1166 = vcmp.ne.s32.totalorder %v1162, %v1164
    %vm1167 = vmpackc.low %vm1166, %vm1165
    %v1168 = vunpack.c.l.b16 %v1134
    %v1169 = vunpack.c.h.b16 %v1134
    %v1170 = vunpack.c.l.b16 0
    %v1171 = vunpack.c.h.b16 0
    %vm1172 = vcmp.ne.s32.totalorder %v1168, %v1170
    %vm1173 = vcmp.ne.s32.totalorder %v1169, %v1171
    %vm1174 = vmpackc.low %vm1173, %vm1172
    %v1175 = vunpack.c.l.b16 %v1135
    %v1176 = vunpack.c.h.b16 %v1135
    %v1177 = vunpack.c.l.b16 0
    %v1178 = vunpack.c.h.b16 0
    %vm1179 = vcmp.ne.s32.totalorder %v1175, %v1177
    %vm1180 = vcmp.ne.s32.totalorder %v1176, %v1178
    %vm1181 = vmpackc.low %vm1180, %vm1179
    %v1182 = vunpack.c.l.b16 %v1136
    %v1183 = vunpack.c.h.b16 %v1136
    %v1184 = vunpack.c.l.b16 0
    %v1185 = vunpack.c.h.b16 0
    %vm1186 = vcmp.ne.s32.totalorder %v1182, %v1184
    %vm1187 = vcmp.ne.s32.totalorder %v1183, %v1185
    %vm1188 = vmpackc.low %vm1187, %vm1186
    %v1189 = vunpack.c.l.b16 %v1137
    %v1190 = vunpack.c.h.b16 %v1137
    %v1191 = vunpack.c.l.b16 0
    %v1192 = vunpack.c.h.b16 0
    %vm1193 = vcmp.ne.s32.totalorder %v1189, %v1191
    %vm1194 = vcmp.ne.s32.totalorder %v1190, %v1192
    %vm1195 = vmpackc.low %vm1194, %vm1193
    %v1196 = vunpack.c.l.b16 %v1138
    %v1197 = vunpack.c.h.b16 %v1138
    %v1198 = vunpack.c.l.b16 0
    %v1199 = vunpack.c.h.b16 0
    %vm1200 = vcmp.ne.s32.totalorder %v1196, %v1198
    %vm1201 = vcmp.ne.s32.totalorder %v1197, %v1199
    %vm1202 = vmpackc.low %vm1201, %vm1200
    %v1203 = vunpack.c.l.b16 %v1139
    %v1204 = vunpack.c.h.b16 %v1139
    %v1205 = vunpack.c.l.b16 0
    %v1206 = vunpack.c.h.b16 0
    %vm1207 = vcmp.ne.s32.totalorder %v1203, %v1205
    %vm1208 = vcmp.ne.s32.totalorder %v1204, %v1206
    %vm1209 = vmpackc.low %vm1208, %vm1207
    %v1210 = vsel %vm1146, %v991, 0
    %v1211 = vsel %vm1153, %v994, 0
    %v1212 = vsel %vm1160, %v997, 0
    %v1213 = vsel %vm1167, %v1000, 0
    %v1214 = vsel %vm1174, %v1003, 0
    %v1215 = vsel %vm1181, %v1006, 0
    %v1216 = vsel %vm1188, %v1009, 0
    %v1217 = vsel %vm1195, %v1012, 0
    %v1218 = vsel %vm1202, %v1015, 0
    %v1219 = vsel %vm1209, %v1029, 0
    %v1230 = vunpack.c.l.b16 %v977
    %v1231 = vunpack.c.h.b16 %v977
    %v1232 = vunpack.c.l.b16 %v978
    %v1233 = vunpack.c.h.b16 %v978
    %v1234 = vunpack.c.l.b16 %v979
    %v1235 = vunpack.c.h.b16 %v979
    %v1236 = vunpack.c.l.b16 %v980
    %v1237 = vunpack.c.h.b16 %v980
    %v1238 = vunpack.c.l.b16 %v981
    %v1239 = vunpack.c.h.b16 %v981
    %v1240 = vunpack.c.l.b16 %v982
    %v1241 = vunpack.c.h.b16 %v982
    %v1242 = vunpack.c.l.b16 %v983
    %v1243 = vunpack.c.h.b16 %v983
    %v1244 = vunpack.c.l.b16 %v984
    %v1245 = vunpack.c.h.b16 %v984
    %v1246 = vunpack.c.l.b16 %v985
    %v1247 = vunpack.c.h.b16 %v985
    %v1248 = vunpack.c.l.b16 %v986
    %v1249 = vunpack.c.h.b16 %v986
    %v1250 = vpack.c.b16 %v1230, %v1230
    %v1251 = vpack.c.b16 %v1231, %v1231
    %v1252 = vpack.c.b16 %v1232, %v1232
    %v1253 = vpack.c.b16 %v1233, %v1233
    %v1254 = vpack.c.b16 %v1234, %v1234
    %v1255 = vpack.c.b16 %v1235, %v1235
    %v1256 = vpack.c.b16 %v1236, %v1236
    %v1257 = vpack.c.b16 %v1237, %v1237
    %v1258 = vpack.c.b16 %v1238, %v1238
    %v1259 = vpack.c.b16 %v1239, %v1239
    %v1260 = vpack.c.b16 %v1240, %v1240
    %v1261 = vpack.c.b16 %v1241, %v1241
    %v1262 = vpack.c.b16 %v1242, %v1242
    %v1263 = vpack.c.b16 %v1243, %v1243
    %v1264 = vpack.c.b16 %v1244, %v1244
    %v1265 = vpack.c.b16 %v1245, %v1245
    %v1266 = vpack.c.b16 %v1246, %v1246
    %v1267 = vpack.c.b16 %v1247, %v1247
    %v1268 = vpack.c.b16 %v1248, %v1248
    %v1269 = vpack.c.b16 %v1249, %v1249
    %v1300 = vunpack.c.l.b16 %v1210
    %v1301 = vunpack.c.h.b16 %v1210
    %v1302 = vunpack.c.l.b16 %v1211
    %v1303 = vunpack.c.h.b16 %v1211
    %v1304 = vunpack.c.l.b16 %v1212
    %v1305 = vunpack.c.h.b16 %v1212
    %v1306 = vunpack.c.l.b16 %v1213
    %v1307 = vunpack.c.h.b16 %v1213
    %v1308 = vunpack.c.l.b16 %v1214
    %v1309 = vunpack.c.h.b16 %v1214
    %v1310 = vunpack.c.l.b16 %v1215
    %v1311 = vunpack.c.h.b16 %v1215
    %v1312 = vunpack.c.l.b16 %v1216
    %v1313 = vunpack.c.h.b16 %v1216
    %v1314 = vunpack.c.l.b16 %v1217
    %v1315 = vunpack.c.h.b16 %v1217
    %v1316 = vunpack.c.l.b16 %v1218
    %v1317 = vunpack.c.h.b16 %v1218
    %v1318 = vunpack.c.l.b16 %v1219
    %v1319 = vunpack.c.h.b16 %v1219
    %v1320 = vpack.c.b16 %v1300, %v1300
    %v1321 = vpack.c.b16 %v1301, %v1301
    %v1322 = vpack.c.b16 %v1302, %v1302
    %v1323 = vpack.c.b16 %v1303, %v1303
    %v1324 = vpack.c.b16 %v1304, %v1304
    %v1325 = vpack.c.b16 %v1305, %v1305
    %v1326 = vpack.c.b16 %v1306, %v1306
    %v1327 = vpack.c.b16 %v1307, %v1307
    %v1328 = vpack.c.b16 %v1308, %v1308
    %v1329 = vpack.c.b16 %v1309, %v1309
    %v1330 = vpack.c.b16 %v1310, %v1310
    %v1331 = vpack.c.b16 %v1311, %v1311
    %v1332 = vpack.c.b16 %v1312, %v1312
    %v1333 = vpack.c.b16 %v1313, %v1313
    %v1334 = vpack.c.b16 %v1314, %v1314
    %v1335 = vpack.c.b16 %v1315, %v1315
    %v1336 = vpack.c.b16 %v1316, %v1316
    %v1337 = vpack.c.b16 %v1317, %v1317
    %v1338 = vpack.c.b16 %v1318, %v1318
    %v1339 = vpack.c.b16 %v1319, %v1319
    %1360 = vst [vmem:[#allocation3] sm:$0xf] %v1250
    %1361 = vst [vmem:[#allocation3 + $0x24] sm:$0xf] %v1251
    %1362 = vst [vmem:[#allocation3 + $0x48] sm:$0xf] %v1252
    %1363 = vst [vmem:[#allocation3 + $0x6c] sm:$0xf] %v1253
    %1364 = vst [vmem:[#allocation3 + $0x90] sm:$0xf] %v1254
    %1365 = vst [vmem:[#allocation3 + $0xb4] sm:$0xf] %v1255
    %1366 = vst [vmem:[#allocation3 + $0xd8] sm:$0xf] %v1256
    %1367 = vst [vmem:[#allocation3 + $0xfc] sm:$0xf] %v1257
    %1368 = vst [vmem:[#allocation3 + $0x120] sm:$0xf] %v1260
    %1369 = vst [vmem:[#allocation3 + $0x144] sm:$0xf] %v1261
    %1370 = vst [vmem:[#allocation3 + $0x168] sm:$0xf] %v1262
    %1371 = vst [vmem:[#allocation3 + $0x18c] sm:$0xf] %v1263
    %1372 = vst [vmem:[#allocation3 + $0x1b0] sm:$0xf] %v1264
    %1373 = vst [vmem:[#allocation3 + $0x1d4] sm:$0xf] %v1265
    %1374 = vst [vmem:[#allocation3 + $0x1f8] sm:$0xf] %v1266
    %1375 = vst [vmem:[#allocation3 + $0x21c] sm:$0xf] %v1267
    %1376 = vst [vmem:[#allocation3 + $0x4] sm:$0xf] %v634
    %1377 = vst [vmem:[#allocation3 + $0x28] sm:$0xf] %v635
    %1378 = vst [vmem:[#allocation3 + $0x4c] sm:$0xf] %v636
    %1379 = vst [vmem:[#allocation3 + $0x70] sm:$0xf] %v637
    %1380 = vst [vmem:[#allocation3 + $0x94] sm:$0xf] %v638
    %1381 = vst [vmem:[#allocation3 + $0xb8] sm:$0xf] %v639
    %1382 = vst [vmem:[#allocation3 + $0xdc] sm:$0xf] %v640
    %1383 = vst [vmem:[#allocation3 + $0x100] sm:$0xf] %v641
    %1384 = vst [vmem:[#allocation3 + $0x124] sm:$0xf] %v644
    %1385 = vst [vmem:[#allocation3 + $0x148] sm:$0xf] %v645
    %1386 = vst [vmem:[#allocation3 + $0x16c] sm:$0xf] %v646
    %1387 = vst [vmem:[#allocation3 + $0x190] sm:$0xf] %v647
    %1388 = vst [vmem:[#allocation3 + $0x1b4] sm:$0xf] %v648
    %1389 = vst [vmem:[#allocation3 + $0x1d8] sm:$0xf] %v649
    %1390 = vst [vmem:[#allocation3 + $0x1fc] sm:$0xf] %v650
    %1391 = vst [vmem:[#allocation3 + $0x220] sm:$0xf] %v651
    %1392 = vst [vmem:[#allocation3 + $0x8] sm:$0xf] %v1320
    %1393 = vst [vmem:[#allocation3 + $0x2c] sm:$0xf] %v1321
    %1394 = vst [vmem:[#allocation3 + $0x50] sm:$0xf] %v1322
    %1395 = vst [vmem:[#allocation3 + $0x74] sm:$0xf] %v1323
    %1396 = vst [vmem:[#allocation3 + $0x98] sm:$0xf] %v1324
    %1397 = vst [vmem:[#allocation3 + $0xbc] sm:$0xf] %v1325
    %1398 = vst [vmem:[#allocation3 + $0xe0] sm:$0xf] %v1326
    %1399 = vst [vmem:[#allocation3 + $0x104] sm:$0xf] %v1327
    %1400 = vst [vmem:[#allocation3 + $0x128] sm:$0xf] %v1330
    %1401 = vst [vmem:[#allocation3 + $0x14c] sm:$0xf] %v1331
    %1402 = vst [vmem:[#allocation3 + $0x170] sm:$0xf] %v1332
    %1403 = vst [vmem:[#allocation3 + $0x194] sm:$0xf] %v1333
    %1404 = vst [vmem:[#allocation3 + $0x1b8] sm:$0xf] %v1334
    %1405 = vst [vmem:[#allocation3 + $0x1dc] sm:$0xf] %v1335
    %1406 = vst [vmem:[#allocation3 + $0x200] sm:$0xf] %v1336
    %1407 = vst [vmem:[#allocation3 + $0x224] sm:$0xf] %v1337
    %1408 = vst [vmem:[#allocation3 + $0xc] sm:$0xf] %v1251
    %1409 = vst [vmem:[#allocation3 + $0x30] sm:$0xf] %v1252
    %1410 = vst [vmem:[#allocation3 + $0x54] sm:$0xf] %v1253
    %1411 = vst [vmem:[#allocation3 + $0x78] sm:$0xf] %v1254
    %1412 = vst [vmem:[#allocation3 + $0x9c] sm:$0xf] %v1255
    %1413 = vst [vmem:[#allocation3 + $0xc0] sm:$0xf] %v1256
    %1414 = vst [vmem:[#allocation3 + $0xe4] sm:$0xf] %v1257
    %1415 = vst [vmem:[#allocation3 + $0x108] sm:$0xf] %v1258
    %1416 = vst [vmem:[#allocation3 + $0x12c] sm:$0xf] %v1261
    %1417 = vst [vmem:[#allocation3 + $0x150] sm:$0xf] %v1262
    %1418 = vst [vmem:[#allocation3 + $0x174] sm:$0xf] %v1263
    %1419 = vst [vmem:[#allocation3 + $0x198] sm:$0xf] %v1264
    %1420 = vst [vmem:[#allocation3 + $0x1bc] sm:$0xf] %v1265
    %1421 = vst [vmem:[#allocation3 + $0x1e0] sm:$0xf] %v1266
    %1422 = vst [vmem:[#allocation3 + $0x204] sm:$0xf] %v1267
    %1423 = vst [vmem:[#allocation3 + $0x228] sm:$0xf] %v1268
    %1424 = vst [vmem:[#allocation3 + $0x10] sm:$0xf] %v635
    %1425 = vst [vmem:[#allocation3 + $0x34] sm:$0xf] %v636
    %1426 = vst [vmem:[#allocation3 + $0x58] sm:$0xf] %v637
    %1427 = vst [vmem:[#allocation3 + $0x7c] sm:$0xf] %v638
    %1428 = vst [vmem:[#allocation3 + $0xa0] sm:$0xf] %v639
    %1429 = vst [vmem:[#allocation3 + $0xc4] sm:$0xf] %v640
    %1430 = vst [vmem:[#allocation3 + $0xe8] sm:$0xf] %v641
    %1431 = vst [vmem:[#allocation3 + $0x10c] sm:$0xf] %v642
    %1432 = vst [vmem:[#allocation3 + $0x130] sm:$0xf] %v645
    %1433 = vst [vmem:[#allocation3 + $0x154] sm:$0xf] %v646
    %1434 = vst [vmem:[#allocation3 + $0x178] sm:$0xf] %v647
    %1435 = vst [vmem:[#allocation3 + $0x19c] sm:$0xf] %v648
    %1436 = vst [vmem:[#allocation3 + $0x1c0] sm:$0xf] %v649
    %1437 = vst [vmem:[#allocation3 + $0x1e4] sm:$0xf] %v650
    %1438 = vst [vmem:[#allocation3 + $0x208] sm:$0xf] %v651
    %1439 = vst [vmem:[#allocation3 + $0x22c] sm:$0xf] %v652
    %1440 = vst [vmem:[#allocation3 + $0x14] sm:$0xf] %v1321
    %1441 = vst [vmem:[#allocation3 + $0x38] sm:$0xf] %v1322
    %1442 = vst [vmem:[#allocation3 + $0x5c] sm:$0xf] %v1323
    %1443 = vst [vmem:[#allocation3 + $0x80] sm:$0xf] %v1324
    %1444 = vst [vmem:[#allocation3 + $0xa4] sm:$0xf] %v1325
    %1445 = vst [vmem:[#allocation3 + $0xc8] sm:$0xf] %v1326
    %1446 = vst [vmem:[#allocation3 + $0xec] sm:$0xf] %v1327
    %1447 = vst [vmem:[#allocation3 + $0x110] sm:$0xf] %v1328
    %1448 = vst [vmem:[#allocation3 + $0x134] sm:$0xf] %v1331
    %1449 = vst [vmem:[#allocation3 + $0x158] sm:$0xf] %v1332
    %1450 = vst [vmem:[#allocation3 + $0x17c] sm:$0xf] %v1333
    %1451 = vst [vmem:[#allocation3 + $0x1a0] sm:$0xf] %v1334
    %1452 = vst [vmem:[#allocation3 + $0x1c4] sm:$0xf] %v1335
    %1453 = vst [vmem:[#allocation3 + $0x1e8] sm:$0xf] %v1336
    %1454 = vst [vmem:[#allocation3 + $0x20c] sm:$0xf] %v1337
    %1455 = vst [vmem:[#allocation3 + $0x230] sm:$0xf] %v1338
    %1456 = vst [vmem:[#allocation3 + $0x18] sm:$0xf] %v1252
    %1457 = vst [vmem:[#allocation3 + $0x3c] sm:$0xf] %v1253
    %1458 = vst [vmem:[#allocation3 + $0x60] sm:$0xf] %v1254
    %1459 = vst [vmem:[#allocation3 + $0x84] sm:$0xf] %v1255
    %1460 = vst [vmem:[#allocation3 + $0xa8] sm:$0xf] %v1256
    %1461 = vst [vmem:[#allocation3 + $0xcc] sm:$0xf] %v1257
    %1462 = vst [vmem:[#allocation3 + $0xf0] sm:$0xf] %v1258
    %1463 = vst [vmem:[#allocation3 + $0x114] sm:$0xf] %v1259
    %1464 = vst [vmem:[#allocation3 + $0x138] sm:$0xf] %v1262
    %1465 = vst [vmem:[#allocation3 + $0x15c] sm:$0xf] %v1263
    %1466 = vst [vmem:[#allocation3 + $0x180] sm:$0xf] %v1264
    %1467 = vst [vmem:[#allocation3 + $0x1a4] sm:$0xf] %v1265
    %1468 = vst [vmem:[#allocation3 + $0x1c8] sm:$0xf] %v1266
    %1469 = vst [vmem:[#allocation3 + $0x1ec] sm:$0xf] %v1267
    %1470 = vst [vmem:[#allocation3 + $0x210] sm:$0xf] %v1268
    %1471 = vst [vmem:[#allocation3 + $0x234] sm:$0xf] %v1269
    %1472 = vst [vmem:[#allocation3 + $0x1c] sm:$0xf] %v636
    %1473 = vst [vmem:[#allocation3 + $0x40] sm:$0xf] %v637
    %1474 = vst [vmem:[#allocation3 + $0x64] sm:$0xf] %v638
    %1475 = vst [vmem:[#allocation3 + $0x88] sm:$0xf] %v639
    %1476 = vst [vmem:[#allocation3 + $0xac] sm:$0xf] %v640
    %1477 = vst [vmem:[#allocation3 + $0xd0] sm:$0xf] %v641
    %1478 = vst [vmem:[#allocation3 + $0xf4] sm:$0xf] %v642
    %1479 = vst [vmem:[#allocation3 + $0x118] sm:$0xf] %v643
    %1480 = vst [vmem:[#allocation3 + $0x13c] sm:$0xf] %v646
    %1481 = vst [vmem:[#allocation3 + $0x160] sm:$0xf] %v647
    %1482 = vst [vmem:[#allocation3 + $0x184] sm:$0xf] %v648
    %1483 = vst [vmem:[#allocation3 + $0x1a8] sm:$0xf] %v649
    %1484 = vst [vmem:[#allocation3 + $0x1cc] sm:$0xf] %v650
    %1485 = vst [vmem:[#allocation3 + $0x1f0] sm:$0xf] %v651
    %1486 = vst [vmem:[#allocation3 + $0x214] sm:$0xf] %v652
    %1487 = vst [vmem:[#allocation3 + $0x238] sm:$0xf] %v653
    %1488 = vst [vmem:[#allocation3 + $0x20] sm:$0xf] %v1322
    %1489 = vst [vmem:[#allocation3 + $0x44] sm:$0xf] %v1323
    %1490 = vst [vmem:[#allocation3 + $0x68] sm:$0xf] %v1324
    %1491 = vst [vmem:[#allocation3 + $0x8c] sm:$0xf] %v1325
    %1492 = vst [vmem:[#allocation3 + $0xb0] sm:$0xf] %v1326
    %1493 = vst [vmem:[#allocation3 + $0xd4] sm:$0xf] %v1327
    %1494 = vst [vmem:[#allocation3 + $0xf8] sm:$0xf] %v1328
    %1495 = vst [vmem:[#allocation3 + $0x11c] sm:$0xf] %v1329
    %1496 = vst [vmem:[#allocation3 + $0x140] sm:$0xf] %v1332
    %1497 = vst [vmem:[#allocation3 + $0x164] sm:$0xf] %v1333
    %1498 = vst [vmem:[#allocation3 + $0x188] sm:$0xf] %v1334
    %1499 = vst [vmem:[#allocation3 + $0x1ac] sm:$0xf] %v1335
    %1500 = vst [vmem:[#allocation3 + $0x1d0] sm:$0xf] %v1336
    %1501 = vst [vmem:[#allocation3 + $0x1f4] sm:$0xf] %v1337
    %1502 = vst [vmem:[#allocation3 + $0x218] sm:$0xf] %v1338
    %1503 = vst [vmem:[#allocation3 + $0x23c] sm:$0xf] %v1339
    %v1504 = vld [vmem:[#allocation3] sm:$0xff]
    %v1505 = vld [vmem:[#allocation3 + $0x8] sm:$0xff]
    %v1506 = vld [vmem:[#allocation3 + $0x10] sm:$0xff]
    %v1507 = vld [vmem:[#allocation3 + $0x18] sm:$0xff]
    %v1508 = vld [vmem:[#allocation3 + $0x20] sm:$0xf]
    %v1509 = vld [vmem:[#allocation3 + $0x24] sm:$0xff]
    %v1510 = vld [vmem:[#allocation3 + $0x2c] sm:$0xff]
    %v1511 = vld [vmem:[#allocation3 + $0x34] sm:$0xff]
    %v1512 = vld [vmem:[#allocation3 + $0x3c] sm:$0xff]
    %v1513 = vld [vmem:[#allocation3 + $0x44] sm:$0xf]
    %v1514 = vld [vmem:[#allocation3 + $0x48] sm:$0xff]
    %v1515 = vld [vmem:[#allocation3 + $0x50] sm:$0xff]
    %v1516 = vld [vmem:[#allocation3 + $0x58] sm:$0xff]
    %v1517 = vld [vmem:[#allocation3 + $0x60] sm:$0xff]
    %v1518 = vld [vmem:[#allocation3 + $0x68] sm:$0xf]
    %v1519 = vld [vmem:[#allocation3 + $0x6c] sm:$0xff]
    %v1520 = vld [vmem:[#allocation3 + $0x74] sm:$0xff]
    %v1521 = vld [vmem:[#allocation3 + $0x7c] sm:$0xff]
    %v1522 = vld [vmem:[#allocation3 + $0x84] sm:$0xff]
    %v1523 = vld [vmem:[#allocation3 + $0x8c] sm:$0xf]
    %v1524 = vld [vmem:[#allocation3 + $0x90] sm:$0xff]
    %v1525 = vld [vmem:[#allocation3 + $0x98] sm:$0xff]
    %v1526 = vld [vmem:[#allocation3 + $0xa0] sm:$0xff]
    %v1527 = vld [vmem:[#allocation3 + $0xa8] sm:$0xff]
    %v1528 = vld [vmem:[#allocation3 + $0xb0] sm:$0xf]
    %v1529 = vld [vmem:[#allocation3 + $0xb4] sm:$0xff]
    %v1530 = vld [vmem:[#allocation3 + $0xbc] sm:$0xff]
    %v1531 = vld [vmem:[#allocation3 + $0xc4] sm:$0xff]
    %v1532 = vld [vmem:[#allocation3 + $0xcc] sm:$0xff]
    %v1533 = vld [vmem:[#allocation3 + $0xd4] sm:$0xf]
    %v1534 = vld [vmem:[#allocation3 + $0xd8] sm:$0xff]
    %v1535 = vld [vmem:[#allocation3 + $0xe0] sm:$0xff]
    %v1536 = vld [vmem:[#allocation3 + $0xe8] sm:$0xff]
    %v1537 = vld [vmem:[#allocation3 + $0xf0] sm:$0xff]
    %v1538 = vld [vmem:[#allocation3 + $0xf8] sm:$0xf]
    %v1539 = vld [vmem:[#allocation3 + $0xfc] sm:$0xff]
    %v1540 = vld [vmem:[#allocation3 + $0x104] sm:$0xff]
    %v1541 = vld [vmem:[#allocation3 + $0x10c] sm:$0xff]
    %v1542 = vld [vmem:[#allocation3 + $0x114] sm:$0xff]
    %v1543 = vld [vmem:[#allocation3 + $0x11c] sm:$0xf]
    %v1544 = vld [vmem:[#allocation3 + $0x120] sm:$0xff]
    %v1545 = vld [vmem:[#allocation3 + $0x128] sm:$0xff]
    %v1546 = vld [vmem:[#allocation3 + $0x130] sm:$0xff]
    %v1547 = vld [vmem:[#allocation3 + $0x138] sm:$0xff]
    %v1548 = vld [vmem:[#allocation3 + $0x140] sm:$0xf]
    %v1549 = vld [vmem:[#allocation3 + $0x144] sm:$0xff]
    %v1550 = vld [vmem:[#allocation3 + $0x14c] sm:$0xff]
    %v1551 = vld [vmem:[#allocation3 + $0x154] sm:$0xff]
    %v1552 = vld [vmem:[#allocation3 + $0x15c] sm:$0xff]
    %v1553 = vld [vmem:[#allocation3 + $0x164] sm:$0xf]
    %v1554 = vld [vmem:[#allocation3 + $0x168] sm:$0xff]
    %v1555 = vld [vmem:[#allocation3 + $0x170] sm:$0xff]
    %v1556 = vld [vmem:[#allocation3 + $0x178] sm:$0xff]
    %v1557 = vld [vmem:[#allocation3 + $0x180] sm:$0xff]
    %v1558 = vld [vmem:[#allocation3 + $0x188] sm:$0xf]
    %v1559 = vld [vmem:[#allocation3 + $0x18c] sm:$0xff]
    %v1560 = vld [vmem:[#allocation3 + $0x194] sm:$0xff]
    %v1561 = vld [vmem:[#allocation3 + $0x19c] sm:$0xff]
    %v1562 = vld [vmem:[#allocation3 + $0x1a4] sm:$0xff]
    %v1563 = vld [vmem:[#allocation3 + $0x1ac] sm:$0xf]
    %v1564 = vld [vmem:[#allocation3 + $0x1b0] sm:$0xff]
    %v1565 = vld [vmem:[#allocation3 + $0x1b8] sm:$0xff]
    %v1566 = vld [vmem:[#allocation3 + $0x1c0] sm:$0xff]
    %v1567 = vld [vmem:[#allocation3 + $0x1c8] sm:$0xff]
    %v1568 = vld [vmem:[#allocation3 + $0x1d0] sm:$0xf]
    %v1569 = vld [vmem:[#allocation3 + $0x1d4] sm:$0xff]
    %v1570 = vld [vmem:[#allocation3 + $0x1dc] sm:$0xff]
    %v1571 = vld [vmem:[#allocation3 + $0x1e4] sm:$0xff]
    %v1572 = vld [vmem:[#allocation3 + $0x1ec] sm:$0xff]
    %v1573 = vld [vmem:[#allocation3 + $0x1f4] sm:$0xf]
    %v1574 = vld [vmem:[#allocation3 + $0x1f8] sm:$0xff]
    %v1575 = vld [vmem:[#allocation3 + $0x200] sm:$0xff]
    %v1576 = vld [vmem:[#allocation3 + $0x208] sm:$0xff]
    %v1577 = vld [vmem:[#allocation3 + $0x210] sm:$0xff]
    %v1578 = vld [vmem:[#allocation3 + $0x218] sm:$0xf]
    %v1579 = vld [vmem:[#allocation3 + $0x21c] sm:$0xff]
    %v1580 = vld [vmem:[#allocation3 + $0x224] sm:$0xff]
    %v1581 = vld [vmem:[#allocation3 + $0x22c] sm:$0xff]
    %v1582 = vld [vmem:[#allocation3 + $0x234] sm:$0xff]
    %v1583 = vld [vmem:[#allocation3 + $0x23c] sm:$0xf]
    %v1584 = vld [vmem:[%s1] sm:$0xf]
    %v1585 = vld [vmem:[%s1 + $0x4] sm:$0xf]
    %v1586 = vld [vmem:[%s1 + $0x8] sm:$0xf]
    %v1587 = vld [vmem:[%s1 + $0xc] sm:$0xf]
    %v1588 = vld [vmem:[%s1 + $0x10] sm:$0xf]
    %v1589 = vld [vmem:[%s1 + $0x14] sm:$0xf]
    %v1590 = vld [vmem:[%s1 + $0x18] sm:$0xf]
    %v1591 = vld [vmem:[%s1 + $0x1c] sm:$0xf]
    %v1592 = vld [vmem:[%s1 + $0x20] sm:$0xf]
    %v1593 = vld [vmem:[%s1 + $0x24] sm:$0xf]
    %v1594 = vld [vmem:[%s1 + $0x28] sm:$0xf]
    %v1595 = vld [vmem:[%s1 + $0x2c] sm:$0xf]
    %v1596 = vld [vmem:[%s1 + $0x30] sm:$0xf]
    %v1597 = vld [vmem:[%s1 + $0x34] sm:$0xf]
    %v1598 = vld [vmem:[%s1 + $0x38] sm:$0xf]
    %v1599 = vld [vmem:[%s1 + $0x3c] sm:$0xf]
    %v1600 = vld [vmem:[%s1 + $0x40] sm:$0xf]
    %v1601 = vld [vmem:[%s1 + $0x44] sm:$0xf]
    %v1602 = vld [vmem:[%s1 + $0x48] sm:$0xf]
    %v1603 = vld [vmem:[%s1 + $0x4c] sm:$0xf]
    %v1604 = vld [vmem:[%s1 + $0x50] sm:$0xf]
    %v1605 = vld [vmem:[%s1 + $0x54] sm:$0xf]
    %v1606 = vld [vmem:[%s1 + $0x58] sm:$0xf]
    %v1607 = vld [vmem:[%s1 + $0x5c] sm:$0xf]
    %v1608 = vld [vmem:[%s1 + $0x60] sm:$0xf]
    %v1609 = vld [vmem:[%s1 + $0x64] sm:$0xf]
    %v1610 = vld [vmem:[%s1 + $0x68] sm:$0xf]
    %v1611 = vld [vmem:[%s1 + $0x6c] sm:$0xf]
    %v1612 = vld [vmem:[%s1 + $0x70] sm:$0xf]
    %v1613 = vld [vmem:[%s1 + $0x74] sm:$0xf]
    %v1614 = vld [vmem:[%s1 + $0x78] sm:$0xf]
    %v1615 = vld [vmem:[%s1 + $0x7c] sm:$0xf]
    %v1616 = vld [vmem:[%s1 + $0x80] sm:$0xf]
    %v1617 = vld [vmem:[%s1 + $0x84] sm:$0xf]
    %v1618 = vld [vmem:[%s1 + $0x88] sm:$0xf]
    %v1619 = vld [vmem:[%s1 + $0x8c] sm:$0xf]
    %v1620 = vld [vmem:[%s1 + $0x90] sm:$0xf]
    %v1621 = vld [vmem:[%s1 + $0x94] sm:$0xf]
    %v1622 = vld [vmem:[%s1 + $0x98] sm:$0xf]
    %v1623 = vld [vmem:[%s1 + $0x9c] sm:$0xf]
    %v1624 = vld [vmem:[%s1 + $0xa0] sm:$0xf]
    %v1625 = vld [vmem:[%s1 + $0xa4] sm:$0xf]
    %v1626 = vld [vmem:[%s1 + $0xa8] sm:$0xf]
    %v1627 = vld [vmem:[%s1 + $0xac] sm:$0xf]
    %v1628 = vld [vmem:[%s1 + $0xb0] sm:$0xf]
    %v1629 = vld [vmem:[%s1 + $0xb4] sm:$0xf]
    %v1630 = vld [vmem:[%s1 + $0xb8] sm:$0xf]
    %v1631 = vld [vmem:[%s1 + $0xbc] sm:$0xf]
    %v1632 = vld [vmem:[%s1 + $0xc0] sm:$0xf]
    %v1633 = vld [vmem:[%s1 + $0xc4] sm:$0xf]
    %v1634 = vld [vmem:[%s1 + $0xc8] sm:$0xf]
    %v1635 = vld [vmem:[%s1 + $0xcc] sm:$0xf]
    %v1636 = vld [vmem:[%s1 + $0xd0] sm:$0xf]
    %v1637 = vld [vmem:[%s1 + $0xd4] sm:$0xf]
    %v1638 = vld [vmem:[%s1 + $0xd8] sm:$0xf]
    %v1639 = vld [vmem:[%s1 + $0xdc] sm:$0xf]
    %v1640 = vld [vmem:[%s1 + $0xe0] sm:$0xf]
    %v1641 = vld [vmem:[%s1 + $0xe4] sm:$0xf]
    %v1642 = vld [vmem:[%s1 + $0xe8] sm:$0xf]
    %v1643 = vld [vmem:[%s1 + $0xec] sm:$0xf]
    %v1644 = vld [vmem:[%s1 + $0xf0] sm:$0xf]
    %v1645 = vld [vmem:[%s1 + $0xf4] sm:$0xf]
    %v1646 = vld [vmem:[%s1 + $0xf8] sm:$0xf]
    %v1647 = vld [vmem:[%s1 + $0xfc] sm:$0xf]
    %v1648 = vld [vmem:[%s1 + $0x100] sm:$0xf]
    %v1649 = vld [vmem:[%s1 + $0x104] sm:$0xf]
    %v1650 = vld [vmem:[%s1 + $0x108] sm:$0xf]
    %v1651 = vld [vmem:[%s1 + $0x10c] sm:$0xf]
    %v1652 = vld [vmem:[%s1 + $0x110] sm:$0xf]
    %v1653 = vld [vmem:[%s1 + $0x114] sm:$0xf]
    %v1654 = vld [vmem:[%s1 + $0x118] sm:$0xf]
    %v1655 = vld [vmem:[%s1 + $0x11c] sm:$0xf]
    %v1656 = vld [vmem:[%s1 + $0x120] sm:$0xf]
    %v1657 = vld [vmem:[%s1 + $0x124] sm:$0xf]
    %v1658 = vld [vmem:[%s1 + $0x128] sm:$0xf]
    %v1659 = vld [vmem:[%s1 + $0x12c] sm:$0xf]
    %v1660 = vld [vmem:[%s1 + $0x130] sm:$0xf]
    %v1661 = vld [vmem:[%s1 + $0x134] sm:$0xf]
    %v1662 = vld [vmem:[%s1 + $0x138] sm:$0xf]
    %v1663 = vld [vmem:[%s1 + $0x13c] sm:$0xf]
    %v1664 = vld [vmem:[%s1 + $0x140] sm:$0xf]
    %v1665 = vld [vmem:[%s1 + $0x144] sm:$0xf]
    %v1666 = vld [vmem:[%s1 + $0x148] sm:$0xf]
    %v1667 = vld [vmem:[%s1 + $0x14c] sm:$0xf]
    %v1668 = vld [vmem:[%s1 + $0x150] sm:$0xf]
    %v1669 = vld [vmem:[%s1 + $0x154] sm:$0xf]
    %v1670 = vld [vmem:[%s1 + $0x158] sm:$0xf]
    %v1671 = vld [vmem:[%s1 + $0x15c] sm:$0xf]
    %v1672 = vld [vmem:[%s1 + $0x160] sm:$0xf]
    %v1673 = vld [vmem:[%s1 + $0x164] sm:$0xf]
    %v1674 = vld [vmem:[%s1 + $0x168] sm:$0xf]
    %v1675 = vld [vmem:[%s1 + $0x16c] sm:$0xf]
    %v1676 = vld [vmem:[%s1 + $0x170] sm:$0xf]
    %v1677 = vld [vmem:[%s1 + $0x174] sm:$0xf]
    %v1678 = vld [vmem:[%s1 + $0x178] sm:$0xf]
    %v1679 = vld [vmem:[%s1 + $0x17c] sm:$0xf]
    %v1680 = vld [vmem:[%s1 + $0x180] sm:$0xf]
    %v1681 = vld [vmem:[%s1 + $0x184] sm:$0xf]
    %v1682 = vld [vmem:[%s1 + $0x188] sm:$0xf]
    %v1683 = vld [vmem:[%s1 + $0x18c] sm:$0xf]
    %v1684 = vld [vmem:[%s1 + $0x190] sm:$0xf]
    %v1685 = vld [vmem:[%s1 + $0x194] sm:$0xf]
    %v1686 = vld [vmem:[%s1 + $0x198] sm:$0xf]
    %v1687 = vld [vmem:[%s1 + $0x19c] sm:$0xf]
    %v1688 = vld [vmem:[%s1 + $0x1a0] sm:$0xf]
    %v1689 = vld [vmem:[%s1 + $0x1a4] sm:$0xf]
    %v1690 = vld [vmem:[%s1 + $0x1a8] sm:$0xf]
    %v1691 = vld [vmem:[%s1 + $0x1ac] sm:$0xf]
    %v1692 = vld [vmem:[%s1 + $0x1b0] sm:$0xf]
    %v1693 = vld [vmem:[%s1 + $0x1b4] sm:$0xf]
    %v1694 = vld [vmem:[%s1 + $0x1b8] sm:$0xf]
    %v1695 = vld [vmem:[%s1 + $0x1bc] sm:$0xf]
    %v1696 = vld [vmem:[%s1 + $0x1c0] sm:$0xf]
    %v1697 = vld [vmem:[%s1 + $0x1c4] sm:$0xf]
    %v1698 = vld [vmem:[%s1 + $0x1c8] sm:$0xf]
    %v1699 = vld [vmem:[%s1 + $0x1cc] sm:$0xf]
    %v1700 = vld [vmem:[%s1 + $0x1d0] sm:$0xf]
    %v1701 = vld [vmem:[%s1 + $0x1d4] sm:$0xf]
    %v1702 = vld [vmem:[%s1 + $0x1d8] sm:$0xf]
    %v1703 = vld [vmem:[%s1 + $0x1dc] sm:$0xf]
    %v1704 = vld [vmem:[%s1 + $0x1e0] sm:$0xf]
    %v1705 = vld [vmem:[%s1 + $0x1e4] sm:$0xf]
    %v1706 = vld [vmem:[%s1 + $0x1e8] sm:$0xf]
    %v1707 = vld [vmem:[%s1 + $0x1ec] sm:$0xf]
    %v1708 = vld [vmem:[%s1 + $0x1f0] sm:$0xf]
    %v1709 = vld [vmem:[%s1 + $0x1f4] sm:$0xf]
    %v1710 = vld [vmem:[%s1 + $0x1f8] sm:$0xf]
    %v1711 = vld [vmem:[%s1 + $0x1fc] sm:$0xf]
    %v1712 = vld [vmem:[%s1 + $0x200] sm:$0xf]
    %v1713 = vld [vmem:[%s1 + $0x204] sm:$0xf]
    %v1714 = vld [vmem:[%s1 + $0x208] sm:$0xf]
    %v1715 = vld [vmem:[%s1 + $0x20c] sm:$0xf]
    %v1716 = vld [vmem:[%s1 + $0x210] sm:$0xf]
    %v1717 = vld [vmem:[%s1 + $0x214] sm:$0xf]
    %v1718 = vld [vmem:[%s1 + $0x218] sm:$0xf]
    %v1719 = vld [vmem:[%s1 + $0x21c] sm:$0xf]
    %v1720 = vld [vmem:[%s1 + $0x220] sm:$0xf]
    %v1721 = vld [vmem:[%s1 + $0x224] sm:$0xf]
    %v1722 = vld [vmem:[%s1 + $0x228] sm:$0xf]
    %v1723 = vld [vmem:[%s1 + $0x22c] sm:$0xf]
    %v1724 = vld [vmem:[%s1 + $0x230] sm:$0xf]
    %v1725 = vld [vmem:[%s1 + $0x234] sm:$0xf]
    %v1726 = vld [vmem:[%s1 + $0x238] sm:$0xf]
    %v1727 = vld [vmem:[%s1 + $0x23c] sm:$0xf]
    %v1808 = vunpack.c.l.b16 %v1504
    %v1809 = vunpack.c.h.b16 %v1504
    %v1810 = vunpack.c.l.b16 %v1505
    %v1811 = vunpack.c.h.b16 %v1505
    %v1812 = vunpack.c.l.b16 %v1506
    %v1813 = vunpack.c.h.b16 %v1506
    %v1814 = vunpack.c.l.b16 %v1507
    %v1815 = vunpack.c.h.b16 %v1507
    %v1816 = vunpack.c.l.b16 %v1508
    %v1817 = vunpack.c.l.b16 %v1509
    %v1818 = vunpack.c.h.b16 %v1509
    %v1819 = vunpack.c.l.b16 %v1510
    %v1820 = vunpack.c.h.b16 %v1510
    %v1821 = vunpack.c.l.b16 %v1511
    %v1822 = vunpack.c.h.b16 %v1511
    %v1823 = vunpack.c.l.b16 %v1512
    %v1824 = vunpack.c.h.b16 %v1512
    %v1825 = vunpack.c.l.b16 %v1513
    %v1826 = vunpack.c.l.b16 %v1514
    %v1827 = vunpack.c.h.b16 %v1514
    %v1828 = vunpack.c.l.b16 %v1515
    %v1829 = vunpack.c.h.b16 %v1515
    %v1830 = vunpack.c.l.b16 %v1516
    %v1831 = vunpack.c.h.b16 %v1516
    %v1832 = vunpack.c.l.b16 %v1517
    %v1833 = vunpack.c.h.b16 %v1517
    %v1834 = vunpack.c.l.b16 %v1518
    %v1835 = vunpack.c.l.b16 %v1519
    %v1836 = vunpack.c.h.b16 %v1519
    %v1837 = vunpack.c.l.b16 %v1520
    %v1838 = vunpack.c.h.b16 %v1520
    %v1839 = vunpack.c.l.b16 %v1521
    %v1840 = vunpack.c.h.b16 %v1521
    %v1841 = vunpack.c.l.b16 %v1522
    %v1842 = vunpack.c.h.b16 %v1522
    %v1843 = vunpack.c.l.b16 %v1523
    %v1844 = vunpack.c.l.b16 %v1524
    %v1845 = vunpack.c.h.b16 %v1524
    %v1846 = vunpack.c.l.b16 %v1525
    %v1847 = vunpack.c.h.b16 %v1525
    %v1848 = vunpack.c.l.b16 %v1526
    %v1849 = vunpack.c.h.b16 %v1526
    %v1850 = vunpack.c.l.b16 %v1527
    %v1851 = vunpack.c.h.b16 %v1527
    %v1852 = vunpack.c.l.b16 %v1528
    %v1853 = vunpack.c.l.b16 %v1529
    %v1854 = vunpack.c.h.b16 %v1529
    %v1855 = vunpack.c.l.b16 %v1530
    %v1856 = vunpack.c.h.b16 %v1530
    %v1857 = vunpack.c.l.b16 %v1531
    %v1858 = vunpack.c.h.b16 %v1531
    %v1859 = vunpack.c.l.b16 %v1532
    %v1860 = vunpack.c.h.b16 %v1532
    %v1861 = vunpack.c.l.b16 %v1533
    %v1862 = vunpack.c.l.b16 %v1534
    %v1863 = vunpack.c.h.b16 %v1534
    %v1864 = vunpack.c.l.b16 %v1535
    %v1865 = vunpack.c.h.b16 %v1535
    %v1866 = vunpack.c.l.b16 %v1536
    %v1867 = vunpack.c.h.b16 %v1536
    %v1868 = vunpack.c.l.b16 %v1537
    %v1869 = vunpack.c.h.b16 %v1537
    %v1870 = vunpack.c.l.b16 %v1538
    %v1871 = vunpack.c.l.b16 %v1539
    %v1872 = vunpack.c.h.b16 %v1539
    %v1873 = vunpack.c.l.b16 %v1540
    %v1874 = vunpack.c.h.b16 %v1540
    %v1875 = vunpack.c.l.b16 %v1541
    %v1876 = vunpack.c.h.b16 %v1541
    %v1877 = vunpack.c.l.b16 %v1542
    %v1878 = vunpack.c.h.b16 %v1542
    %v1879 = vunpack.c.l.b16 %v1543
    %v1880 = vunpack.c.l.b16 %v1544
    %v1881 = vunpack.c.h.b16 %v1544
    %v1882 = vunpack.c.l.b16 %v1545
    %v1883 = vunpack.c.h.b16 %v1545
    %v1884 = vunpack.c.l.b16 %v1546
    %v1885 = vunpack.c.h.b16 %v1546
    %v1886 = vunpack.c.l.b16 %v1547
    %v1887 = vunpack.c.h.b16 %v1547
    %v1888 = vunpack.c.l.b16 %v1548
    %v1889 = vunpack.c.l.b16 %v1549
    %v1890 = vunpack.c.h.b16 %v1549
    %v1891 = vunpack.c.l.b16 %v1550
    %v1892 = vunpack.c.h.b16 %v1550
    %v1893 = vunpack.c.l.b16 %v1551
    %v1894 = vunpack.c.h.b16 %v1551
    %v1895 = vunpack.c.l.b16 %v1552
    %v1896 = vunpack.c.h.b16 %v1552
    %v1897 = vunpack.c.l.b16 %v1553
    %v1898 = vunpack.c.l.b16 %v1554
    %v1899 = vunpack.c.h.b16 %v1554
    %v1900 = vunpack.c.l.b16 %v1555
    %v1901 = vunpack.c.h.b16 %v1555
    %v1902 = vunpack.c.l.b16 %v1556
    %v1903 = vunpack.c.h.b16 %v1556
    %v1904 = vunpack.c.l.b16 %v1557
    %v1905 = vunpack.c.h.b16 %v1557
    %v1906 = vunpack.c.l.b16 %v1558
    %v1907 = vunpack.c.l.b16 %v1559
    %v1908 = vunpack.c.h.b16 %v1559
    %v1909 = vunpack.c.l.b16 %v1560
    %v1910 = vunpack.c.h.b16 %v1560
    %v1911 = vunpack.c.l.b16 %v1561
    %v1912 = vunpack.c.h.b16 %v1561
    %v1913 = vunpack.c.l.b16 %v1562
    %v1914 = vunpack.c.h.b16 %v1562
    %v1915 = vunpack.c.l.b16 %v1563
    %v1916 = vunpack.c.l.b16 %v1564
    %v1917 = vunpack.c.h.b16 %v1564
    %v1918 = vunpack.c.l.b16 %v1565
    %v1919 = vunpack.c.h.b16 %v1565
    %v1920 = vunpack.c.l.b16 %v1566
    %v1921 = vunpack.c.h.b16 %v1566
    %v1922 = vunpack.c.l.b16 %v1567
    %v1923 = vunpack.c.h.b16 %v1567
    %v1924 = vunpack.c.l.b16 %v1568
    %v1925 = vunpack.c.l.b16 %v1569
    %v1926 = vunpack.c.h.b16 %v1569
    %v1927 = vunpack.c.l.b16 %v1570
    %v1928 = vunpack.c.h.b16 %v1570
    %v1929 = vunpack.c.l.b16 %v1571
    %v1930 = vunpack.c.h.b16 %v1571
    %v1931 = vunpack.c.l.b16 %v1572
    %v1932 = vunpack.c.h.b16 %v1572
    %v1933 = vunpack.c.l.b16 %v1573
    %v1934 = vunpack.c.l.b16 %v1574
    %v1935 = vunpack.c.h.b16 %v1574
    %v1936 = vunpack.c.l.b16 %v1575
    %v1937 = vunpack.c.h.b16 %v1575
    %v1938 = vunpack.c.l.b16 %v1576
    %v1939 = vunpack.c.h.b16 %v1576
    %v1940 = vunpack.c.l.b16 %v1577
    %v1941 = vunpack.c.h.b16 %v1577
    %v1942 = vunpack.c.l.b16 %v1578
    %v1943 = vunpack.c.l.b16 %v1579
    %v1944 = vunpack.c.h.b16 %v1579
    %v1945 = vunpack.c.l.b16 %v1580
    %v1946 = vunpack.c.h.b16 %v1580
    %v1947 = vunpack.c.l.b16 %v1581
    %v1948 = vunpack.c.h.b16 %v1581
    %v1949 = vunpack.c.l.b16 %v1582
    %v1950 = vunpack.c.h.b16 %v1582
    %v1951 = vunpack.c.l.b16 %v1583
    %v1952 = vpack.c.b16 %v1817, %v1808
    %v1953 = vpack.c.b16 %v1818, %v1809
    %v1954 = vpack.c.b16 %v1819, %v1810
    %v1955 = vpack.c.b16 %v1820, %v1811
    %v1956 = vpack.c.b16 %v1821, %v1812
    %v1957 = vpack.c.b16 %v1822, %v1813
    %v1958 = vpack.c.b16 %v1823, %v1814
    %v1959 = vpack.c.b16 %v1824, %v1815
    %v1960 = vpack.c.b16 %v1825, %v1816
    %v1961 = vpack.c.b16 %v1835, %v1826
    %v1962 = vpack.c.b16 %v1836, %v1827
    %v1963 = vpack.c.b16 %v1837, %v1828
    %v1964 = vpack.c.b16 %v1838, %v1829
    %v1965 = vpack.c.b16 %v1839, %v1830
    %v1966 = vpack.c.b16 %v1840, %v1831
    %v1967 = vpack.c.b16 %v1841, %v1832
    %v1968 = vpack.c.b16 %v1842, %v1833
    %v1969 = vpack.c.b16 %v1843, %v1834
    %v1970 = vpack.c.b16 %v1853, %v1844
    %v1971 = vpack.c.b16 %v1854, %v1845
    %v1972 = vpack.c.b16 %v1855, %v1846
    %v1973 = vpack.c.b16 %v1856, %v1847
    %v1974 = vpack.c.b16 %v1857, %v1848
    %v1975 = vpack.c.b16 %v1858, %v1849
    %v1976 = vpack.c.b16 %v1859, %v1850
    %v1977 = vpack.c.b16 %v1860, %v1851
    %v1978 = vpack.c.b16 %v1861, %v1852
    %v1979 = vpack.c.b16 %v1871, %v1862
    %v1980 = vpack.c.b16 %v1872, %v1863
    %v1981 = vpack.c.b16 %v1873, %v1864
    %v1982 = vpack.c.b16 %v1874, %v1865
    %v1983 = vpack.c.b16 %v1875, %v1866
    %v1984 = vpack.c.b16 %v1876, %v1867
    %v1985 = vpack.c.b16 %v1877, %v1868
    %v1986 = vpack.c.b16 %v1878, %v1869
    %v1987 = vpack.c.b16 %v1879, %v1870
    %v1988 = vpack.c.b16 %v1889, %v1880
    %v1989 = vpack.c.b16 %v1890, %v1881
    %v1990 = vpack.c.b16 %v1891, %v1882
    %v1991 = vpack.c.b16 %v1892, %v1883
    %v1992 = vpack.c.b16 %v1893, %v1884
    %v1993 = vpack.c.b16 %v1894, %v1885
    %v1994 = vpack.c.b16 %v1895, %v1886
    %v1995 = vpack.c.b16 %v1896, %v1887
    %v1996 = vpack.c.b16 %v1897, %v1888
    %v1997 = vpack.c.b16 %v1907, %v1898
    %v1998 = vpack.c.b16 %v1908, %v1899
    %v1999 = vpack.c.b16 %v1909, %v1900
    %v2000 = vpack.c.b16 %v1910, %v1901
    %v2001 = vpack.c.b16 %v1911, %v1902
    %v2002 = vpack.c.b16 %v1912, %v1903
    %v2003 = vpack.c.b16 %v1913, %v1904
    %v2004 = vpack.c.b16 %v1914, %v1905
    %v2005 = vpack.c.b16 %v1915, %v1906
    %v2006 = vpack.c.b16 %v1925, %v1916
    %v2007 = vpack.c.b16 %v1926, %v1917
    %v2008 = vpack.c.b16 %v1927, %v1918
    %v2009 = vpack.c.b16 %v1928, %v1919
    %v2010 = vpack.c.b16 %v1929, %v1920
    %v2011 = vpack.c.b16 %v1930, %v1921
    %v2012 = vpack.c.b16 %v1931, %v1922
    %v2013 = vpack.c.b16 %v1932, %v1923
    %v2014 = vpack.c.b16 %v1933, %v1924
    %v2015 = vpack.c.b16 %v1943, %v1934
    %v2016 = vpack.c.b16 %v1944, %v1935
    %v2017 = vpack.c.b16 %v1945, %v1936
    %v2018 = vpack.c.b16 %v1946, %v1937
    %v2019 = vpack.c.b16 %v1947, %v1938
    %v2020 = vpack.c.b16 %v1948, %v1939
    %v2021 = vpack.c.b16 %v1949, %v1940
    %v2022 = vpack.c.b16 %v1950, %v1941
    %v2023 = vpack.c.b16 %v1951, %v1942
    %v2240 = vunpack.c.l.b16 %v1584
    %v2241 = vunpack.c.l.b16 %v1585
    %v2242 = vunpack.c.l.b16 %v1586
    %v2243 = vunpack.c.l.b16 %v1587
    %v2244 = vunpack.c.l.b16 %v1588
    %v2245 = vunpack.c.l.b16 %v1589
    %v2246 = vunpack.c.l.b16 %v1590
    %v2247 = vunpack.c.l.b16 %v1591
    %v2248 = vunpack.c.l.b16 %v1592
    %v2249 = vunpack.c.l.b16 %v1593
    %v2250 = vunpack.c.l.b16 %v1594
    %v2251 = vunpack.c.l.b16 %v1595
    %v2252 = vunpack.c.l.b16 %v1596
    %v2253 = vunpack.c.l.b16 %v1597
    %v2254 = vunpack.c.l.b16 %v1598
    %v2255 = vunpack.c.l.b16 %v1599
    %v2256 = vunpack.c.l.b16 %v1600
    %v2257 = vunpack.c.l.b16 %v1601
    %v2258 = vunpack.c.l.b16 %v1602
    %v2259 = vunpack.c.l.b16 %v1603
    %v2260 = vunpack.c.l.b16 %v1604
    %v2261 = vunpack.c.l.b16 %v1605
    %v2262 = vunpack.c.l.b16 %v1606
    %v2263 = vunpack.c.l.b16 %v1607
    %v2264 = vunpack.c.l.b16 %v1608
    %v2265 = vunpack.c.l.b16 %v1609
    %v2266 = vunpack.c.l.b16 %v1610
    %v2267 = vunpack.c.l.b16 %v1611
    %v2268 = vunpack.c.l.b16 %v1612
    %v2269 = vunpack.c.l.b16 %v1613
    %v2270 = vunpack.c.l.b16 %v1614
    %v2271 = vunpack.c.l.b16 %v1615
    %v2272 = vunpack.c.l.b16 %v1616
    %v2273 = vunpack.c.l.b16 %v1617
    %v2274 = vunpack.c.l.b16 %v1618
    %v2275 = vunpack.c.l.b16 %v1619
    %v2276 = vunpack.c.l.b16 %v1620
    %v2277 = vunpack.c.l.b16 %v1621
    %v2278 = vunpack.c.l.b16 %v1622
    %v2279 = vunpack.c.l.b16 %v1623
    %v2280 = vunpack.c.l.b16 %v1624
    %v2281 = vunpack.c.l.b16 %v1625
    %v2282 = vunpack.c.l.b16 %v1626
    %v2283 = vunpack.c.l.b16 %v1627
    %v2284 = vunpack.c.l.b16 %v1628
    %v2285 = vunpack.c.l.b16 %v1629
    %v2286 = vunpack.c.l.b16 %v1630
    %v2287 = vunpack.c.l.b16 %v1631
    %v2288 = vunpack.c.l.b16 %v1632
    %v2289 = vunpack.c.l.b16 %v1633
    %v2290 = vunpack.c.l.b16 %v1634
    %v2291 = vunpack.c.l.b16 %v1635
    %v2292 = vunpack.c.l.b16 %v1636
    %v2293 = vunpack.c.l.b16 %v1637
    %v2294 = vunpack.c.l.b16 %v1638
    %v2295 = vunpack.c.l.b16 %v1639
    %v2296 = vunpack.c.l.b16 %v1640
    %v2297 = vunpack.c.l.b16 %v1641
    %v2298 = vunpack.c.l.b16 %v1642
    %v2299 = vunpack.c.l.b16 %v1643
    %v2300 = vunpack.c.l.b16 %v1644
    %v2301 = vunpack.c.l.b16 %v1645
    %v2302 = vunpack.c.l.b16 %v1646
    %v2303 = vunpack.c.l.b16 %v1647
    %v2304 = vunpack.c.l.b16 %v1648
    %v2305 = vunpack.c.l.b16 %v1649
    %v2306 = vunpack.c.l.b16 %v1650
    %v2307 = vunpack.c.l.b16 %v1651
    %v2308 = vunpack.c.l.b16 %v1652
    %v2309 = vunpack.c.l.b16 %v1653
    %v2310 = vunpack.c.l.b16 %v1654
    %v2311 = vunpack.c.l.b16 %v1655
    %v2312 = vunpack.c.l.b16 %v1656
    %v2313 = vunpack.c.l.b16 %v1657
    %v2314 = vunpack.c.l.b16 %v1658
    %v2315 = vunpack.c.l.b16 %v1659
    %v2316 = vunpack.c.l.b16 %v1660
    %v2317 = vunpack.c.l.b16 %v1661
    %v2318 = vunpack.c.l.b16 %v1662
    %v2319 = vunpack.c.l.b16 %v1663
    %v2320 = vunpack.c.l.b16 %v1664
    %v2321 = vunpack.c.l.b16 %v1665
    %v2322 = vunpack.c.l.b16 %v1666
    %v2323 = vunpack.c.l.b16 %v1667
    %v2324 = vunpack.c.l.b16 %v1668
    %v2325 = vunpack.c.l.b16 %v1669
    %v2326 = vunpack.c.l.b16 %v1670
    %v2327 = vunpack.c.l.b16 %v1671
    %v2328 = vunpack.c.l.b16 %v1672
    %v2329 = vunpack.c.l.b16 %v1673
    %v2330 = vunpack.c.l.b16 %v1674
    %v2331 = vunpack.c.l.b16 %v1675
    %v2332 = vunpack.c.l.b16 %v1676
    %v2333 = vunpack.c.l.b16 %v1677
    %v2334 = vunpack.c.l.b16 %v1678
    %v2335 = vunpack.c.l.b16 %v1679
    %v2336 = vunpack.c.l.b16 %v1680
    %v2337 = vunpack.c.l.b16 %v1681
    %v2338 = vunpack.c.l.b16 %v1682
    %v2339 = vunpack.c.l.b16 %v1683
    %v2340 = vunpack.c.l.b16 %v1684
    %v2341 = vunpack.c.l.b16 %v1685
    %v2342 = vunpack.c.l.b16 %v1686
    %v2343 = vunpack.c.l.b16 %v1687
    %v2344 = vunpack.c.l.b16 %v1688
    %v2345 = vunpack.c.l.b16 %v1689
    %v2346 = vunpack.c.l.b16 %v1690
    %v2347 = vunpack.c.l.b16 %v1691
    %v2348 = vunpack.c.l.b16 %v1692
    %v2349 = vunpack.c.l.b16 %v1693
    %v2350 = vunpack.c.l.b16 %v1694
    %v2351 = vunpack.c.l.b16 %v1695
    %v2352 = vunpack.c.l.b16 %v1696
    %v2353 = vunpack.c.l.b16 %v1697
    %v2354 = vunpack.c.l.b16 %v1698
    %v2355 = vunpack.c.l.b16 %v1699
    %v2356 = vunpack.c.l.b16 %v1700
    %v2357 = vunpack.c.l.b16 %v1701
    %v2358 = vunpack.c.l.b16 %v1702
    %v2359 = vunpack.c.l.b16 %v1703
    %v2360 = vunpack.c.l.b16 %v1704
    %v2361 = vunpack.c.l.b16 %v1705
    %v2362 = vunpack.c.l.b16 %v1706
    %v2363 = vunpack.c.l.b16 %v1707
    %v2364 = vunpack.c.l.b16 %v1708
    %v2365 = vunpack.c.l.b16 %v1709
    %v2366 = vunpack.c.l.b16 %v1710
    %v2367 = vunpack.c.l.b16 %v1711
    %v2368 = vunpack.c.l.b16 %v1712
    %v2369 = vunpack.c.l.b16 %v1713
    %v2370 = vunpack.c.l.b16 %v1714
    %v2371 = vunpack.c.l.b16 %v1715
    %v2372 = vunpack.c.l.b16 %v1716
    %v2373 = vunpack.c.l.b16 %v1717
    %v2374 = vunpack.c.l.b16 %v1718
    %v2375 = vunpack.c.l.b16 %v1719
    %v2376 = vunpack.c.l.b16 %v1720
    %v2377 = vunpack.c.l.b16 %v1721
    %v2378 = vunpack.c.l.b16 %v1722
    %v2379 = vunpack.c.l.b16 %v1723
    %v2380 = vunpack.c.l.b16 %v1724
    %v2381 = vunpack.c.l.b16 %v1725
    %v2382 = vunpack.c.l.b16 %v1726
    %v2383 = vunpack.c.l.b16 %v1727
    %v2384 = vpack.c.b16 %v2241, %v2240
    %v2385 = vpack.c.b16 %v2243, %v2242
    %v2386 = vpack.c.b16 %v2245, %v2244
    %v2387 = vpack.c.b16 %v2247, %v2246
    %v2388 = vpack.c.b16 %v2249, %v2248
    %v2389 = vpack.c.b16 %v2251, %v2250
    %v2390 = vpack.c.b16 %v2253, %v2252
    %v2391 = vpack.c.b16 %v2255, %v2254
    %v2392 = vpack.c.b16 %v2257, %v2256
    %v2393 = vpack.c.b16 %v2259, %v2258
    %v2394 = vpack.c.b16 %v2261, %v2260
    %v2395 = vpack.c.b16 %v2263, %v2262
    %v2396 = vpack.c.b16 %v2265, %v2264
    %v2397 = vpack.c.b16 %v2267, %v2266
    %v2398 = vpack.c.b16 %v2269, %v2268
    %v2399 = vpack.c.b16 %v2271, %v2270
    %v2400 = vpack.c.b16 %v2273, %v2272
    %v2401 = vpack.c.b16 %v2275, %v2274
    %v2402 = vpack.c.b16 %v2277, %v2276
    %v2403 = vpack.c.b16 %v2279, %v2278
    %v2404 = vpack.c.b16 %v2281, %v2280
    %v2405 = vpack.c.b16 %v2283, %v2282
    %v2406 = vpack.c.b16 %v2285, %v2284
    %v2407 = vpack.c.b16 %v2287, %v2286
    %v2408 = vpack.c.b16 %v2289, %v2288
    %v2409 = vpack.c.b16 %v2291, %v2290
    %v2410 = vpack.c.b16 %v2293, %v2292
    %v2411 = vpack.c.b16 %v2295, %v2294
    %v2412 = vpack.c.b16 %v2297, %v2296
    %v2413 = vpack.c.b16 %v2299, %v2298
    %v2414 = vpack.c.b16 %v2301, %v2300
    %v2415 = vpack.c.b16 %v2303, %v2302
    %v2416 = vpack.c.b16 %v2305, %v2304
    %v2417 = vpack.c.b16 %v2307, %v2306
    %v2418 = vpack.c.b16 %v2309, %v2308
    %v2419 = vpack.c.b16 %v2311, %v2310
    %v2420 = vpack.c.b16 %v2313, %v2312
    %v2421 = vpack.c.b16 %v2315, %v2314
    %v2422 = vpack.c.b16 %v2317, %v2316
    %v2423 = vpack.c.b16 %v2319, %v2318
    %v2424 = vpack.c.b16 %v2321, %v2320
    %v2425 = vpack.c.b16 %v2323, %v2322
    %v2426 = vpack.c.b16 %v2325, %v2324
    %v2427 = vpack.c.b16 %v2327, %v2326
    %v2428 = vpack.c.b16 %v2329, %v2328
    %v2429 = vpack.c.b16 %v2331, %v2330
    %v2430 = vpack.c.b16 %v2333, %v2332
    %v2431 = vpack.c.b16 %v2335, %v2334
    %v2432 = vpack.c.b16 %v2337, %v2336
    %v2433 = vpack.c.b16 %v2339, %v2338
    %v2434 = vpack.c.b16 %v2341, %v2340
    %v2435 = vpack.c.b16 %v2343, %v2342
    %v2436 = vpack.c.b16 %v2345, %v2344
    %v2437 = vpack.c.b16 %v2347, %v2346
    %v2438 = vpack.c.b16 %v2349, %v2348
    %v2439 = vpack.c.b16 %v2351, %v2350
    %v2440 = vpack.c.b16 %v2353, %v2352
    %v2441 = vpack.c.b16 %v2355, %v2354
    %v2442 = vpack.c.b16 %v2357, %v2356
    %v2443 = vpack.c.b16 %v2359, %v2358
    %v2444 = vpack.c.b16 %v2361, %v2360
    %v2445 = vpack.c.b16 %v2363, %v2362
    %v2446 = vpack.c.b16 %v2365, %v2364
    %v2447 = vpack.c.b16 %v2367, %v2366
    %v2448 = vpack.c.b16 %v2369, %v2368
    %v2449 = vpack.c.b16 %v2371, %v2370
    %v2450 = vpack.c.b16 %v2373, %v2372
    %v2451 = vpack.c.b16 %v2375, %v2374
    %v2452 = vpack.c.b16 %v2377, %v2376
    %v2453 = vpack.c.b16 %v2379, %v2378
    %v2454 = vpack.c.b16 %v2381, %v2380
    %v2455 = vpack.c.b16 %v2383, %v2382
    %2528 = vmatpush.bf16.msra.mxu0 %v2391
    %2529 = vmatpush.bf16.msra.mxu0 %v2390
    %2530 = vmatpush.bf16.msra.mxu0 %v2389
    %2531 = vmatpush.bf16.msra.mxu0 %v2388
    %2532 = vmatpush.bf16.msra.mxu0 %v2387
    %2533 = vmatpush.bf16.msra.mxu0 %v2386
    %2534 = vmatpush.bf16.msra.mxu0 %v2385
    %2535 = vmatpush.bf16.msra.mxu0 %v2384
    %2536 = vmatmul.bf16.gmra.mxu0 %v1952
    %v2537 = vpop.f32.mrf.mxu0
    %v2538 = vadd.f32 0.0, %v2537
    %v2539 = vpop.f32.mrf.mxu0
    %v2540 = vadd.f32 0.0, %v2539
    %2541 = vmatmul.bf16.gmra.mxu0 %v1961
    %v2542 = vpop.f32.mrf.mxu0
    %v2543 = vadd.f32 0.0, %v2542
    %v2544 = vpop.f32.mrf.mxu0
    %v2545 = vadd.f32 0.0, %v2544
    %2546 = vmatmul.bf16.gmra.mxu0 %v1970
    %v2547 = vpop.f32.mrf.mxu0
    %v2548 = vadd.f32 0.0, %v2547
    %v2549 = vpop.f32.mrf.mxu0
    %v2550 = vadd.f32 0.0, %v2549
    %2551 = vmatmul.bf16.gmra.mxu0 %v1979
    %v2552 = vpop.f32.mrf.mxu0
    %v2553 = vadd.f32 0.0, %v2552
    %v2554 = vpop.f32.mrf.mxu0
    %v2555 = vadd.f32 0.0, %v2554
    %2556 = vmatmul.bf16.gmra.mxu0 %v1988
    %v2557 = vpop.f32.mrf.mxu0
    %v2558 = vadd.f32 0.0, %v2557
    %v2559 = vpop.f32.mrf.mxu0
    %v2560 = vadd.f32 0.0, %v2559
    %2561 = vmatmul.bf16.gmra.mxu0 %v1997
    %v2562 = vpop.f32.mrf.mxu0
    %v2563 = vadd.f32 0.0, %v2562
    %v2564 = vpop.f32.mrf.mxu0
    %v2565 = vadd.f32 0.0, %v2564
    %2566 = vmatmul.bf16.gmra.mxu0 %v2006
    %v2567 = vpop.f32.mrf.mxu0
    %v2568 = vadd.f32 0.0, %v2567
    %v2569 = vpop.f32.mrf.mxu0
    %v2570 = vadd.f32 0.0, %v2569
    %2571 = vmatmul.bf16.gmra.mxu0 %v2015
    %v2572 = vpop.f32.mrf.mxu0
    %v2573 = vadd.f32 0.0, %v2572
    %v2574 = vpop.f32.mrf.mxu0
    %v2575 = vadd.f32 0.0, %v2574
    %2576 = vdwg.mxu0
    %2577 = vmatpush.bf16.msra.mxu0 %v2399
    %2578 = vmatpush.bf16.msra.mxu0 %v2398
    %2579 = vmatpush.bf16.msra.mxu0 %v2397
    %2580 = vmatpush.bf16.msra.mxu0 %v2396
    %2581 = vmatpush.bf16.msra.mxu0 %v2395
    %2582 = vmatpush.bf16.msra.mxu0 %v2394
    %2583 = vmatpush.bf16.msra.mxu0 %v2393
    %2584 = vmatpush.bf16.msra.mxu0 %v2392
    %2585 = vmatmul.bf16.gmra.mxu0 %v1953
    %v2586 = vpop.f32.mrf.mxu0
    %v2587 = vadd.f32 %v2538, %v2586
    %v2588 = vpop.f32.mrf.mxu0
    %v2589 = vadd.f32 %v2540, %v2588
    %2590 = vmatmul.bf16.gmra.mxu0 %v1962
    %v2591 = vpop.f32.mrf.mxu0
    %v2592 = vadd.f32 %v2543, %v2591
    %v2593 = vpop.f32.mrf.mxu0
    %v2594 = vadd.f32 %v2545, %v2593
    %2595 = vmatmul.bf16.gmra.mxu0 %v1971
    %v2596 = vpop.f32.mrf.mxu0
    %v2597 = vadd.f32 %v2548, %v2596
    %v2598 = vpop.f32.mrf.mxu0
    %v2599 = vadd.f32 %v2550, %v2598
    %2600 = vmatmul.bf16.gmra.mxu0 %v1980
    %v2601 = vpop.f32.mrf.mxu0
    %v2602 = vadd.f32 %v2553, %v2601
    %v2603 = vpop.f32.mrf.mxu0
    %v2604 = vadd.f32 %v2555, %v2603
    %2605 = vmatmul.bf16.gmra.mxu0 %v1989
    %v2606 = vpop.f32.mrf.mxu0
    %v2607 = vadd.f32 %v2558, %v2606
    %v2608 = vpop.f32.mrf.mxu0
    %v2609 = vadd.f32 %v2560, %v2608
    %2610 = vmatmul.bf16.gmra.mxu0 %v1998
    %v2611 = vpop.f32.mrf.mxu0
    %v2612 = vadd.f32 %v2563, %v2611
    %v2613 = vpop.f32.mrf.mxu0
    %v2614 = vadd.f32 %v2565, %v2613
    %2615 = vmatmul.bf16.gmra.mxu0 %v2007
    %v2616 = vpop.f32.mrf.mxu0
    %v2617 = vadd.f32 %v2568, %v2616
    %v2618 = vpop.f32.mrf.mxu0
    %v2619 = vadd.f32 %v2570, %v2618
    %2620 = vmatmul.bf16.gmra.mxu0 %v2016
    %v2621 = vpop.f32.mrf.mxu0
    %v2622 = vadd.f32 %v2573, %v2621
    %v2623 = vpop.f32.mrf.mxu0
    %v2624 = vadd.f32 %v2575, %v2623
    %2625 = vdwg.mxu0
    %2626 = vmatpush.bf16.msra.mxu0 %v2407
    %2627 = vmatpush.bf16.msra.mxu0 %v2406
    %2628 = vmatpush.bf16.msra.mxu0 %v2405
    %2629 = vmatpush.bf16.msra.mxu0 %v2404
    %2630 = vmatpush.bf16.msra.mxu0 %v2403
    %2631 = vmatpush.bf16.msra.mxu0 %v2402
    %2632 = vmatpush.bf16.msra.mxu0 %v2401
    %2633 = vmatpush.bf16.msra.mxu0 %v2400
    %2634 = vmatmul.bf16.gmra.mxu0 %v1954
    %v2635 = vpop.f32.mrf.mxu0
    %v2636 = vadd.f32 %v2587, %v2635
    %v2637 = vpop.f32.mrf.mxu0
    %v2638 = vadd.f32 %v2589, %v2637
    %2639 = vmatmul.bf16.gmra.mxu0 %v1963
    %v2640 = vpop.f32.mrf.mxu0
    %v2641 = vadd.f32 %v2592, %v2640
    %v2642 = vpop.f32.mrf.mxu0
    %v2643 = vadd.f32 %v2594, %v2642
    %2644 = vmatmul.bf16.gmra.mxu0 %v1972
    %v2645 = vpop.f32.mrf.mxu0
    %v2646 = vadd.f32 %v2597, %v2645
    %v2647 = vpop.f32.mrf.mxu0
    %v2648 = vadd.f32 %v2599, %v2647
    %2649 = vmatmul.bf16.gmra.mxu0 %v1981
    %v2650 = vpop.f32.mrf.mxu0
    %v2651 = vadd.f32 %v2602, %v2650
    %v2652 = vpop.f32.mrf.mxu0
    %v2653 = vadd.f32 %v2604, %v2652
    %2654 = vmatmul.bf16.gmra.mxu0 %v1990
    %v2655 = vpop.f32.mrf.mxu0
    %v2656 = vadd.f32 %v2607, %v2655
    %v2657 = vpop.f32.mrf.mxu0
    %v2658 = vadd.f32 %v2609, %v2657
    %2659 = vmatmul.bf16.gmra.mxu0 %v1999
    %v2660 = vpop.f32.mrf.mxu0
    %v2661 = vadd.f32 %v2612, %v2660
    %v2662 = vpop.f32.mrf.mxu0
    %v2663 = vadd.f32 %v2614, %v2662
    %2664 = vmatmul.bf16.gmra.mxu0 %v2008
    %v2665 = vpop.f32.mrf.mxu0
    %v2666 = vadd.f32 %v2617, %v2665
    %v2667 = vpop.f32.mrf.mxu0
    %v2668 = vadd.f32 %v2619, %v2667
    %2669 = vmatmul.bf16.gmra.mxu0 %v2017
    %v2670 = vpop.f32.mrf.mxu0
    %v2671 = vadd.f32 %v2622, %v2670
    %v2672 = vpop.f32.mrf.mxu0
    %v2673 = vadd.f32 %v2624, %v2672
    %2674 = vdwg.mxu0
    %2675 = vmatpush.bf16.msra.mxu0 %v2415
    %2676 = vmatpush.bf16.msra.mxu0 %v2414
    %2677 = vmatpush.bf16.msra.mxu0 %v2413
    %2678 = vmatpush.bf16.msra.mxu0 %v2412
    %2679 = vmatpush.bf16.msra.mxu0 %v2411
    %2680 = vmatpush.bf16.msra.mxu0 %v2410
    %2681 = vmatpush.bf16.msra.mxu0 %v2409
    %2682 = vmatpush.bf16.msra.mxu0 %v2408
    %2683 = vmatmul.bf16.gmra.mxu0 %v1955
    %v2684 = vpop.f32.mrf.mxu0
    %v2685 = vadd.f32 %v2636, %v2684
    %v2686 = vpop.f32.mrf.mxu0
    %v2687 = vadd.f32 %v2638, %v2686
    %2688 = vmatmul.bf16.gmra.mxu0 %v1964
    %v2689 = vpop.f32.mrf.mxu0
    %v2690 = vadd.f32 %v2641, %v2689
    %v2691 = vpop.f32.mrf.mxu0
    %v2692 = vadd.f32 %v2643, %v2691
    %2693 = vmatmul.bf16.gmra.mxu0 %v1973
    %v2694 = vpop.f32.mrf.mxu0
    %v2695 = vadd.f32 %v2646, %v2694
    %v2696 = vpop.f32.mrf.mxu0
    %v2697 = vadd.f32 %v2648, %v2696
    %2698 = vmatmul.bf16.gmra.mxu0 %v1982
    %v2699 = vpop.f32.mrf.mxu0
    %v2700 = vadd.f32 %v2651, %v2699
    %v2701 = vpop.f32.mrf.mxu0
    %v2702 = vadd.f32 %v2653, %v2701
    %2703 = vmatmul.bf16.gmra.mxu0 %v1991
    %v2704 = vpop.f32.mrf.mxu0
    %v2705 = vadd.f32 %v2656, %v2704
    %v2706 = vpop.f32.mrf.mxu0
    %v2707 = vadd.f32 %v2658, %v2706
    %2708 = vmatmul.bf16.gmra.mxu0 %v2000
    %v2709 = vpop.f32.mrf.mxu0
    %v2710 = vadd.f32 %v2661, %v2709
    %v2711 = vpop.f32.mrf.mxu0
    %v2712 = vadd.f32 %v2663, %v2711
    %2713 = vmatmul.bf16.gmra.mxu0 %v2009
    %v2714 = vpop.f32.mrf.mxu0
    %v2715 = vadd.f32 %v2666, %v2714
    %v2716 = vpop.f32.mrf.mxu0
    %v2717 = vadd.f32 %v2668, %v2716
    %2718 = vmatmul.bf16.gmra.mxu0 %v2018
    %v2719 = vpop.f32.mrf.mxu0
    %v2720 = vadd.f32 %v2671, %v2719
    %v2721 = vpop.f32.mrf.mxu0
    %v2722 = vadd.f32 %v2673, %v2721
    %2723 = vdwg.mxu0
    %2724 = vmatpush.bf16.msra.mxu0 %v2423
    %2725 = vmatpush.bf16.msra.mxu0 %v2422
    %2726 = vmatpush.bf16.msra.mxu0 %v2421
    %2727 = vmatpush.bf16.msra.mxu0 %v2420
    %2728 = vmatpush.bf16.msra.mxu0 %v2419
    %2729 = vmatpush.bf16.msra.mxu0 %v2418
    %2730 = vmatpush.bf16.msra.mxu0 %v2417
    %2731 = vmatpush.bf16.msra.mxu0 %v2416
    %2732 = vmatmul.bf16.gmra.mxu0 %v1956
    %v2733 = vpop.f32.mrf.mxu0
    %v2734 = vadd.f32 %v2685, %v2733
    %v2735 = vpop.f32.mrf.mxu0
    %v2736 = vadd.f32 %v2687, %v2735
    %2737 = vmatmul.bf16.gmra.mxu0 %v1965
    %v2738 = vpop.f32.mrf.mxu0
    %v2739 = vadd.f32 %v2690, %v2738
    %v2740 = vpop.f32.mrf.mxu0
    %v2741 = vadd.f32 %v2692, %v2740
    %2742 = vmatmul.bf16.gmra.mxu0 %v1974
    %v2743 = vpop.f32.mrf.mxu0
    %v2744 = vadd.f32 %v2695, %v2743
    %v2745 = vpop.f32.mrf.mxu0
    %v2746 = vadd.f32 %v2697, %v2745
    %2747 = vmatmul.bf16.gmra.mxu0 %v1983
    %v2748 = vpop.f32.mrf.mxu0
    %v2749 = vadd.f32 %v2700, %v2748
    %v2750 = vpop.f32.mrf.mxu0
    %v2751 = vadd.f32 %v2702, %v2750
    %2752 = vmatmul.bf16.gmra.mxu0 %v1992
    %v2753 = vpop.f32.mrf.mxu0
    %v2754 = vadd.f32 %v2705, %v2753
    %v2755 = vpop.f32.mrf.mxu0
    %v2756 = vadd.f32 %v2707, %v2755
    %2757 = vmatmul.bf16.gmra.mxu0 %v2001
    %v2758 = vpop.f32.mrf.mxu0
    %v2759 = vadd.f32 %v2710, %v2758
    %v2760 = vpop.f32.mrf.mxu0
    %v2761 = vadd.f32 %v2712, %v2760
    %2762 = vmatmul.bf16.gmra.mxu0 %v2010
    %v2763 = vpop.f32.mrf.mxu0
    %v2764 = vadd.f32 %v2715, %v2763
    %v2765 = vpop.f32.mrf.mxu0
    %v2766 = vadd.f32 %v2717, %v2765
    %2767 = vmatmul.bf16.gmra.mxu0 %v2019
    %v2768 = vpop.f32.mrf.mxu0
    %v2769 = vadd.f32 %v2720, %v2768
    %v2770 = vpop.f32.mrf.mxu0
    %v2771 = vadd.f32 %v2722, %v2770
    %2772 = vdwg.mxu0
    %2773 = vmatpush.bf16.msra.mxu0 %v2431
    %2774 = vmatpush.bf16.msra.mxu0 %v2430
    %2775 = vmatpush.bf16.msra.mxu0 %v2429
    %2776 = vmatpush.bf16.msra.mxu0 %v2428
    %2777 = vmatpush.bf16.msra.mxu0 %v2427
    %2778 = vmatpush.bf16.msra.mxu0 %v2426
    %2779 = vmatpush.bf16.msra.mxu0 %v2425
    %2780 = vmatpush.bf16.msra.mxu0 %v2424
    %2781 = vmatmul.bf16.gmra.mxu0 %v1957
    %v2782 = vpop.f32.mrf.mxu0
    %v2783 = vadd.f32 %v2734, %v2782
    %v2784 = vpop.f32.mrf.mxu0
    %v2785 = vadd.f32 %v2736, %v2784
    %2786 = vmatmul.bf16.gmra.mxu0 %v1966
    %v2787 = vpop.f32.mrf.mxu0
    %v2788 = vadd.f32 %v2739, %v2787
    %v2789 = vpop.f32.mrf.mxu0
    %v2790 = vadd.f32 %v2741, %v2789
    %2791 = vmatmul.bf16.gmra.mxu0 %v1975
    %v2792 = vpop.f32.mrf.mxu0
    %v2793 = vadd.f32 %v2744, %v2792
    %v2794 = vpop.f32.mrf.mxu0
    %v2795 = vadd.f32 %v2746, %v2794
    %2796 = vmatmul.bf16.gmra.mxu0 %v1984
    %v2797 = vpop.f32.mrf.mxu0
    %v2798 = vadd.f32 %v2749, %v2797
    %v2799 = vpop.f32.mrf.mxu0
    %v2800 = vadd.f32 %v2751, %v2799
    %2801 = vmatmul.bf16.gmra.mxu0 %v1993
    %v2802 = vpop.f32.mrf.mxu0
    %v2803 = vadd.f32 %v2754, %v2802
    %v2804 = vpop.f32.mrf.mxu0
    %v2805 = vadd.f32 %v2756, %v2804
    %2806 = vmatmul.bf16.gmra.mxu0 %v2002
    %v2807 = vpop.f32.mrf.mxu0
    %v2808 = vadd.f32 %v2759, %v2807
    %v2809 = vpop.f32.mrf.mxu0
    %v2810 = vadd.f32 %v2761, %v2809
    %2811 = vmatmul.bf16.gmra.mxu0 %v2011
    %v2812 = vpop.f32.mrf.mxu0
    %v2813 = vadd.f32 %v2764, %v2812
    %v2814 = vpop.f32.mrf.mxu0
    %v2815 = vadd.f32 %v2766, %v2814
    %2816 = vmatmul.bf16.gmra.mxu0 %v2020
    %v2817 = vpop.f32.mrf.mxu0
    %v2818 = vadd.f32 %v2769, %v2817
    %v2819 = vpop.f32.mrf.mxu0
    %v2820 = vadd.f32 %v2771, %v2819
    %2821 = vdwg.mxu0
    %2822 = vmatpush.bf16.msra.mxu0 %v2439
    %2823 = vmatpush.bf16.msra.mxu0 %v2438
    %2824 = vmatpush.bf16.msra.mxu0 %v2437
    %2825 = vmatpush.bf16.msra.mxu0 %v2436
    %2826 = vmatpush.bf16.msra.mxu0 %v2435
    %2827 = vmatpush.bf16.msra.mxu0 %v2434
    %2828 = vmatpush.bf16.msra.mxu0 %v2433
    %2829 = vmatpush.bf16.msra.mxu0 %v2432
    %2830 = vmatmul.bf16.gmra.mxu0 %v1958
    %v2831 = vpop.f32.mrf.mxu0
    %v2832 = vadd.f32 %v2783, %v2831
    %v2833 = vpop.f32.mrf.mxu0
    %v2834 = vadd.f32 %v2785, %v2833
    %2835 = vmatmul.bf16.gmra.mxu0 %v1967
    %v2836 = vpop.f32.mrf.mxu0
    %v2837 = vadd.f32 %v2788, %v2836
    %v2838 = vpop.f32.mrf.mxu0
    %v2839 = vadd.f32 %v2790, %v2838
    %2840 = vmatmul.bf16.gmra.mxu0 %v1976
    %v2841 = vpop.f32.mrf.mxu0
    %v2842 = vadd.f32 %v2793, %v2841
    %v2843 = vpop.f32.mrf.mxu0
    %v2844 = vadd.f32 %v2795, %v2843
    %2845 = vmatmul.bf16.gmra.mxu0 %v1985
    %v2846 = vpop.f32.mrf.mxu0
    %v2847 = vadd.f32 %v2798, %v2846
    %v2848 = vpop.f32.mrf.mxu0
    %v2849 = vadd.f32 %v2800, %v2848
    %2850 = vmatmul.bf16.gmra.mxu0 %v1994
    %v2851 = vpop.f32.mrf.mxu0
    %v2852 = vadd.f32 %v2803, %v2851
    %v2853 = vpop.f32.mrf.mxu0
    %v2854 = vadd.f32 %v2805, %v2853
    %2855 = vmatmul.bf16.gmra.mxu0 %v2003
    %v2856 = vpop.f32.mrf.mxu0
    %v2857 = vadd.f32 %v2808, %v2856
    %v2858 = vpop.f32.mrf.mxu0
    %v2859 = vadd.f32 %v2810, %v2858
    %2860 = vmatmul.bf16.gmra.mxu0 %v2012
    %v2861 = vpop.f32.mrf.mxu0
    %v2862 = vadd.f32 %v2813, %v2861
    %v2863 = vpop.f32.mrf.mxu0
    %v2864 = vadd.f32 %v2815, %v2863
    %2865 = vmatmul.bf16.gmra.mxu0 %v2021
    %v2866 = vpop.f32.mrf.mxu0
    %v2867 = vadd.f32 %v2818, %v2866
    %v2868 = vpop.f32.mrf.mxu0
    %v2869 = vadd.f32 %v2820, %v2868
    %2870 = vdwg.mxu0
    %2871 = vmatpush.bf16.msra.mxu0 %v2447
    %2872 = vmatpush.bf16.msra.mxu0 %v2446
    %2873 = vmatpush.bf16.msra.mxu0 %v2445
    %2874 = vmatpush.bf16.msra.mxu0 %v2444
    %2875 = vmatpush.bf16.msra.mxu0 %v2443
    %2876 = vmatpush.bf16.msra.mxu0 %v2442
    %2877 = vmatpush.bf16.msra.mxu0 %v2441
    %2878 = vmatpush.bf16.msra.mxu0 %v2440
    %2879 = vmatmul.bf16.gmra.mxu0 %v1959
    %v2880 = vpop.f32.mrf.mxu0
    %v2881 = vadd.f32 %v2832, %v2880
    %v2882 = vpop.f32.mrf.mxu0
    %v2883 = vadd.f32 %v2834, %v2882
    %2884 = vmatmul.bf16.gmra.mxu0 %v1968
    %v2885 = vpop.f32.mrf.mxu0
    %v2886 = vadd.f32 %v2837, %v2885
    %v2887 = vpop.f32.mrf.mxu0
    %v2888 = vadd.f32 %v2839, %v2887
    %2889 = vmatmul.bf16.gmra.mxu0 %v1977
    %v2890 = vpop.f32.mrf.mxu0
    %v2891 = vadd.f32 %v2842, %v2890
    %v2892 = vpop.f32.mrf.mxu0
    %v2893 = vadd.f32 %v2844, %v2892
    %2894 = vmatmul.bf16.gmra.mxu0 %v1986
    %v2895 = vpop.f32.mrf.mxu0
    %v2896 = vadd.f32 %v2847, %v2895
    %v2897 = vpop.f32.mrf.mxu0
    %v2898 = vadd.f32 %v2849, %v2897
    %2899 = vmatmul.bf16.gmra.mxu0 %v1995
    %v2900 = vpop.f32.mrf.mxu0
    %v2901 = vadd.f32 %v2852, %v2900
    %v2902 = vpop.f32.mrf.mxu0
    %v2903 = vadd.f32 %v2854, %v2902
    %2904 = vmatmul.bf16.gmra.mxu0 %v2004
    %v2905 = vpop.f32.mrf.mxu0
    %v2906 = vadd.f32 %v2857, %v2905
    %v2907 = vpop.f32.mrf.mxu0
    %v2908 = vadd.f32 %v2859, %v2907
    %2909 = vmatmul.bf16.gmra.mxu0 %v2013
    %v2910 = vpop.f32.mrf.mxu0
    %v2911 = vadd.f32 %v2862, %v2910
    %v2912 = vpop.f32.mrf.mxu0
    %v2913 = vadd.f32 %v2864, %v2912
    %2914 = vmatmul.bf16.gmra.mxu0 %v2022
    %v2915 = vpop.f32.mrf.mxu0
    %v2916 = vadd.f32 %v2867, %v2915
    %v2917 = vpop.f32.mrf.mxu0
    %v2918 = vadd.f32 %v2869, %v2917
    %2919 = vdwg.mxu0
    %2920 = vmatpush.bf16.msra.mxu0 %v2455
    %2921 = vmatpush.bf16.msra.mxu0 %v2454
    %2922 = vmatpush.bf16.msra.mxu0 %v2453
    %2923 = vmatpush.bf16.msra.mxu0 %v2452
    %2924 = vmatpush.bf16.msra.mxu0 %v2451
    %2925 = vmatpush.bf16.msra.mxu0 %v2450
    %2926 = vmatpush.bf16.msra.mxu0 %v2449
    %2927 = vmatpush.bf16.msra.mxu0 %v2448
    %2928 = vmatmul.bf16.gmra.mxu0 %v1960
    %v2929 = vpop.f32.mrf.mxu0
    %v2930 = vadd.f32 %v2881, %v2929
    %v2931 = vpop.f32.mrf.mxu0
    %v2932 = vadd.f32 %v2883, %v2931
    %2933 = vmatmul.bf16.gmra.mxu0 %v1969
    %v2934 = vpop.f32.mrf.mxu0
    %v2935 = vadd.f32 %v2886, %v2934
    %v2936 = vpop.f32.mrf.mxu0
    %v2937 = vadd.f32 %v2888, %v2936
    %2938 = vmatmul.bf16.gmra.mxu0 %v1978
    %v2939 = vpop.f32.mrf.mxu0
    %v2940 = vadd.f32 %v2891, %v2939
    %v2941 = vpop.f32.mrf.mxu0
    %v2942 = vadd.f32 %v2893, %v2941
    %2943 = vmatmul.bf16.gmra.mxu0 %v1987
    %v2944 = vpop.f32.mrf.mxu0
    %v2945 = vadd.f32 %v2896, %v2944
    %v2946 = vpop.f32.mrf.mxu0
    %v2947 = vadd.f32 %v2898, %v2946
    %2948 = vmatmul.bf16.gmra.mxu0 %v1996
    %v2949 = vpop.f32.mrf.mxu0
    %v2950 = vadd.f32 %v2901, %v2949
    %v2951 = vpop.f32.mrf.mxu0
    %v2952 = vadd.f32 %v2903, %v2951
    %2953 = vmatmul.bf16.gmra.mxu0 %v2005
    %v2954 = vpop.f32.mrf.mxu0
    %v2955 = vadd.f32 %v2906, %v2954
    %v2956 = vpop.f32.mrf.mxu0
    %v2957 = vadd.f32 %v2908, %v2956
    %2958 = vmatmul.bf16.gmra.mxu0 %v2014
    %v2959 = vpop.f32.mrf.mxu0
    %v2960 = vadd.f32 %v2911, %v2959
    %v2961 = vpop.f32.mrf.mxu0
    %v2962 = vadd.f32 %v2913, %v2961
    %2963 = vmatmul.bf16.gmra.mxu0 %v2023
    %v2964 = vpop.f32.mrf.mxu0
    %v2965 = vadd.f32 %v2916, %v2964
    %v2966 = vpop.f32.mrf.mxu0
    %v2967 = vadd.f32 %v2918, %v2966
    %2968 = vdwg.mxu0
    %v2969 = vld [vmem:[%s3] sm:$0x1]
    %v2970 = vld [vmem:[%s3 + $0x1] sm:$0x1]
    %v2971 = vadd.f32 %v2930, %v2932
    %v2972 = vadd.f32 %v2971, %v2935
    %v2973 = vadd.f32 %v2972, %v2937
    %v2974 = vadd.f32 %v2973, %v2940
    %v2975 = vadd.f32 %v2974, %v2942
    %v2976 = vadd.f32 %v2975, %v2945
    %v2977 = vadd.f32 %v2976, %v2947
    %v2978 = vadd.f32 %v2977, %v2950
    %v2979 = vadd.f32 %v2978, %v2952
    %v2980 = vadd.f32 %v2979, %v2955
    %v2981 = vadd.f32 %v2980, %v2957
    %v2982 = vadd.f32 %v2981, %v2960
    %v2983 = vadd.f32 %v2982, %v2962
    %v2984 = vadd.f32 %v2983, %v2965
    %v2985 = vadd.f32 %v2984, %v2967
    %v2986 = vrot.slane %v2985, 4
    %v2987 = vadd.f32 %v2985, %v2986
    %v2988 = vrot.slane %v2987, 2
    %v2989 = vadd.f32 %v2987, %v2988
    %v2990 = vrot.slane %v2989, 1
    %v2991 = vadd.f32 %v2989, %v2990
    %v2992 = vmul.f32 %v2930, %v2930
    %v2993 = vmul.f32 %v2932, %v2932
    %v2994 = vmul.f32 %v2935, %v2935
    %v2995 = vmul.f32 %v2937, %v2937
    %v2996 = vmul.f32 %v2940, %v2940
    %v2997 = vmul.f32 %v2942, %v2942
    %v2998 = vmul.f32 %v2945, %v2945
    %v2999 = vmul.f32 %v2947, %v2947
    %v3000 = vmul.f32 %v2950, %v2950
    %v3001 = vmul.f32 %v2952, %v2952
    %v3002 = vmul.f32 %v2955, %v2955
    %v3003 = vmul.f32 %v2957, %v2957
    %v3004 = vmul.f32 %v2960, %v2960
    %v3005 = vmul.f32 %v2962, %v2962
    %v3006 = vmul.f32 %v2965, %v2965
    %v3007 = vmul.f32 %v2967, %v2967
    %v3008 = vadd.f32 %v2992, %v2993
    %v3009 = vadd.f32 %v3008, %v2994
    %v3010 = vadd.f32 %v3009, %v2995
    %v3011 = vadd.f32 %v3010, %v2996
    %v3012 = vadd.f32 %v3011, %v2997
    %v3013 = vadd.f32 %v3012, %v2998
    %v3014 = vadd.f32 %v3013, %v2999
    %v3015 = vadd.f32 %v3014, %v3000
    %v3016 = vadd.f32 %v3015, %v3001
    %v3017 = vadd.f32 %v3016, %v3002
    %v3018 = vadd.f32 %v3017, %v3003
    %v3019 = vadd.f32 %v3018, %v3004
    %v3020 = vadd.f32 %v3019, %v3005
    %v3021 = vadd.f32 %v3020, %v3006
    %v3022 = vadd.f32 %v3021, %v3007
    %v3023 = vrot.slane %v3022, 4
    %v3024 = vadd.f32 %v3022, %v3023
    %v3025 = vrot.slane %v3024, 2
    %v3026 = vadd.f32 %v3024, %v3025
    %v3027 = vrot.slane %v3026, 1
    %v3028 = vadd.f32 %v3026, %v3027
    %v3029 = vmul.f32 %v2991, 0.0078125
    %v3030 = vmul.f32 %v3028, 0.0078125
    %v3031 = vmul.f32 %v3029, %v3029
    %v3032 = vsub.f32 %v3030, %v3031
    %v3033 = vmax.f32 %v3032, 0.0
    %v3034 = vadd.f32 %v3033, 1e-05
    %v3035 = vrsqrt.pop %v3034
    %v3036 = vmul.f32 %v3035, %v3034
    %v3037 = vmul.f32 %v3036, %v3035
    %v3038 = vmul.f32 0.5, %v3037
    %v3039 = vsub.f32 1.5, %v3038
    %v3040 = vmul.f32 %v3035, %v3039
    %vm3041 = vweird.f32 %v3034
    %vm3042 = vweird.f32 %v3035
    %vm3043 = vmor %vm3041, %vm3042
    %v3044 = vsel %vm3043, %v3035, %v3040
    %v3045 = vmul.f32 %v2969, %v3044
    %v3046 = vmul.f32 %v3029, %v3045
    %v3047 = vsub.f32 %v2970, %v3046
    %v3048 = vperm.slane %v3045, 0
    %v3049 = vmul.f32 %v2930, %v3048
    %v3050 = vmul.f32 %v2932, %v3048
    %v3051 = vmul.f32 %v2935, %v3048
    %v3052 = vmul.f32 %v2937, %v3048
    %v3053 = vmul.f32 %v2940, %v3048
    %v3054 = vmul.f32 %v2942, %v3048
    %v3055 = vmul.f32 %v2945, %v3048
    %v3056 = vmul.f32 %v2947, %v3048
    %v3057 = vmul.f32 %v2950, %v3048
    %v3058 = vmul.f32 %v2952, %v3048
    %v3059 = vmul.f32 %v2955, %v3048
    %v3060 = vmul.f32 %v2957, %v3048
    %v3061 = vmul.f32 %v2960, %v3048
    %v3062 = vmul.f32 %v2962, %v3048
    %v3063 = vmul.f32 %v2965, %v3048
    %v3064 = vmul.f32 %v2967, %v3048
    %v3065 = vperm.slane %v3047, 0
    %v3066 = vadd.f32 %v3049, %v3065
    %v3067 = vadd.f32 %v3050, %v3065
    %v3068 = vadd.f32 %v3051, %v3065
    %v3069 = vadd.f32 %v3052, %v3065
    %v3070 = vadd.f32 %v3053, %v3065
    %v3071 = vadd.f32 %v3054, %v3065
    %v3072 = vadd.f32 %v3055, %v3065
    %v3073 = vadd.f32 %v3056, %v3065
    %v3074 = vadd.f32 %v3057, %v3065
    %v3075 = vadd.f32 %v3058, %v3065
    %v3076 = vadd.f32 %v3059, %v3065
    %v3077 = vadd.f32 %v3060, %v3065
    %v3078 = vadd.f32 %v3061, %v3065
    %v3079 = vadd.f32 %v3062, %v3065
    %v3080 = vadd.f32 %v3063, %v3065
    %v3081 = vadd.f32 %v3064, %v3065
    %v3082 = vmax.f32 %v3066, 0.0
    %v3083 = vmax.f32 %v3067, 0.0
    %v3084 = vmax.f32 %v3068, 0.0
    %v3085 = vmax.f32 %v3069, 0.0
    %v3086 = vmax.f32 %v3070, 0.0
    %v3087 = vmax.f32 %v3071, 0.0
    %v3088 = vmax.f32 %v3072, 0.0
    %v3089 = vmax.f32 %v3073, 0.0
    %v3090 = vmax.f32 %v3074, 0.0
    %v3091 = vmax.f32 %v3075, 0.0
    %v3092 = vmax.f32 %v3076, 0.0
    %v3093 = vmax.f32 %v3077, 0.0
    %v3094 = vmax.f32 %v3078, 0.0
    %v3095 = vmax.f32 %v3079, 0.0
    %v3096 = vmax.f32 %v3080, 0.0
    %v3097 = vmax.f32 %v3081, 0.0
    %v3098 = vpack.c.bf16 %v3082, %v3082
    %v3099 = vpack.c.bf16 %v3083, %v3083
    %v3100 = vpack.c.bf16 %v3084, %v3084
    %v3101 = vpack.c.bf16 %v3085, %v3085
    %v3102 = vpack.c.bf16 %v3086, %v3086
    %v3103 = vpack.c.bf16 %v3087, %v3087
    %v3104 = vpack.c.bf16 %v3088, %v3088
    %v3105 = vpack.c.bf16 %v3089, %v3089
    %v3106 = vpack.c.bf16 %v3090, %v3090
    %v3107 = vpack.c.bf16 %v3091, %v3091
    %v3108 = vpack.c.bf16 %v3092, %v3092
    %v3109 = vpack.c.bf16 %v3093, %v3093
    %v3110 = vpack.c.bf16 %v3094, %v3094
    %v3111 = vpack.c.bf16 %v3095, %v3095
    %v3112 = vpack.c.bf16 %v3096, %v3096
    %v3113 = vpack.c.bf16 %v3097, %v3097
    %3114 = vst [vmem:[%s315] sm:$0xf] %v3098
    %3115 = vst [vmem:[%s315 + $0x4] sm:$0xf] %v3099
    %3116 = vst [vmem:[%s315 + $0x8] sm:$0xf] %v3100
    %3117 = vst [vmem:[%s315 + $0xc] sm:$0xf] %v3101
    %3118 = vst [vmem:[%s315 + $0x10] sm:$0xf] %v3102
    %3119 = vst [vmem:[%s315 + $0x14] sm:$0xf] %v3103
    %3120 = vst [vmem:[%s315 + $0x18] sm:$0xf] %v3104
    %3121 = vst [vmem:[%s315 + $0x1c] sm:$0xf] %v3105
    %3122 = vst [vmem:[%s315 + $0x28] sm:$0xf] %v3106
    %3123 = vst [vmem:[%s315 + $0x2c] sm:$0xf] %v3107
    %3124 = vst [vmem:[%s315 + $0x30] sm:$0xf] %v3108
    %3125 = vst [vmem:[%s315 + $0x34] sm:$0xf] %v3109
    %3126 = vst [vmem:[%s315 + $0x38] sm:$0xf] %v3110
    %3127 = vst [vmem:[%s315 + $0x3c] sm:$0xf] %v3111
    %3128 = vst [vmem:[%s315 + $0x40] sm:$0xf] %v3112
    %3129 = vst [vmem:[%s315 + $0x44] sm:$0xf] %v3113
    %v3130 = vld [vmem:[#allocation2] sm:$0xf]
    %v3131 = vld [vmem:[#allocation2 + $0x4] sm:$0xf]
    %v3132 = vld [vmem:[#allocation2 + $0x8] sm:$0xf]
    %v3133 = vld [vmem:[#allocation2 + $0xc] sm:$0xf]
    %v3134 = vld [vmem:[#allocation2 + $0x10] sm:$0xf]
    %v3135 = vld [vmem:[#allocation2 + $0x14] sm:$0xf]
    %v3136 = vld [vmem:[#allocation2 + $0x18] sm:$0xf]
    %v3137 = vld [vmem:[#allocation2 + $0x1c] sm:$0xf]
    %v3138 = vld [vmem:[#allocation2 + $0x20] sm:$0xf]
    %v3139 = vld [vmem:[#allocation2 + $0x24] sm:$0xf]
    %v3140 = vld [vmem:[#allocation2 + $0x28] sm:$0xf]
    %v3141 = vld [vmem:[#allocation2 + $0x2c] sm:$0xf]
    %v3142 = vld [vmem:[#allocation2 + $0x30] sm:$0xf]
    %v3143 = vld [vmem:[#allocation2 + $0x34] sm:$0xf]
    %v3144 = vld [vmem:[#allocation2 + $0x38] sm:$0xf]
    %v3145 = vld [vmem:[#allocation2 + $0x3c] sm:$0xf]
    %v3146 = vld [vmem:[#allocation2 + $0x40] sm:$0xf]
    %v3147 = vld [vmem:[#allocation2 + $0x44] sm:$0xf]
    %v3148 = vld [vmem:[#allocation2 + $0x48] sm:$0xf]
    %v3149 = vld [vmem:[#allocation2 + $0x4c] sm:$0xf]
    %v3170 = vunpack.c.l.b16 %v3130
    %v3171 = vunpack.c.l.b16 %v3131
    %v3172 = vunpack.c.l.b16 %v3132
    %v3173 = vunpack.c.l.b16 %v3133
    %v3174 = vunpack.c.l.b16 %v3134
    %v3175 = vunpack.c.l.b16 %v3135
    %v3176 = vunpack.c.l.b16 %v3136
    %v3177 = vunpack.c.l.b16 %v3137
    %v3178 = vunpack.c.l.b16 %v3138
    %v3179 = vunpack.c.l.b16 %v3139
    %v3180 = vunpack.c.l.b16 %v3140
    %v3181 = vunpack.c.l.b16 %v3141
    %v3182 = vunpack.c.l.b16 %v3142
    %v3183 = vunpack.c.l.b16 %v3143
    %v3184 = vunpack.c.l.b16 %v3144
    %v3185 = vunpack.c.l.b16 %v3145
    %v3186 = vunpack.c.l.b16 %v3146
    %v3187 = vunpack.c.l.b16 %v3147
    %v3188 = vunpack.c.l.b16 %v3148
    %v3189 = vunpack.c.l.b16 %v3149
    %v3190 = vpack.c.b16 %v3171, %v3170
    %v3191 = vpack.c.b16 %v3173, %v3172
    %v3192 = vpack.c.b16 %v3175, %v3174
    %v3193 = vpack.c.b16 %v3177, %v3176
    %v3194 = vpack.c.b16 %v3179, %v3178
    %v3195 = vpack.c.b16 %v3181, %v3180
    %v3196 = vpack.c.b16 %v3183, %v3182
    %v3197 = vpack.c.b16 %v3185, %v3184
    %v3198 = vpack.c.b16 %v3187, %v3186
    %v3199 = vpack.c.b16 %v3189, %v3188
    %v3201 = vshrl.u32 %v3190, 16
    %v3203 = vrot.slane %v3201, 7
    %v3204 = vshll.u32 %v3190, 16
    %v3206 = vor.u32 %v3203, %v3204
    %v3208 = vshrl.u32 %v3191, 16
    %v3210 = vrot.slane %v3208, 7
    %v3211 = vshll.u32 %v3191, 16
    %v3213 = vor.u32 %v3210, %v3211
    %v3214 = vsel %vm704, %v3203, %v3213
    %v3216 = vshrl.u32 %v3192, 16
    %v3218 = vrot.slane %v3216, 7
    %v3219 = vshll.u32 %v3192, 16
    %v3221 = vor.u32 %v3218, %v3219
    %v3222 = vsel %vm704, %v3210, %v3221
    %v3224 = vshrl.u32 %v3193, 16
    %v3226 = vrot.slane %v3224, 7
    %v3227 = vshll.u32 %v3193, 16
    %v3229 = vor.u32 %v3226, %v3227
    %v3230 = vsel %vm704, %v3218, %v3229
    %v3232 = vshrl.u32 %v3194, 16
    %v3234 = vrot.slane %v3232, 7
    %v3235 = vshll.u32 %v3194, 16
    %v3237 = vor.u32 %v3234, %v3235
    %v3238 = vsel %vm704, %v3226, %v3237
    %v3240 = vshrl.u32 %v3195, 16
    %v3242 = vrot.slane %v3240, 7
    %v3243 = vshll.u32 %v3195, 16
    %v3245 = vor.u32 %v3242, %v3243
    %v3246 = vsel %vm704, %v3234, %v3245
    %v3248 = vshrl.u32 %v3196, 16
    %v3250 = vrot.slane %v3248, 7
    %v3251 = vshll.u32 %v3196, 16
    %v3253 = vor.u32 %v3250, %v3251
    %v3254 = vsel %vm704, %v3242, %v3253
    %v3256 = vshrl.u32 %v3197, 16
    %v3258 = vrot.slane %v3256, 7
    %v3259 = vshll.u32 %v3197, 16
    %v3261 = vor.u32 %v3258, %v3259
    %v3262 = vsel %vm704, %v3250, %v3261
    %v3264 = vshrl.u32 %v3198, 16
    %v3266 = vrot.slane %v3264, 7
    %v3267 = vshll.u32 %v3198, 16
    %v3269 = vor.u32 %v3266, %v3267
    %v3270 = vsel %vm704, %v3258, %v3269
    %v3272 = vshrl.u32 %v3199, 16
    %v3274 = vrot.slane %v3272, 7
    %v3275 = vshll.u32 %v3199, 16
    %v3277 = vor.u32 %v3274, %v3275
    %v3278 = vsel %vm704, %v3266, %v3277
    %v3289 = vsel %vm795, 0, %v3206
    %v3290 = vsel %vm913, %v3289, 0
    %v3291 = vsel %vm920, %v3214, 0
    %v3292 = vsel %vm927, %v3222, 0
    %v3293 = vsel %vm934, %v3230, 0
    %v3294 = vsel %vm941, %v3238, 0
    %v3295 = vsel %vm948, %v3246, 0
    %v3296 = vsel %vm955, %v3254, 0
    %v3297 = vsel %vm962, %v3262, 0
    %v3298 = vsel %vm969, %v3270, 0
    %v3299 = vsel %vm976, %v3278, 0
    %v3300 = vrot.slane %v3204, 1
    %v3301 = vor.u32 %v3201, %v3300
    %v3302 = vrot.slane %v3211, 1
    %v3303 = vsel %vm987, %v3301, %v3302
    %v3304 = vor.u32 %v3208, %v3302
    %v3305 = vrot.slane %v3219, 1
    %v3306 = vsel %vm987, %v3304, %v3305
    %v3307 = vor.u32 %v3216, %v3305
    %v3308 = vrot.slane %v3227, 1
    %v3309 = vsel %vm987, %v3307, %v3308
    %v3310 = vor.u32 %v3224, %v3308
    %v3311 = vrot.slane %v3235, 1
    %v3312 = vsel %vm987, %v3310, %v3311
    %v3313 = vor.u32 %v3232, %v3311
    %v3314 = vrot.slane %v3243, 1
    %v3315 = vsel %vm987, %v3313, %v3314
    %v3316 = vor.u32 %v3240, %v3314
    %v3317 = vrot.slane %v3251, 1
    %v3318 = vsel %vm987, %v3316, %v3317
    %v3319 = vor.u32 %v3248, %v3317
    %v3320 = vrot.slane %v3259, 1
    %v3321 = vsel %vm987, %v3319, %v3320
    %v3322 = vor.u32 %v3256, %v3320
    %v3323 = vrot.slane %v3267, 1
    %v3324 = vsel %vm987, %v3322, %v3323
    %v3325 = vor.u32 %v3264, %v3323
    %v3326 = vrot.slane %v3275, 1
    %v3327 = vsel %vm987, %v3325, %v3326
    %v3328 = vor.u32 %v3272, %v3326
    %v3339 = vsel %vm1028, %v3328, 0
    %v3340 = vsel %vm1146, %v3303, 0
    %v3341 = vsel %vm1153, %v3306, 0
    %v3342 = vsel %vm1160, %v3309, 0
    %v3343 = vsel %vm1167, %v3312, 0
    %v3344 = vsel %vm1174, %v3315, 0
    %v3345 = vsel %vm1181, %v3318, 0
    %v3346 = vsel %vm1188, %v3321, 0
    %v3347 = vsel %vm1195, %v3324, 0
    %v3348 = vsel %vm1202, %v3327, 0
    %v3349 = vsel %vm1209, %v3339, 0
    %v3360 = vunpack.c.l.b16 %v3290
    %v3361 = vunpack.c.h.b16 %v3290
    %v3362 = vunpack.c.l.b16 %v3291
    %v3363 = vunpack.c.h.b16 %v3291
    %v3364 = vunpack.c.l.b16 %v3292
    %v3365 = vunpack.c.h.b16 %v3292
    %v3366 = vunpack.c.l.b16 %v3293
    %v3367 = vunpack.c.h.b16 %v3293
    %v3368 = vunpack.c.l.b16 %v3294
    %v3369 = vunpack.c.h.b16 %v3294
    %v3370 = vunpack.c.l.b16 %v3295
    %v3371 = vunpack.c.h.b16 %v3295
    %v3372 = vunpack.c.l.b16 %v3296
    %v3373 = vunpack.c.h.b16 %v3296
    %v3374 = vunpack.c.l.b16 %v3297
    %v3375 = vunpack.c.h.b16 %v3297
    %v3376 = vunpack.c.l.b16 %v3298
    %v3377 = vunpack.c.h.b16 %v3298
    %v3378 = vunpack.c.l.b16 %v3299
    %v3379 = vunpack.c.h.b16 %v3299
    %v3380 = vpack.c.b16 %v3360, %v3360
    %v3381 = vpack.c.b16 %v3361, %v3361
    %v3382 = vpack.c.b16 %v3362, %v3362
    %v3383 = vpack.c.b16 %v3363, %v3363
    %v3384 = vpack.c.b16 %v3364, %v3364
    %v3385 = vpack.c.b16 %v3365, %v3365
    %v3386 = vpack.c.b16 %v3366, %v3366
    %v3387 = vpack.c.b16 %v3367, %v3367
    %v3388 = vpack.c.b16 %v3368, %v3368
    %v3389 = vpack.c.b16 %v3369, %v3369
    %v3390 = vpack.c.b16 %v3370, %v3370
    %v3391 = vpack.c.b16 %v3371, %v3371
    %v3392 = vpack.c.b16 %v3372, %v3372
    %v3393 = vpack.c.b16 %v3373, %v3373
    %v3394 = vpack.c.b16 %v3374, %v3374
    %v3395 = vpack.c.b16 %v3375, %v3375
    %v3396 = vpack.c.b16 %v3376, %v3376
    %v3397 = vpack.c.b16 %v3377, %v3377
    %v3398 = vpack.c.b16 %v3378, %v3378
    %v3399 = vpack.c.b16 %v3379, %v3379
    %v3430 = vunpack.c.l.b16 %v3340
    %v3431 = vunpack.c.h.b16 %v3340
    %v3432 = vunpack.c.l.b16 %v3341
    %v3433 = vunpack.c.h.b16 %v3341
    %v3434 = vunpack.c.l.b16 %v3342
    %v3435 = vunpack.c.h.b16 %v3342
    %v3436 = vunpack.c.l.b16 %v3343
    %v3437 = vunpack.c.h.b16 %v3343
    %v3438 = vunpack.c.l.b16 %v3344
    %v3439 = vunpack.c.h.b16 %v3344
    %v3440 = vunpack.c.l.b16 %v3345
    %v3441 = vunpack.c.h.b16 %v3345
    %v3442 = vunpack.c.l.b16 %v3346
    %v3443 = vunpack.c.h.b16 %v3346
    %v3444 = vunpack.c.l.b16 %v3347
    %v3445 = vunpack.c.h.b16 %v3347
    %v3446 = vunpack.c.l.b16 %v3348
    %v3447 = vunpack.c.h.b16 %v3348
    %v3448 = vunpack.c.l.b16 %v3349
    %v3449 = vunpack.c.h.b16 %v3349
    %v3450 = vpack.c.b16 %v3430, %v3430
    %v3451 = vpack.c.b16 %v3431, %v3431
    %v3452 = vpack.c.b16 %v3432, %v3432
    %v3453 = vpack.c.b16 %v3433, %v3433
    %v3454 = vpack.c.b16 %v3434, %v3434
    %v3455 = vpack.c.b16 %v3435, %v3435
    %v3456 = vpack.c.b16 %v3436, %v3436
    %v3457 = vpack.c.b16 %v3437, %v3437
    %v3458 = vpack.c.b16 %v3438, %v3438
    %v3459 = vpack.c.b16 %v3439, %v3439
    %v3460 = vpack.c.b16 %v3440, %v3440
    %v3461 = vpack.c.b16 %v3441, %v3441
    %v3462 = vpack.c.b16 %v3442, %v3442
    %v3463 = vpack.c.b16 %v3443, %v3443
    %v3464 = vpack.c.b16 %v3444, %v3444
    %v3465 = vpack.c.b16 %v3445, %v3445
    %v3466 = vpack.c.b16 %v3446, %v3446
    %v3467 = vpack.c.b16 %v3447, %v3447
    %v3468 = vpack.c.b16 %v3448, %v3448
    %v3469 = vpack.c.b16 %v3449, %v3449
    %3490 = vst [vmem:[#allocation3] sm:$0xf] %v3380
    %3491 = vst [vmem:[#allocation3 + $0x24] sm:$0xf] %v3381
    %3492 = vst [vmem:[#allocation3 + $0x48] sm:$0xf] %v3382
    %3493 = vst [vmem:[#allocation3 + $0x6c] sm:$0xf] %v3383
    %3494 = vst [vmem:[#allocation3 + $0x90] sm:$0xf] %v3384
    %3495 = vst [vmem:[#allocation3 + $0xb4] sm:$0xf] %v3385
    %3496 = vst [vmem:[#allocation3 + $0xd8] sm:$0xf] %v3386
    %3497 = vst [vmem:[#allocation3 + $0xfc] sm:$0xf] %v3387
    %3498 = vst [vmem:[#allocation3 + $0x120] sm:$0xf] %v3390
    %3499 = vst [vmem:[#allocation3 + $0x144] sm:$0xf] %v3391
    %3500 = vst [vmem:[#allocation3 + $0x168] sm:$0xf] %v3392
    %3501 = vst [vmem:[#allocation3 + $0x18c] sm:$0xf] %v3393
    %3502 = vst [vmem:[#allocation3 + $0x1b0] sm:$0xf] %v3394
    %3503 = vst [vmem:[#allocation3 + $0x1d4] sm:$0xf] %v3395
    %3504 = vst [vmem:[#allocation3 + $0x1f8] sm:$0xf] %v3396
    %3505 = vst [vmem:[#allocation3 + $0x21c] sm:$0xf] %v3397
    %3506 = vst [vmem:[#allocation3 + $0x4] sm:$0xf] %v3130
    %3507 = vst [vmem:[#allocation3 + $0x28] sm:$0xf] %v3131
    %3508 = vst [vmem:[#allocation3 + $0x4c] sm:$0xf] %v3132
    %3509 = vst [vmem:[#allocation3 + $0x70] sm:$0xf] %v3133
    %3510 = vst [vmem:[#allocation3 + $0x94] sm:$0xf] %v3134
    %3511 = vst [vmem:[#allocation3 + $0xb8] sm:$0xf] %v3135
    %3512 = vst [vmem:[#allocation3 + $0xdc] sm:$0xf] %v3136
    %3513 = vst [vmem:[#allocation3 + $0x100] sm:$0xf] %v3137
    %3514 = vst [vmem:[#allocation3 + $0x124] sm:$0xf] %v3140
    %3515 = vst [vmem:[#allocation3 + $0x148] sm:$0xf] %v3141
    %3516 = vst [vmem:[#allocation3 + $0x16c] sm:$0xf] %v3142
    %3517 = vst [vmem:[#allocation3 + $0x190] sm:$0xf] %v3143
    %3518 = vst [vmem:[#allocation3 + $0x1b4] sm:$0xf] %v3144
    %3519 = vst [vmem:[#allocation3 + $0x1d8] sm:$0xf] %v3145
    %3520 = vst [vmem:[#allocation3 + $0x1fc] sm:$0xf] %v3146
    %3521 = vst [vmem:[#allocation3 + $0x220] sm:$0xf] %v3147
    %3522 = vst [vmem:[#allocation3 + $0x8] sm:$0xf] %v3450
    %3523 = vst [vmem:[#allocation3 + $0x2c] sm:$0xf] %v3451
    %3524 = vst [vmem:[#allocation3 + $0x50] sm:$0xf] %v3452
    %3525 = vst [vmem:[#allocation3 + $0x74] sm:$0xf] %v3453
    %3526 = vst [vmem:[#allocation3 + $0x98] sm:$0xf] %v3454
    %3527 = vst [vmem:[#allocation3 + $0xbc] sm:$0xf] %v3455
    %3528 = vst [vmem:[#allocation3 + $0xe0] sm:$0xf] %v3456
    %3529 = vst [vmem:[#allocation3 + $0x104] sm:$0xf] %v3457
    %3530 = vst [vmem:[#allocation3 + $0x128] sm:$0xf] %v3460
    %3531 = vst [vmem:[#allocation3 + $0x14c] sm:$0xf] %v3461
    %3532 = vst [vmem:[#allocation3 + $0x170] sm:$0xf] %v3462
    %3533 = vst [vmem:[#allocation3 + $0x194] sm:$0xf] %v3463
    %3534 = vst [vmem:[#allocation3 + $0x1b8] sm:$0xf] %v3464
    %3535 = vst [vmem:[#allocation3 + $0x1dc] sm:$0xf] %v3465
    %3536 = vst [vmem:[#allocation3 + $0x200] sm:$0xf] %v3466
    %3537 = vst [vmem:[#allocation3 + $0x224] sm:$0xf] %v3467
    %3538 = vst [vmem:[#allocation3 + $0xc] sm:$0xf] %v3381
    %3539 = vst [vmem:[#allocation3 + $0x30] sm:$0xf] %v3382
    %3540 = vst [vmem:[#allocation3 + $0x54] sm:$0xf] %v3383
    %3541 = vst [vmem:[#allocation3 + $0x78] sm:$0xf] %v3384
    %3542 = vst [vmem:[#allocation3 + $0x9c] sm:$0xf] %v3385
    %3543 = vst [vmem:[#allocation3 + $0xc0] sm:$0xf] %v3386
    %3544 = vst [vmem:[#allocation3 + $0xe4] sm:$0xf] %v3387
    %3545 = vst [vmem:[#allocation3 + $0x108] sm:$0xf] %v3388
    %3546 = vst [vmem:[#allocation3 + $0x12c] sm:$0xf] %v3391
    %3547 = vst [vmem:[#allocation3 + $0x150] sm:$0xf] %v3392
    %3548 = vst [vmem:[#allocation3 + $0x174] sm:$0xf] %v3393
    %3549 = vst [vmem:[#allocation3 + $0x198] sm:$0xf] %v3394
    %3550 = vst [vmem:[#allocation3 + $0x1bc] sm:$0xf] %v3395
    %3551 = vst [vmem:[#allocation3 + $0x1e0] sm:$0xf] %v3396
    %3552 = vst [vmem:[#allocation3 + $0x204] sm:$0xf] %v3397
    %3553 = vst [vmem:[#allocation3 + $0x228] sm:$0xf] %v3398
    %3554 = vst [vmem:[#allocation3 + $0x10] sm:$0xf] %v3131
    %3555 = vst [vmem:[#allocation3 + $0x34] sm:$0xf] %v3132
    %3556 = vst [vmem:[#allocation3 + $0x58] sm:$0xf] %v3133
    %3557 = vst [vmem:[#allocation3 + $0x7c] sm:$0xf] %v3134
    %3558 = vst [vmem:[#allocation3 + $0xa0] sm:$0xf] %v3135
    %3559 = vst [vmem:[#allocation3 + $0xc4] sm:$0xf] %v3136
    %3560 = vst [vmem:[#allocation3 + $0xe8] sm:$0xf] %v3137
    %3561 = vst [vmem:[#allocation3 + $0x10c] sm:$0xf] %v3138
    %3562 = vst [vmem:[#allocation3 + $0x130] sm:$0xf] %v3141
    %3563 = vst [vmem:[#allocation3 + $0x154] sm:$0xf] %v3142
    %3564 = vst [vmem:[#allocation3 + $0x178] sm:$0xf] %v3143
    %3565 = vst [vmem:[#allocation3 + $0x19c] sm:$0xf] %v3144
    %3566 = vst [vmem:[#allocation3 + $0x1c0] sm:$0xf] %v3145
    %3567 = vst [vmem:[#allocation3 + $0x1e4] sm:$0xf] %v3146
    %3568 = vst [vmem:[#allocation3 + $0x208] sm:$0xf] %v3147
    %3569 = vst [vmem:[#allocation3 + $0x22c] sm:$0xf] %v3148
    %3570 = vst [vmem:[#allocation3 + $0x14] sm:$0xf] %v3451
    %3571 = vst [vmem:[#allocation3 + $0x38] sm:$0xf] %v3452
    %3572 = vst [vmem:[#allocation3 + $0x5c] sm:$0xf] %v3453
    %3573 = vst [vmem:[#allocation3 + $0x80] sm:$0xf] %v3454
    %3574 = vst [vmem:[#allocation3 + $0xa4] sm:$0xf] %v3455
    %3575 = vst [vmem:[#allocation3 + $0xc8] sm:$0xf] %v3456
    %3576 = vst [vmem:[#allocation3 + $0xec] sm:$0xf] %v3457
    %3577 = vst [vmem:[#allocation3 + $0x110] sm:$0xf] %v3458
    %3578 = vst [vmem:[#allocation3 + $0x134] sm:$0xf] %v3461
    %3579 = vst [vmem:[#allocation3 + $0x158] sm:$0xf] %v3462
    %3580 = vst [vmem:[#allocation3 + $0x17c] sm:$0xf] %v3463
    %3581 = vst [vmem:[#allocation3 + $0x1a0] sm:$0xf] %v3464
    %3582 = vst [vmem:[#allocation3 + $0x1c4] sm:$0xf] %v3465
    %3583 = vst [vmem:[#allocation3 + $0x1e8] sm:$0xf] %v3466
    %3584 = vst [vmem:[#allocation3 + $0x20c] sm:$0xf] %v3467
    %3585 = vst [vmem:[#allocation3 + $0x230] sm:$0xf] %v3468
    %3586 = vst [vmem:[#allocation3 + $0x18] sm:$0xf] %v3382
    %3587 = vst [vmem:[#allocation3 + $0x3c] sm:$0xf] %v3383
    %3588 = vst [vmem:[#allocation3 + $0x60] sm:$0xf] %v3384
    %3589 = vst [vmem:[#allocation3 + $0x84] sm:$0xf] %v3385
    %3590 = vst [vmem:[#allocation3 + $0xa8] sm:$0xf] %v3386
    %3591 = vst [vmem:[#allocation3 + $0xcc] sm:$0xf] %v3387
    %3592 = vst [vmem:[#allocation3 + $0xf0] sm:$0xf] %v3388
    %3593 = vst [vmem:[#allocation3 + $0x114] sm:$0xf] %v3389
    %3594 = vst [vmem:[#allocation3 + $0x138] sm:$0xf] %v3392
    %3595 = vst [vmem:[#allocation3 + $0x15c] sm:$0xf] %v3393
    %3596 = vst [vmem:[#allocation3 + $0x180] sm:$0xf] %v3394
    %3597 = vst [vmem:[#allocation3 + $0x1a4] sm:$0xf] %v3395
    %3598 = vst [vmem:[#allocation3 + $0x1c8] sm:$0xf] %v3396
    %3599 = vst [vmem:[#allocation3 + $0x1ec] sm:$0xf] %v3397
    %3600 = vst [vmem:[#allocation3 + $0x210] sm:$0xf] %v3398
    %3601 = vst [vmem:[#allocation3 + $0x234] sm:$0xf] %v3399
    %3602 = vst [vmem:[#allocation3 + $0x1c] sm:$0xf] %v3132
    %3603 = vst [vmem:[#allocation3 + $0x40] sm:$0xf] %v3133
    %3604 = vst [vmem:[#allocation3 + $0x64] sm:$0xf] %v3134
    %3605 = vst [vmem:[#allocation3 + $0x88] sm:$0xf] %v3135
    %3606 = vst [vmem:[#allocation3 + $0xac] sm:$0xf] %v3136
    %3607 = vst [vmem:[#allocation3 + $0xd0] sm:$0xf] %v3137
    %3608 = vst [vmem:[#allocation3 + $0xf4] sm:$0xf] %v3138
    %3609 = vst [vmem:[#allocation3 + $0x118] sm:$0xf] %v3139
    %3610 = vst [vmem:[#allocation3 + $0x13c] sm:$0xf] %v3142
    %3611 = vst [vmem:[#allocation3 + $0x160] sm:$0xf] %v3143
    %3612 = vst [vmem:[#allocation3 + $0x184] sm:$0xf] %v3144
    %3613 = vst [vmem:[#allocation3 + $0x1a8] sm:$0xf] %v3145
    %3614 = vst [vmem:[#allocation3 + $0x1cc] sm:$0xf] %v3146
    %3615 = vst [vmem:[#allocation3 + $0x1f0] sm:$0xf] %v3147
    %3616 = vst [vmem:[#allocation3 + $0x214] sm:$0xf] %v3148
    %3617 = vst [vmem:[#allocation3 + $0x238] sm:$0xf] %v3149
    %3618 = vst [vmem:[#allocation3 + $0x20] sm:$0xf] %v3452
    %3619 = vst [vmem:[#allocation3 + $0x44] sm:$0xf] %v3453
    %3620 = vst [vmem:[#allocation3 + $0x68] sm:$0xf] %v3454
    %3621 = vst [vmem:[#allocation3 + $0x8c] sm:$0xf] %v3455
    %3622 = vst [vmem:[#allocation3 + $0xb0] sm:$0xf] %v3456
    %3623 = vst [vmem:[#allocation3 + $0xd4] sm:$0xf] %v3457
    %3624 = vst [vmem:[#allocation3 + $0xf8] sm:$0xf] %v3458
    %3625 = vst [vmem:[#allocation3 + $0x11c] sm:$0xf] %v3459
    %3626 = vst [vmem:[#allocation3 + $0x140] sm:$0xf] %v3462
    %3627 = vst [vmem:[#allocation3 + $0x164] sm:$0xf] %v3463
    %3628 = vst [vmem:[#allocation3 + $0x188] sm:$0xf] %v3464
    %3629 = vst [vmem:[#allocation3 + $0x1ac] sm:$0xf] %v3465
    %3630 = vst [vmem:[#allocation3 + $0x1d0] sm:$0xf] %v3466
    %3631 = vst [vmem:[#allocation3 + $0x1f4] sm:$0xf] %v3467
    %3632 = vst [vmem:[#allocation3 + $0x218] sm:$0xf] %v3468
    %3633 = vst [vmem:[#allocation3 + $0x23c] sm:$0xf] %v3469
    %v3634 = vld [vmem:[#allocation3] sm:$0xff]
    %v3635 = vld [vmem:[#allocation3 + $0x8] sm:$0xff]
    %v3636 = vld [vmem:[#allocation3 + $0x10] sm:$0xff]
    %v3637 = vld [vmem:[#allocation3 + $0x18] sm:$0xff]
    %v3638 = vld [vmem:[#allocation3 + $0x20] sm:$0xf]
    %v3639 = vld [vmem:[#allocation3 + $0x24] sm:$0xff]
    %v3640 = vld [vmem:[#allocation3 + $0x2c] sm:$0xff]
    %v3641 = vld [vmem:[#allocation3 + $0x34] sm:$0xff]
    %v3642 = vld [vmem:[#allocation3 + $0x3c] sm:$0xff]
    %v3643 = vld [vmem:[#allocation3 + $0x44] sm:$0xf]
    %v3644 = vld [vmem:[#allocation3 + $0x48] sm:$0xff]
    %v3645 = vld [vmem:[#allocation3 + $0x50] sm:$0xff]
    %v3646 = vld [vmem:[#allocation3 + $0x58] sm:$0xff]
    %v3647 = vld [vmem:[#allocation3 + $0x60] sm:$0xff]
    %v3648 = vld [vmem:[#allocation3 + $0x68] sm:$0xf]
    %v3649 = vld [vmem:[#allocation3 + $0x6c] sm:$0xff]
    %v3650 = vld [vmem:[#allocation3 + $0x74] sm:$0xff]
    %v3651 = vld [vmem:[#allocation3 + $0x7c] sm:$0xff]
    %v3652 = vld [vmem:[#allocation3 + $0x84] sm:$0xff]
    %v3653 = vld [vmem:[#allocation3 + $0x8c] sm:$0xf]
    %v3654 = vld [vmem:[#allocation3 + $0x90] sm:$0xff]
    %v3655 = vld [vmem:[#allocation3 + $0x98] sm:$0xff]
    %v3656 = vld [vmem:[#allocation3 + $0xa0] sm:$0xff]
    %v3657 = vld [vmem:[#allocation3 + $0xa8] sm:$0xff]
    %v3658 = vld [vmem:[#allocation3 + $0xb0] sm:$0xf]
    %v3659 = vld [vmem:[#allocation3 + $0xb4] sm:$0xff]
    %v3660 = vld [vmem:[#allocation3 + $0xbc] sm:$0xff]
    %v3661 = vld [vmem:[#allocation3 + $0xc4] sm:$0xff]
    %v3662 = vld [vmem:[#allocation3 + $0xcc] sm:$0xff]
    %v3663 = vld [vmem:[#allocation3 + $0xd4] sm:$0xf]
    %v3664 = vld [vmem:[#allocation3 + $0xd8] sm:$0xff]
    %v3665 = vld [vmem:[#allocation3 + $0xe0] sm:$0xff]
    %v3666 = vld [vmem:[#allocation3 + $0xe8] sm:$0xff]
    %v3667 = vld [vmem:[#allocation3 + $0xf0] sm:$0xff]
    %v3668 = vld [vmem:[#allocation3 + $0xf8] sm:$0xf]
    %v3669 = vld [vmem:[#allocation3 + $0xfc] sm:$0xff]
    %v3670 = vld [vmem:[#allocation3 + $0x104] sm:$0xff]
    %v3671 = vld [vmem:[#allocation3 + $0x10c] sm:$0xff]
    %v3672 = vld [vmem:[#allocation3 + $0x114] sm:$0xff]
    %v3673 = vld [vmem:[#allocation3 + $0x11c] sm:$0xf]
    %v3674 = vld [vmem:[#allocation3 + $0x120] sm:$0xff]
    %v3675 = vld [vmem:[#allocation3 + $0x128] sm:$0xff]
    %v3676 = vld [vmem:[#allocation3 + $0x130] sm:$0xff]
    %v3677 = vld [vmem:[#allocation3 + $0x138] sm:$0xff]
    %v3678 = vld [vmem:[#allocation3 + $0x140] sm:$0xf]
    %v3679 = vld [vmem:[#allocation3 + $0x144] sm:$0xff]
    %v3680 = vld [vmem:[#allocation3 + $0x14c] sm:$0xff]
    %v3681 = vld [vmem:[#allocation3 + $0x154] sm:$0xff]
    %v3682 = vld [vmem:[#allocation3 + $0x15c] sm:$0xff]
    %v3683 = vld [vmem:[#allocation3 + $0x164] sm:$0xf]
    %v3684 = vld [vmem:[#allocation3 + $0x168] sm:$0xff]
    %v3685 = vld [vmem:[#allocation3 + $0x170] sm:$0xff]
    %v3686 = vld [vmem:[#allocation3 + $0x178] sm:$0xff]
    %v3687 = vld [vmem:[#allocation3 + $0x180] sm:$0xff]
    %v3688 = vld [vmem:[#allocation3 + $0x188] sm:$0xf]
    %v3689 = vld [vmem:[#allocation3 + $0x18c] sm:$0xff]
    %v3690 = vld [vmem:[#allocation3 + $0x194] sm:$0xff]
    %v3691 = vld [vmem:[#allocation3 + $0x19c] sm:$0xff]
    %v3692 = vld [vmem:[#allocation3 + $0x1a4] sm:$0xff]
    %v3693 = vld [vmem:[#allocation3 + $0x1ac] sm:$0xf]
    %v3694 = vld [vmem:[#allocation3 + $0x1b0] sm:$0xff]
    %v3695 = vld [vmem:[#allocation3 + $0x1b8] sm:$0xff]
    %v3696 = vld [vmem:[#allocation3 + $0x1c0] sm:$0xff]
    %v3697 = vld [vmem:[#allocation3 + $0x1c8] sm:$0xff]
    %v3698 = vld [vmem:[#allocation3 + $0x1d0] sm:$0xf]
    %v3699 = vld [vmem:[#allocation3 + $0x1d4] sm:$0xff]
    %v3700 = vld [vmem:[#allocation3 + $0x1dc] sm:$0xff]
    %v3701 = vld [vmem:[#allocation3 + $0x1e4] sm:$0xff]
    %v3702 = vld [vmem:[#allocation3 + $0x1ec] sm:$0xff]
    %v3703 = vld [vmem:[#allocation3 + $0x1f4] sm:$0xf]
    %v3704 = vld [vmem:[#allocation3 + $0x1f8] sm:$0xff]
    %v3705 = vld [vmem:[#allocation3 + $0x200] sm:$0xff]
    %v3706 = vld [vmem:[#allocation3 + $0x208] sm:$0xff]
    %v3707 = vld [vmem:[#allocation3 + $0x210] sm:$0xff]
    %v3708 = vld [vmem:[#allocation3 + $0x218] sm:$0xf]
    %v3709 = vld [vmem:[#allocation3 + $0x21c] sm:$0xff]
    %v3710 = vld [vmem:[#allocation3 + $0x224] sm:$0xff]
    %v3711 = vld [vmem:[#allocation3 + $0x22c] sm:$0xff]
    %v3712 = vld [vmem:[#allocation3 + $0x234] sm:$0xff]
    %v3713 = vld [vmem:[#allocation3 + $0x23c] sm:$0xf]
    %v3714 = vld [vmem:[#allocation4] sm:$0xf]
    %v3715 = vld [vmem:[#allocation4 + $0x4] sm:$0xf]
    %v3716 = vld [vmem:[#allocation4 + $0x8] sm:$0xf]
    %v3717 = vld [vmem:[#allocation4 + $0xc] sm:$0xf]
    %v3718 = vld [vmem:[#allocation4 + $0x10] sm:$0xf]
    %v3719 = vld [vmem:[#allocation4 + $0x14] sm:$0xf]
    %v3720 = vld [vmem:[#allocation4 + $0x18] sm:$0xf]
    %v3721 = vld [vmem:[#allocation4 + $0x1c] sm:$0xf]
    %v3722 = vld [vmem:[#allocation4 + $0x20] sm:$0xf]
    %v3723 = vld [vmem:[#allocation4 + $0x24] sm:$0xf]
    %v3724 = vld [vmem:[#allocation4 + $0x28] sm:$0xf]
    %v3725 = vld [vmem:[#allocation4 + $0x2c] sm:$0xf]
    %v3726 = vld [vmem:[#allocation4 + $0x30] sm:$0xf]
    %v3727 = vld [vmem:[#allocation4 + $0x34] sm:$0xf]
    %v3728 = vld [vmem:[#allocation4 + $0x38] sm:$0xf]
    %v3729 = vld [vmem:[#allocation4 + $0x3c] sm:$0xf]
    %v3730 = vld [vmem:[#allocation4 + $0x40] sm:$0xf]
    %v3731 = vld [vmem:[#allocation4 + $0x44] sm:$0xf]
    %v3732 = vld [vmem:[#allocation4 + $0x48] sm:$0xf]
    %v3733 = vld [vmem:[#allocation4 + $0x4c] sm:$0xf]
    %v3734 = vld [vmem:[#allocation4 + $0x50] sm:$0xf]
    %v3735 = vld [vmem:[#allocation4 + $0x54] sm:$0xf]
    %v3736 = vld [vmem:[#allocation4 + $0x58] sm:$0xf]
    %v3737 = vld [vmem:[#allocation4 + $0x5c] sm:$0xf]
    %v3738 = vld [vmem:[#allocation4 + $0x60] sm:$0xf]
    %v3739 = vld [vmem:[#allocation4 + $0x64] sm:$0xf]
    %v3740 = vld [vmem:[#allocation4 + $0x68] sm:$0xf]
    %v3741 = vld [vmem:[#allocation4 + $0x6c] sm:$0xf]
    %v3742 = vld [vmem:[#allocation4 + $0x70] sm:$0xf]
    %v3743 = vld [vmem:[#allocation4 + $0x74] sm:$0xf]
    %v3744 = vld [vmem:[#allocation4 + $0x78] sm:$0xf]
    %v3745 = vld [vmem:[#allocation4 + $0x7c] sm:$0xf]
    %v3746 = vld [vmem:[#allocation4 + $0x80] sm:$0xf]
    %v3747 = vld [vmem:[#allocation4 + $0x84] sm:$0xf]
    %v3748 = vld [vmem:[#allocation4 + $0x88] sm:$0xf]
    %v3749 = vld [vmem:[#allocation4 + $0x8c] sm:$0xf]
    %v3750 = vld [vmem:[#allocation4 + $0x90] sm:$0xf]
    %v3751 = vld [vmem:[#allocation4 + $0x94] sm:$0xf]
    %v3752 = vld [vmem:[#allocation4 + $0x98] sm:$0xf]
    %v3753 = vld [vmem:[#allocation4 + $0x9c] sm:$0xf]
    %v3754 = vld [vmem:[#allocation4 + $0xa0] sm:$0xf]
    %v3755 = vld [vmem:[#allocation4 + $0xa4] sm:$0xf]
    %v3756 = vld [vmem:[#allocation4 + $0xa8] sm:$0xf]
    %v3757 = vld [vmem:[#allocation4 + $0xac] sm:$0xf]
    %v3758 = vld [vmem:[#allocation4 + $0xb0] sm:$0xf]
    %v3759 = vld [vmem:[#allocation4 + $0xb4] sm:$0xf]
    %v3760 = vld [vmem:[#allocation4 + $0xb8] sm:$0xf]
    %v3761 = vld [vmem:[#allocation4 + $0xbc] sm:$0xf]
    %v3762 = vld [vmem:[#allocation4 + $0xc0] sm:$0xf]
    %v3763 = vld [vmem:[#allocation4 + $0xc4] sm:$0xf]
    %v3764 = vld [vmem:[#allocation4 + $0xc8] sm:$0xf]
    %v3765 = vld [vmem:[#allocation4 + $0xcc] sm:$0xf]
    %v3766 = vld [vmem:[#allocation4 + $0xd0] sm:$0xf]
    %v3767 = vld [vmem:[#allocation4 + $0xd4] sm:$0xf]
    %v3768 = vld [vmem:[#allocation4 + $0xd8] sm:$0xf]
    %v3769 = vld [vmem:[#allocation4 + $0xdc] sm:$0xf]
    %v3770 = vld [vmem:[#allocation4 + $0xe0] sm:$0xf]
    %v3771 = vld [vmem:[#allocation4 + $0xe4] sm:$0xf]
    %v3772 = vld [vmem:[#allocation4 + $0xe8] sm:$0xf]
    %v3773 = vld [vmem:[#allocation4 + $0xec] sm:$0xf]
    %v3774 = vld [vmem:[#allocation4 + $0xf0] sm:$0xf]
    %v3775 = vld [vmem:[#allocation4 + $0xf4] sm:$0xf]
    %v3776 = vld [vmem:[#allocation4 + $0xf8] sm:$0xf]
    %v3777 = vld [vmem:[#allocation4 + $0xfc] sm:$0xf]
    %v3778 = vld [vmem:[#allocation4 + $0x100] sm:$0xf]
    %v3779 = vld [vmem:[#allocation4 + $0x104] sm:$0xf]
    %v3780 = vld [vmem:[#allocation4 + $0x108] sm:$0xf]
    %v3781 = vld [vmem:[#allocation4 + $0x10c] sm:$0xf]
    %v3782 = vld [vmem:[#allocation4 + $0x110] sm:$0xf]
    %v3783 = vld [vmem:[#allocation4 + $0x114] sm:$0xf]
    %v3784 = vld [vmem:[#allocation4 + $0x118] sm:$0xf]
    %v3785 = vld [vmem:[#allocation4 + $0x11c] sm:$0xf]
    %v3786 = vld [vmem:[#allocation4 + $0x120] sm:$0xf]
    %v3787 = vld [vmem:[#allocation4 + $0x124] sm:$0xf]
    %v3788 = vld [vmem:[#allocation4 + $0x128] sm:$0xf]
    %v3789 = vld [vmem:[#allocation4 + $0x12c] sm:$0xf]
    %v3790 = vld [vmem:[#allocation4 + $0x130] sm:$0xf]
    %v3791 = vld [vmem:[#allocation4 + $0x134] sm:$0xf]
    %v3792 = vld [vmem:[#allocation4 + $0x138] sm:$0xf]
    %v3793 = vld [vmem:[#allocation4 + $0x13c] sm:$0xf]
    %v3794 = vld [vmem:[#allocation4 + $0x140] sm:$0xf]
    %v3795 = vld [vmem:[#allocation4 + $0x144] sm:$0xf]
    %v3796 = vld [vmem:[#allocation4 + $0x148] sm:$0xf]
    %v3797 = vld [vmem:[#allocation4 + $0x14c] sm:$0xf]
    %v3798 = vld [vmem:[#allocation4 + $0x150] sm:$0xf]
    %v3799 = vld [vmem:[#allocation4 + $0x154] sm:$0xf]
    %v3800 = vld [vmem:[#allocation4 + $0x158] sm:$0xf]
    %v3801 = vld [vmem:[#allocation4 + $0x15c] sm:$0xf]
    %v3802 = vld [vmem:[#allocation4 + $0x160] sm:$0xf]
    %v3803 = vld [vmem:[#allocation4 + $0x164] sm:$0xf]
    %v3804 = vld [vmem:[#allocation4 + $0x168] sm:$0xf]
    %v3805 = vld [vmem:[#allocation4 + $0x16c] sm:$0xf]
    %v3806 = vld [vmem:[#allocation4 + $0x170] sm:$0xf]
    %v3807 = vld [vmem:[#allocation4 + $0x174] sm:$0xf]
    %v3808 = vld [vmem:[#allocation4 + $0x178] sm:$0xf]
    %v3809 = vld [vmem:[#allocation4 + $0x17c] sm:$0xf]
    %v3810 = vld [vmem:[#allocation4 + $0x180] sm:$0xf]
    %v3811 = vld [vmem:[#allocation4 + $0x184] sm:$0xf]
    %v3812 = vld [vmem:[#allocation4 + $0x188] sm:$0xf]
    %v3813 = vld [vmem:[#allocation4 + $0x18c] sm:$0xf]
    %v3814 = vld [vmem:[#allocation4 + $0x190] sm:$0xf]
    %v3815 = vld [vmem:[#allocation4 + $0x194] sm:$0xf]
    %v3816 = vld [vmem:[#allocation4 + $0x198] sm:$0xf]
    %v3817 = vld [vmem:[#allocation4 + $0x19c] sm:$0xf]
    %v3818 = vld [vmem:[#allocation4 + $0x1a0] sm:$0xf]
    %v3819 = vld [vmem:[#allocation4 + $0x1a4] sm:$0xf]
    %v3820 = vld [vmem:[#allocation4 + $0x1a8] sm:$0xf]
    %v3821 = vld [vmem:[#allocation4 + $0x1ac] sm:$0xf]
    %v3822 = vld [vmem:[#allocation4 + $0x1b0] sm:$0xf]
    %v3823 = vld [vmem:[#allocation4 + $0x1b4] sm:$0xf]
    %v3824 = vld [vmem:[#allocation4 + $0x1b8] sm:$0xf]
    %v3825 = vld [vmem:[#allocation4 + $0x1bc] sm:$0xf]
    %v3826 = vld [vmem:[#allocation4 + $0x1c0] sm:$0xf]
    %v3827 = vld [vmem:[#allocation4 + $0x1c4] sm:$0xf]
    %v3828 = vld [vmem:[#allocation4 + $0x1c8] sm:$0xf]
    %v3829 = vld [vmem:[#allocation4 + $0x1cc] sm:$0xf]
    %v3830 = vld [vmem:[#allocation4 + $0x1d0] sm:$0xf]
    %v3831 = vld [vmem:[#allocation4 + $0x1d4] sm:$0xf]
    %v3832 = vld [vmem:[#allocation4 + $0x1d8] sm:$0xf]
    %v3833 = vld [vmem:[#allocation4 + $0x1dc] sm:$0xf]
    %v3834 = vld [vmem:[#allocation4 + $0x1e0] sm:$0xf]
    %v3835 = vld [vmem:[#allocation4 + $0x1e4] sm:$0xf]
    %v3836 = vld [vmem:[#allocation4 + $0x1e8] sm:$0xf]
    %v3837 = vld [vmem:[#allocation4 + $0x1ec] sm:$0xf]
    %v3838 = vld [vmem:[#allocation4 + $0x1f0] sm:$0xf]
    %v3839 = vld [vmem:[#allocation4 + $0x1f4] sm:$0xf]
    %v3840 = vld [vmem:[#allocation4 + $0x1f8] sm:$0xf]
    %v3841 = vld [vmem:[#allocation4 + $0x1fc] sm:$0xf]
    %v3842 = vld [vmem:[#allocation4 + $0x200] sm:$0xf]
    %v3843 = vld [vmem:[#allocation4 + $0x204] sm:$0xf]
    %v3844 = vld [vmem:[#allocation4 + $0x208] sm:$0xf]
    %v3845 = vld [vmem:[#allocation4 + $0x20c] sm:$0xf]
    %v3846 = vld [vmem:[#allocation4 + $0x210] sm:$0xf]
    %v3847 = vld [vmem:[#allocation4 + $0x214] sm:$0xf]
    %v3848 = vld [vmem:[#allocation4 + $0x218] sm:$0xf]
    %v3849 = vld [vmem:[#allocation4 + $0x21c] sm:$0xf]
    %v3850 = vld [vmem:[#allocation4 + $0x220] sm:$0xf]
    %v3851 = vld [vmem:[#allocation4 + $0x224] sm:$0xf]
    %v3852 = vld [vmem:[#allocation4 + $0x228] sm:$0xf]
    %v3853 = vld [vmem:[#allocation4 + $0x22c] sm:$0xf]
    %v3854 = vld [vmem:[#allocation4 + $0x230] sm:$0xf]
    %v3855 = vld [vmem:[#allocation4 + $0x234] sm:$0xf]
    %v3856 = vld [vmem:[#allocation4 + $0x238] sm:$0xf]
    %v3857 = vld [vmem:[#allocation4 + $0x23c] sm:$0xf]
    %v3938 = vunpack.c.l.b16 %v3634
    %v3939 = vunpack.c.h.b16 %v3634
    %v3940 = vunpack.c.l.b16 %v3635
    %v3941 = vunpack.c.h.b16 %v3635
    %v3942 = vunpack.c.l.b16 %v3636
    %v3943 = vunpack.c.h.b16 %v3636
    %v3944 = vunpack.c.l.b16 %v3637
    %v3945 = vunpack.c.h.b16 %v3637
    %v3946 = vunpack.c.l.b16 %v3638
    %v3947 = vunpack.c.l.b16 %v3639
    %v3948 = vunpack.c.h.b16 %v3639
    %v3949 = vunpack.c.l.b16 %v3640
    %v3950 = vunpack.c.h.b16 %v3640
    %v3951 = vunpack.c.l.b16 %v3641
    %v3952 = vunpack.c.h.b16 %v3641
    %v3953 = vunpack.c.l.b16 %v3642
    %v3954 = vunpack.c.h.b16 %v3642
    %v3955 = vunpack.c.l.b16 %v3643
    %v3956 = vunpack.c.l.b16 %v3644
    %v3957 = vunpack.c.h.b16 %v3644
    %v3958 = vunpack.c.l.b16 %v3645
    %v3959 = vunpack.c.h.b16 %v3645
    %v3960 = vunpack.c.l.b16 %v3646
    %v3961 = vunpack.c.h.b16 %v3646
    %v3962 = vunpack.c.l.b16 %v3647
    %v3963 = vunpack.c.h.b16 %v3647
    %v3964 = vunpack.c.l.b16 %v3648
    %v3965 = vunpack.c.l.b16 %v3649
    %v3966 = vunpack.c.h.b16 %v3649
    %v3967 = vunpack.c.l.b16 %v3650
    %v3968 = vunpack.c.h.b16 %v3650
    %v3969 = vunpack.c.l.b16 %v3651
    %v3970 = vunpack.c.h.b16 %v3651
    %v3971 = vunpack.c.l.b16 %v3652
    %v3972 = vunpack.c.h.b16 %v3652
    %v3973 = vunpack.c.l.b16 %v3653
    %v3974 = vunpack.c.l.b16 %v3654
    %v3975 = vunpack.c.h.b16 %v3654
    %v3976 = vunpack.c.l.b16 %v3655
    %v3977 = vunpack.c.h.b16 %v3655
    %v3978 = vunpack.c.l.b16 %v3656
    %v3979 = vunpack.c.h.b16 %v3656
    %v3980 = vunpack.c.l.b16 %v3657
    %v3981 = vunpack.c.h.b16 %v3657
    %v3982 = vunpack.c.l.b16 %v3658
    %v3983 = vunpack.c.l.b16 %v3659
    %v3984 = vunpack.c.h.b16 %v3659
    %v3985 = vunpack.c.l.b16 %v3660
    %v3986 = vunpack.c.h.b16 %v3660
    %v3987 = vunpack.c.l.b16 %v3661
    %v3988 = vunpack.c.h.b16 %v3661
    %v3989 = vunpack.c.l.b16 %v3662
    %v3990 = vunpack.c.h.b16 %v3662
    %v3991 = vunpack.c.l.b16 %v3663
    %v3992 = vunpack.c.l.b16 %v3664
    %v3993 = vunpack.c.h.b16 %v3664
    %v3994 = vunpack.c.l.b16 %v3665
    %v3995 = vunpack.c.h.b16 %v3665
    %v3996 = vunpack.c.l.b16 %v3666
    %v3997 = vunpack.c.h.b16 %v3666
    %v3998 = vunpack.c.l.b16 %v3667
    %v3999 = vunpack.c.h.b16 %v3667
    %v4000 = vunpack.c.l.b16 %v3668
    %v4001 = vunpack.c.l.b16 %v3669
    %v4002 = vunpack.c.h.b16 %v3669
    %v4003 = vunpack.c.l.b16 %v3670
    %v4004 = vunpack.c.h.b16 %v3670
    %v4005 = vunpack.c.l.b16 %v3671
    %v4006 = vunpack.c.h.b16 %v3671
    %v4007 = vunpack.c.l.b16 %v3672
    %v4008 = vunpack.c.h.b16 %v3672
    %v4009 = vunpack.c.l.b16 %v3673
    %v4010 = vunpack.c.l.b16 %v3674
    %v4011 = vunpack.c.h.b16 %v3674
    %v4012 = vunpack.c.l.b16 %v3675
    %v4013 = vunpack.c.h.b16 %v3675
    %v4014 = vunpack.c.l.b16 %v3676
    %v4015 = vunpack.c.h.b16 %v3676
    %v4016 = vunpack.c.l.b16 %v3677
    %v4017 = vunpack.c.h.b16 %v3677
    %v4018 = vunpack.c.l.b16 %v3678
    %v4019 = vunpack.c.l.b16 %v3679
    %v4020 = vunpack.c.h.b16 %v3679
    %v4021 = vunpack.c.l.b16 %v3680
    %v4022 = vunpack.c.h.b16 %v3680
    %v4023 = vunpack.c.l.b16 %v3681
    %v4024 = vunpack.c.h.b16 %v3681
    %v4025 = vunpack.c.l.b16 %v3682
    %v4026 = vunpack.c.h.b16 %v3682
    %v4027 = vunpack.c.l.b16 %v3683
    %v4028 = vunpack.c.l.b16 %v3684
    %v4029 = vunpack.c.h.b16 %v3684
    %v4030 = vunpack.c.l.b16 %v3685
    %v4031 = vunpack.c.h.b16 %v3685
    %v4032 = vunpack.c.l.b16 %v3686
    %v4033 = vunpack.c.h.b16 %v3686
    %v4034 = vunpack.c.l.b16 %v3687
    %v4035 = vunpack.c.h.b16 %v3687
    %v4036 = vunpack.c.l.b16 %v3688
    %v4037 = vunpack.c.l.b16 %v3689
    %v4038 = vunpack.c.h.b16 %v3689
    %v4039 = vunpack.c.l.b16 %v3690
    %v4040 = vunpack.c.h.b16 %v3690
    %v4041 = vunpack.c.l.b16 %v3691
    %v4042 = vunpack.c.h.b16 %v3691
    %v4043 = vunpack.c.l.b16 %v3692
    %v4044 = vunpack.c.h.b16 %v3692
    %v4045 = vunpack.c.l.b16 %v3693
    %v4046 = vunpack.c.l.b16 %v3694
    %v4047 = vunpack.c.h.b16 %v3694
    %v4048 = vunpack.c.l.b16 %v3695
    %v4049 = vunpack.c.h.b16 %v3695
    %v4050 = vunpack.c.l.b16 %v3696
    %v4051 = vunpack.c.h.b16 %v3696
    %v4052 = vunpack.c.l.b16 %v3697
    %v4053 = vunpack.c.h.b16 %v3697
    %v4054 = vunpack.c.l.b16 %v3698
    %v4055 = vunpack.c.l.b16 %v3699
    %v4056 = vunpack.c.h.b16 %v3699
    %v4057 = vunpack.c.l.b16 %v3700
    %v4058 = vunpack.c.h.b16 %v3700
    %v4059 = vunpack.c.l.b16 %v3701
    %v4060 = vunpack.c.h.b16 %v3701
    %v4061 = vunpack.c.l.b16 %v3702
    %v4062 = vunpack.c.h.b16 %v3702
    %v4063 = vunpack.c.l.b16 %v3703
    %v4064 = vunpack.c.l.b16 %v3704
    %v4065 = vunpack.c.h.b16 %v3704
    %v4066 = vunpack.c.l.b16 %v3705
    %v4067 = vunpack.c.h.b16 %v3705
    %v4068 = vunpack.c.l.b16 %v3706
    %v4069 = vunpack.c.h.b16 %v3706
    %v4070 = vunpack.c.l.b16 %v3707
    %v4071 = vunpack.c.h.b16 %v3707
    %v4072 = vunpack.c.l.b16 %v3708
    %v4073 = vunpack.c.l.b16 %v3709
    %v4074 = vunpack.c.h.b16 %v3709
    %v4075 = vunpack.c.l.b16 %v3710
    %v4076 = vunpack.c.h.b16 %v3710
    %v4077 = vunpack.c.l.b16 %v3711
    %v4078 = vunpack.c.h.b16 %v3711
    %v4079 = vunpack.c.l.b16 %v3712
    %v4080 = vunpack.c.h.b16 %v3712
    %v4081 = vunpack.c.l.b16 %v3713
    %v4082 = vpack.c.b16 %v3947, %v3938
    %v4083 = vpack.c.b16 %v3948, %v3939
    %v4084 = vpack.c.b16 %v3949, %v3940
    %v4085 = vpack.c.b16 %v3950, %v3941
    %v4086 = vpack.c.b16 %v3951, %v3942
    %v4087 = vpack.c.b16 %v3952, %v3943
    %v4088 = vpack.c.b16 %v3953, %v3944
    %v4089 = vpack.c.b16 %v3954, %v3945
    %v4090 = vpack.c.b16 %v3955, %v3946
    %v4091 = vpack.c.b16 %v3965, %v3956
    %v4092 = vpack.c.b16 %v3966, %v3957
    %v4093 = vpack.c.b16 %v3967, %v3958
    %v4094 = vpack.c.b16 %v3968, %v3959
    %v4095 = vpack.c.b16 %v3969, %v3960
    %v4096 = vpack.c.b16 %v3970, %v3961
    %v4097 = vpack.c.b16 %v3971, %v3962
    %v4098 = vpack.c.b16 %v3972, %v3963
    %v4099 = vpack.c.b16 %v3973, %v3964
    %v4100 = vpack.c.b16 %v3983, %v3974
    %v4101 = vpack.c.b16 %v3984, %v3975
    %v4102 = vpack.c.b16 %v3985, %v3976
    %v4103 = vpack.c.b16 %v3986, %v3977
    %v4104 = vpack.c.b16 %v3987, %v3978
    %v4105 = vpack.c.b16 %v3988, %v3979
    %v4106 = vpack.c.b16 %v3989, %v3980
    %v4107 = vpack.c.b16 %v3990, %v3981
    %v4108 = vpack.c.b16 %v3991, %v3982
    %v4109 = vpack.c.b16 %v4001, %v3992
    %v4110 = vpack.c.b16 %v4002, %v3993
    %v4111 = vpack.c.b16 %v4003, %v3994
    %v4112 = vpack.c.b16 %v4004, %v3995
    %v4113 = vpack.c.b16 %v4005, %v3996
    %v4114 = vpack.c.b16 %v4006, %v3997
    %v4115 = vpack.c.b16 %v4007, %v3998
    %v4116 = vpack.c.b16 %v4008, %v3999
    %v4117 = vpack.c.b16 %v4009, %v4000
    %v4118 = vpack.c.b16 %v4019, %v4010
    %v4119 = vpack.c.b16 %v4020, %v4011
    %v4120 = vpack.c.b16 %v4021, %v4012
    %v4121 = vpack.c.b16 %v4022, %v4013
    %v4122 = vpack.c.b16 %v4023, %v4014
    %v4123 = vpack.c.b16 %v4024, %v4015
    %v4124 = vpack.c.b16 %v4025, %v4016
    %v4125 = vpack.c.b16 %v4026, %v4017
    %v4126 = vpack.c.b16 %v4027, %v4018
    %v4127 = vpack.c.b16 %v4037, %v4028
    %v4128 = vpack.c.b16 %v4038, %v4029
    %v4129 = vpack.c.b16 %v4039, %v4030
    %v4130 = vpack.c.b16 %v4040, %v4031
    %v4131 = vpack.c.b16 %v4041, %v4032
    %v4132 = vpack.c.b16 %v4042, %v4033
    %v4133 = vpack.c.b16 %v4043, %v4034
    %v4134 = vpack.c.b16 %v4044, %v4035
    %v4135 = vpack.c.b16 %v4045, %v4036
    %v4136 = vpack.c.b16 %v4055, %v4046
    %v4137 = vpack.c.b16 %v4056, %v4047
    %v4138 = vpack.c.b16 %v4057, %v4048
    %v4139 = vpack.c.b16 %v4058, %v4049
    %v4140 = vpack.c.b16 %v4059, %v4050
    %v4141 = vpack.c.b16 %v4060, %v4051
    %v4142 = vpack.c.b16 %v4061, %v4052
    %v4143 = vpack.c.b16 %v4062, %v4053
    %v4144 = vpack.c.b16 %v4063, %v4054
    %v4145 = vpack.c.b16 %v4073, %v4064
    %v4146 = vpack.c.b16 %v4074, %v4065
    %v4147 = vpack.c.b16 %v4075, %v4066
    %v4148 = vpack.c.b16 %v4076, %v4067
    %v4149 = vpack.c.b16 %v4077, %v4068
    %v4150 = vpack.c.b16 %v4078, %v4069
    %v4151 = vpack.c.b16 %v4079, %v4070
    %v4152 = vpack.c.b16 %v4080, %v4071
    %v4153 = vpack.c.b16 %v4081, %v4072
    %v4370 = vunpack.c.l.b16 %v3714
    %v4371 = vunpack.c.l.b16 %v3715
    %v4372 = vunpack.c.l.b16 %v3716
    %v4373 = vunpack.c.l.b16 %v3717
    %v4374 = vunpack.c.l.b16 %v3718
    %v4375 = vunpack.c.l.b16 %v3719
    %v4376 = vunpack.c.l.b16 %v3720
    %v4377 = vunpack.c.l.b16 %v3721
    %v4378 = vunpack.c.l.b16 %v3722
    %v4379 = vunpack.c.l.b16 %v3723
    %v4380 = vunpack.c.l.b16 %v3724
    %v4381 = vunpack.c.l.b16 %v3725
    %v4382 = vunpack.c.l.b16 %v3726
    %v4383 = vunpack.c.l.b16 %v3727
    %v4384 = vunpack.c.l.b16 %v3728
    %v4385 = vunpack.c.l.b16 %v3729
    %v4386 = vunpack.c.l.b16 %v3730
    %v4387 = vunpack.c.l.b16 %v3731
    %v4388 = vunpack.c.l.b16 %v3732
    %v4389 = vunpack.c.l.b16 %v3733
    %v4390 = vunpack.c.l.b16 %v3734
    %v4391 = vunpack.c.l.b16 %v3735
    %v4392 = vunpack.c.l.b16 %v3736
    %v4393 = vunpack.c.l.b16 %v3737
    %v4394 = vunpack.c.l.b16 %v3738
    %v4395 = vunpack.c.l.b16 %v3739
    %v4396 = vunpack.c.l.b16 %v3740
    %v4397 = vunpack.c.l.b16 %v3741
    %v4398 = vunpack.c.l.b16 %v3742
    %v4399 = vunpack.c.l.b16 %v3743
    %v4400 = vunpack.c.l.b16 %v3744
    %v4401 = vunpack.c.l.b16 %v3745
    %v4402 = vunpack.c.l.b16 %v3746
    %v4403 = vunpack.c.l.b16 %v3747
    %v4404 = vunpack.c.l.b16 %v3748
    %v4405 = vunpack.c.l.b16 %v3749
    %v4406 = vunpack.c.l.b16 %v3750
    %v4407 = vunpack.c.l.b16 %v3751
    %v4408 = vunpack.c.l.b16 %v3752
    %v4409 = vunpack.c.l.b16 %v3753
    %v4410 = vunpack.c.l.b16 %v3754
    %v4411 = vunpack.c.l.b16 %v3755
    %v4412 = vunpack.c.l.b16 %v3756
    %v4413 = vunpack.c.l.b16 %v3757
    %v4414 = vunpack.c.l.b16 %v3758
    %v4415 = vunpack.c.l.b16 %v3759
    %v4416 = vunpack.c.l.b16 %v3760
    %v4417 = vunpack.c.l.b16 %v3761
    %v4418 = vunpack.c.l.b16 %v3762
    %v4419 = vunpack.c.l.b16 %v3763
    %v4420 = vunpack.c.l.b16 %v3764
    %v4421 = vunpack.c.l.b16 %v3765
    %v4422 = vunpack.c.l.b16 %v3766
    %v4423 = vunpack.c.l.b16 %v3767
    %v4424 = vunpack.c.l.b16 %v3768
    %v4425 = vunpack.c.l.b16 %v3769
    %v4426 = vunpack.c.l.b16 %v3770
    %v4427 = vunpack.c.l.b16 %v3771
    %v4428 = vunpack.c.l.b16 %v3772
    %v4429 = vunpack.c.l.b16 %v3773
    %v4430 = vunpack.c.l.b16 %v3774
    %v4431 = vunpack.c.l.b16 %v3775
    %v4432 = vunpack.c.l.b16 %v3776
    %v4433 = vunpack.c.l.b16 %v3777
    %v4434 = vunpack.c.l.b16 %v3778
    %v4435 = vunpack.c.l.b16 %v3779
    %v4436 = vunpack.c.l.b16 %v3780
    %v4437 = vunpack.c.l.b16 %v3781
    %v4438 = vunpack.c.l.b16 %v3782
    %v4439 = vunpack.c.l.b16 %v3783
    %v4440 = vunpack.c.l.b16 %v3784
    %v4441 = vunpack.c.l.b16 %v3785
    %v4442 = vunpack.c.l.b16 %v3786
    %v4443 = vunpack.c.l.b16 %v3787
    %v4444 = vunpack.c.l.b16 %v3788
    %v4445 = vunpack.c.l.b16 %v3789
    %v4446 = vunpack.c.l.b16 %v3790
    %v4447 = vunpack.c.l.b16 %v3791
    %v4448 = vunpack.c.l.b16 %v3792
    %v4449 = vunpack.c.l.b16 %v3793
    %v4450 = vunpack.c.l.b16 %v3794
    %v4451 = vunpack.c.l.b16 %v3795
    %v4452 = vunpack.c.l.b16 %v3796
    %v4453 = vunpack.c.l.b16 %v3797
    %v4454 = vunpack.c.l.b16 %v3798
    %v4455 = vunpack.c.l.b16 %v3799
    %v4456 = vunpack.c.l.b16 %v3800
    %v4457 = vunpack.c.l.b16 %v3801
    %v4458 = vunpack.c.l.b16 %v3802
    %v4459 = vunpack.c.l.b16 %v3803
    %v4460 = vunpack.c.l.b16 %v3804
    %v4461 = vunpack.c.l.b16 %v3805
    %v4462 = vunpack.c.l.b16 %v3806
    %v4463 = vunpack.c.l.b16 %v3807
    %v4464 = vunpack.c.l.b16 %v3808
    %v4465 = vunpack.c.l.b16 %v3809
    %v4466 = vunpack.c.l.b16 %v3810
    %v4467 = vunpack.c.l.b16 %v3811
    %v4468 = vunpack.c.l.b16 %v3812
    %v4469 = vunpack.c.l.b16 %v3813
    %v4470 = vunpack.c.l.b16 %v3814
    %v4471 = vunpack.c.l.b16 %v3815
    %v4472 = vunpack.c.l.b16 %v3816
    %v4473 = vunpack.c.l.b16 %v3817
    %v4474 = vunpack.c.l.b16 %v3818
    %v4475 = vunpack.c.l.b16 %v3819
    %v4476 = vunpack.c.l.b16 %v3820
    %v4477 = vunpack.c.l.b16 %v3821
    %v4478 = vunpack.c.l.b16 %v3822
    %v4479 = vunpack.c.l.b16 %v3823
    %v4480 = vunpack.c.l.b16 %v3824
    %v4481 = vunpack.c.l.b16 %v3825
    %v4482 = vunpack.c.l.b16 %v3826
    %v4483 = vunpack.c.l.b16 %v3827
    %v4484 = vunpack.c.l.b16 %v3828
    %v4485 = vunpack.c.l.b16 %v3829
    %v4486 = vunpack.c.l.b16 %v3830
    %v4487 = vunpack.c.l.b16 %v3831
    %v4488 = vunpack.c.l.b16 %v3832
    %v4489 = vunpack.c.l.b16 %v3833
    %v4490 = vunpack.c.l.b16 %v3834
    %v4491 = vunpack.c.l.b16 %v3835
    %v4492 = vunpack.c.l.b16 %v3836
    %v4493 = vunpack.c.l.b16 %v3837
    %v4494 = vunpack.c.l.b16 %v3838
    %v4495 = vunpack.c.l.b16 %v3839
    %v4496 = vunpack.c.l.b16 %v3840
    %v4497 = vunpack.c.l.b16 %v3841
    %v4498 = vunpack.c.l.b16 %v3842
    %v4499 = vunpack.c.l.b16 %v3843
    %v4500 = vunpack.c.l.b16 %v3844
    %v4501 = vunpack.c.l.b16 %v3845
    %v4502 = vunpack.c.l.b16 %v3846
    %v4503 = vunpack.c.l.b16 %v3847
    %v4504 = vunpack.c.l.b16 %v3848
    %v4505 = vunpack.c.l.b16 %v3849
    %v4506 = vunpack.c.l.b16 %v3850
    %v4507 = vunpack.c.l.b16 %v3851
    %v4508 = vunpack.c.l.b16 %v3852
    %v4509 = vunpack.c.l.b16 %v3853
    %v4510 = vunpack.c.l.b16 %v3854
    %v4511 = vunpack.c.l.b16 %v3855
    %v4512 = vunpack.c.l.b16 %v3856
    %v4513 = vunpack.c.l.b16 %v3857
    %v4514 = vpack.c.b16 %v4371, %v4370
    %v4515 = vpack.c.b16 %v4373, %v4372
    %v4516 = vpack.c.b16 %v4375, %v4374
    %v4517 = vpack.c.b16 %v4377, %v4376
    %v4518 = vpack.c.b16 %v4379, %v4378
    %v4519 = vpack.c.b16 %v4381, %v4380
    %v4520 = vpack.c.b16 %v4383, %v4382
    %v4521 = vpack.c.b16 %v4385, %v4384
    %v4522 = vpack.c.b16 %v4387, %v4386
    %v4523 = vpack.c.b16 %v4389, %v4388
    %v4524 = vpack.c.b16 %v4391, %v4390
    %v4525 = vpack.c.b16 %v4393, %v4392
    %v4526 = vpack.c.b16 %v4395, %v4394
    %v4527 = vpack.c.b16 %v4397, %v4396
    %v4528 = vpack.c.b16 %v4399, %v4398
    %v4529 = vpack.c.b16 %v4401, %v4400
    %v4530 = vpack.c.b16 %v4403, %v4402
    %v4531 = vpack.c.b16 %v4405, %v4404
    %v4532 = vpack.c.b16 %v4407, %v4406
    %v4533 = vpack.c.b16 %v4409, %v4408
    %v4534 = vpack.c.b16 %v4411, %v4410
    %v4535 = vpack.c.b16 %v4413, %v4412
    %v4536 = vpack.c.b16 %v4415, %v4414
    %v4537 = vpack.c.b16 %v4417, %v4416
    %v4538 = vpack.c.b16 %v4419, %v4418
    %v4539 = vpack.c.b16 %v4421, %v4420
    %v4540 = vpack.c.b16 %v4423, %v4422
    %v4541 = vpack.c.b16 %v4425, %v4424
    %v4542 = vpack.c.b16 %v4427, %v4426
    %v4543 = vpack.c.b16 %v4429, %v4428
    %v4544 = vpack.c.b16 %v4431, %v4430
    %v4545 = vpack.c.b16 %v4433, %v4432
    %v4546 = vpack.c.b16 %v4435, %v4434
    %v4547 = vpack.c.b16 %v4437, %v4436
    %v4548 = vpack.c.b16 %v4439, %v4438
    %v4549 = vpack.c.b16 %v4441, %v4440
    %v4550 = vpack.c.b16 %v4443, %v4442
    %v4551 = vpack.c.b16 %v4445, %v4444
    %v4552 = vpack.c.b16 %v4447, %v4446
    %v4553 = vpack.c.b16 %v4449, %v4448
    %v4554 = vpack.c.b16 %v4451, %v4450
    %v4555 = vpack.c.b16 %v4453, %v4452
    %v4556 = vpack.c.b16 %v4455, %v4454
    %v4557 = vpack.c.b16 %v4457, %v4456
    %v4558 = vpack.c.b16 %v4459, %v4458
    %v4559 = vpack.c.b16 %v4461, %v4460
    %v4560 = vpack.c.b16 %v4463, %v4462
    %v4561 = vpack.c.b16 %v4465, %v4464
    %v4562 = vpack.c.b16 %v4467, %v4466
    %v4563 = vpack.c.b16 %v4469, %v4468
    %v4564 = vpack.c.b16 %v4471, %v4470
    %v4565 = vpack.c.b16 %v4473, %v4472
    %v4566 = vpack.c.b16 %v4475, %v4474
    %v4567 = vpack.c.b16 %v4477, %v4476
    %v4568 = vpack.c.b16 %v4479, %v4478
    %v4569 = vpack.c.b16 %v4481, %v4480
    %v4570 = vpack.c.b16 %v4483, %v4482
    %v4571 = vpack.c.b16 %v4485, %v4484
    %v4572 = vpack.c.b16 %v4487, %v4486
    %v4573 = vpack.c.b16 %v4489, %v4488
    %v4574 = vpack.c.b16 %v4491, %v4490
    %v4575 = vpack.c.b16 %v4493, %v4492
    %v4576 = vpack.c.b16 %v4495, %v4494
    %v4577 = vpack.c.b16 %v4497, %v4496
    %v4578 = vpack.c.b16 %v4499, %v4498
    %v4579 = vpack.c.b16 %v4501, %v4500
    %v4580 = vpack.c.b16 %v4503, %v4502
    %v4581 = vpack.c.b16 %v4505, %v4504
    %v4582 = vpack.c.b16 %v4507, %v4506
    %v4583 = vpack.c.b16 %v4509, %v4508
    %v4584 = vpack.c.b16 %v4511, %v4510
    %v4585 = vpack.c.b16 %v4513, %v4512
    %4658 = vmatpush.bf16.msra.mxu0 %v4521
    %4659 = vmatpush.bf16.msra.mxu0 %v4520
    %4660 = vmatpush.bf16.msra.mxu0 %v4519
    %4661 = vmatpush.bf16.msra.mxu0 %v4518
    %4662 = vmatpush.bf16.msra.mxu0 %v4517
    %4663 = vmatpush.bf16.msra.mxu0 %v4516
    %4664 = vmatpush.bf16.msra.mxu0 %v4515
    %4665 = vmatpush.bf16.msra.mxu0 %v4514
    %4666 = vmatmul.bf16.gmra.mxu0 %v4082
    %v4667 = vpop.f32.mrf.mxu0
    %v4668 = vadd.f32 0.0, %v4667
    %v4669 = vpop.f32.mrf.mxu0
    %v4670 = vadd.f32 0.0, %v4669
    %4671 = vmatmul.bf16.gmra.mxu0 %v4091
    %v4672 = vpop.f32.mrf.mxu0
    %v4673 = vadd.f32 0.0, %v4672
    %v4674 = vpop.f32.mrf.mxu0
    %v4675 = vadd.f32 0.0, %v4674
    %4676 = vmatmul.bf16.gmra.mxu0 %v4100
    %v4677 = vpop.f32.mrf.mxu0
    %v4678 = vadd.f32 0.0, %v4677
    %v4679 = vpop.f32.mrf.mxu0
    %v4680 = vadd.f32 0.0, %v4679
    %4681 = vmatmul.bf16.gmra.mxu0 %v4109
    %v4682 = vpop.f32.mrf.mxu0
    %v4683 = vadd.f32 0.0, %v4682
    %v4684 = vpop.f32.mrf.mxu0
    %v4685 = vadd.f32 0.0, %v4684
    %4686 = vmatmul.bf16.gmra.mxu0 %v4118
    %v4687 = vpop.f32.mrf.mxu0
    %v4688 = vadd.f32 0.0, %v4687
    %v4689 = vpop.f32.mrf.mxu0
    %v4690 = vadd.f32 0.0, %v4689
    %4691 = vmatmul.bf16.gmra.mxu0 %v4127
    %v4692 = vpop.f32.mrf.mxu0
    %v4693 = vadd.f32 0.0, %v4692
    %v4694 = vpop.f32.mrf.mxu0
    %v4695 = vadd.f32 0.0, %v4694
    %4696 = vmatmul.bf16.gmra.mxu0 %v4136
    %v4697 = vpop.f32.mrf.mxu0
    %v4698 = vadd.f32 0.0, %v4697
    %v4699 = vpop.f32.mrf.mxu0
    %v4700 = vadd.f32 0.0, %v4699
    %4701 = vmatmul.bf16.gmra.mxu0 %v4145
    %v4702 = vpop.f32.mrf.mxu0
    %v4703 = vadd.f32 0.0, %v4702
    %v4704 = vpop.f32.mrf.mxu0
    %v4705 = vadd.f32 0.0, %v4704
    %4706 = vdwg.mxu0
    %4707 = vmatpush.bf16.msra.mxu0 %v4529
    %4708 = vmatpush.bf16.msra.mxu0 %v4528
    %4709 = vmatpush.bf16.msra.mxu0 %v4527
    %4710 = vmatpush.bf16.msra.mxu0 %v4526
    %4711 = vmatpush.bf16.msra.mxu0 %v4525
    %4712 = vmatpush.bf16.msra.mxu0 %v4524
    %4713 = vmatpush.bf16.msra.mxu0 %v4523
    %4714 = vmatpush.bf16.msra.mxu0 %v4522
    %4715 = vmatmul.bf16.gmra.mxu0 %v4083
    %v4716 = vpop.f32.mrf.mxu0
    %v4717 = vadd.f32 %v4668, %v4716
    %v4718 = vpop.f32.mrf.mxu0
    %v4719 = vadd.f32 %v4670, %v4718
    %4720 = vmatmul.bf16.gmra.mxu0 %v4092
    %v4721 = vpop.f32.mrf.mxu0
    %v4722 = vadd.f32 %v4673, %v4721
    %v4723 = vpop.f32.mrf.mxu0
    %v4724 = vadd.f32 %v4675, %v4723
    %4725 = vmatmul.bf16.gmra.mxu0 %v4101
    %v4726 = vpop.f32.mrf.mxu0
    %v4727 = vadd.f32 %v4678, %v4726
    %v4728 = vpop.f32.mrf.mxu0
    %v4729 = vadd.f32 %v4680, %v4728
    %4730 = vmatmul.bf16.gmra.mxu0 %v4110
    %v4731 = vpop.f32.mrf.mxu0
    %v4732 = vadd.f32 %v4683, %v4731
    %v4733 = vpop.f32.mrf.mxu0
    %v4734 = vadd.f32 %v4685, %v4733
    %4735 = vmatmul.bf16.gmra.mxu0 %v4119
    %v4736 = vpop.f32.mrf.mxu0
    %v4737 = vadd.f32 %v4688, %v4736
    %v4738 = vpop.f32.mrf.mxu0
    %v4739 = vadd.f32 %v4690, %v4738
    %4740 = vmatmul.bf16.gmra.mxu0 %v4128
    %v4741 = vpop.f32.mrf.mxu0
    %v4742 = vadd.f32 %v4693, %v4741
    %v4743 = vpop.f32.mrf.mxu0
    %v4744 = vadd.f32 %v4695, %v4743
    %4745 = vmatmul.bf16.gmra.mxu0 %v4137
    %v4746 = vpop.f32.mrf.mxu0
    %v4747 = vadd.f32 %v4698, %v4746
    %v4748 = vpop.f32.mrf.mxu0
    %v4749 = vadd.f32 %v4700, %v4748
    %4750 = vmatmul.bf16.gmra.mxu0 %v4146
    %v4751 = vpop.f32.mrf.mxu0
    %v4752 = vadd.f32 %v4703, %v4751
    %v4753 = vpop.f32.mrf.mxu0
    %v4754 = vadd.f32 %v4705, %v4753
    %4755 = vdwg.mxu0
    %4756 = vmatpush.bf16.msra.mxu0 %v4537
    %4757 = vmatpush.bf16.msra.mxu0 %v4536
    %4758 = vmatpush.bf16.msra.mxu0 %v4535
    %4759 = vmatpush.bf16.msra.mxu0 %v4534
    %4760 = vmatpush.bf16.msra.mxu0 %v4533
    %4761 = vmatpush.bf16.msra.mxu0 %v4532
    %4762 = vmatpush.bf16.msra.mxu0 %v4531
    %4763 = vmatpush.bf16.msra.mxu0 %v4530
    %4764 = vmatmul.bf16.gmra.mxu0 %v4084
    %v4765 = vpop.f32.mrf.mxu0
    %v4766 = vadd.f32 %v4717, %v4765
    %v4767 = vpop.f32.mrf.mxu0
    %v4768 = vadd.f32 %v4719, %v4767
    %4769 = vmatmul.bf16.gmra.mxu0 %v4093
    %v4770 = vpop.f32.mrf.mxu0
    %v4771 = vadd.f32 %v4722, %v4770
    %v4772 = vpop.f32.mrf.mxu0
    %v4773 = vadd.f32 %v4724, %v4772
    %4774 = vmatmul.bf16.gmra.mxu0 %v4102
    %v4775 = vpop.f32.mrf.mxu0
    %v4776 = vadd.f32 %v4727, %v4775
    %v4777 = vpop.f32.mrf.mxu0
    %v4778 = vadd.f32 %v4729, %v4777
    %4779 = vmatmul.bf16.gmra.mxu0 %v4111
    %v4780 = vpop.f32.mrf.mxu0
    %v4781 = vadd.f32 %v4732, %v4780
    %v4782 = vpop.f32.mrf.mxu0
    %v4783 = vadd.f32 %v4734, %v4782
    %4784 = vmatmul.bf16.gmra.mxu0 %v4120
    %v4785 = vpop.f32.mrf.mxu0
    %v4786 = vadd.f32 %v4737, %v4785
    %v4787 = vpop.f32.mrf.mxu0
    %v4788 = vadd.f32 %v4739, %v4787
    %4789 = vmatmul.bf16.gmra.mxu0 %v4129
    %v4790 = vpop.f32.mrf.mxu0
    %v4791 = vadd.f32 %v4742, %v4790
    %v4792 = vpop.f32.mrf.mxu0
    %v4793 = vadd.f32 %v4744, %v4792
    %4794 = vmatmul.bf16.gmra.mxu0 %v4138
    %v4795 = vpop.f32.mrf.mxu0
    %v4796 = vadd.f32 %v4747, %v4795
    %v4797 = vpop.f32.mrf.mxu0
    %v4798 = vadd.f32 %v4749, %v4797
    %4799 = vmatmul.bf16.gmra.mxu0 %v4147
    %v4800 = vpop.f32.mrf.mxu0
    %v4801 = vadd.f32 %v4752, %v4800
    %v4802 = vpop.f32.mrf.mxu0
    %v4803 = vadd.f32 %v4754, %v4802
    %4804 = vdwg.mxu0
    %4805 = vmatpush.bf16.msra.mxu0 %v4545
    %4806 = vmatpush.bf16.msra.mxu0 %v4544
    %4807 = vmatpush.bf16.msra.mxu0 %v4543
    %4808 = vmatpush.bf16.msra.mxu0 %v4542
    %4809 = vmatpush.bf16.msra.mxu0 %v4541
    %4810 = vmatpush.bf16.msra.mxu0 %v4540
    %4811 = vmatpush.bf16.msra.mxu0 %v4539
    %4812 = vmatpush.bf16.msra.mxu0 %v4538
    %4813 = vmatmul.bf16.gmra.mxu0 %v4085
    %v4814 = vpop.f32.mrf.mxu0
    %v4815 = vadd.f32 %v4766, %v4814
    %v4816 = vpop.f32.mrf.mxu0
    %v4817 = vadd.f32 %v4768, %v4816
    %4818 = vmatmul.bf16.gmra.mxu0 %v4094
    %v4819 = vpop.f32.mrf.mxu0
    %v4820 = vadd.f32 %v4771, %v4819
    %v4821 = vpop.f32.mrf.mxu0
    %v4822 = vadd.f32 %v4773, %v4821
    %4823 = vmatmul.bf16.gmra.mxu0 %v4103
    %v4824 = vpop.f32.mrf.mxu0
    %v4825 = vadd.f32 %v4776, %v4824
    %v4826 = vpop.f32.mrf.mxu0
    %v4827 = vadd.f32 %v4778, %v4826
    %4828 = vmatmul.bf16.gmra.mxu0 %v4112
    %v4829 = vpop.f32.mrf.mxu0
    %v4830 = vadd.f32 %v4781, %v4829
    %v4831 = vpop.f32.mrf.mxu0
    %v4832 = vadd.f32 %v4783, %v4831
    %4833 = vmatmul.bf16.gmra.mxu0 %v4121
    %v4834 = vpop.f32.mrf.mxu0
    %v4835 = vadd.f32 %v4786, %v4834
    %v4836 = vpop.f32.mrf.mxu0
    %v4837 = vadd.f32 %v4788, %v4836
    %4838 = vmatmul.bf16.gmra.mxu0 %v4130
    %v4839 = vpop.f32.mrf.mxu0
    %v4840 = vadd.f32 %v4791, %v4839
    %v4841 = vpop.f32.mrf.mxu0
    %v4842 = vadd.f32 %v4793, %v4841
    %4843 = vmatmul.bf16.gmra.mxu0 %v4139
    %v4844 = vpop.f32.mrf.mxu0
    %v4845 = vadd.f32 %v4796, %v4844
    %v4846 = vpop.f32.mrf.mxu0
    %v4847 = vadd.f32 %v4798, %v4846
    %4848 = vmatmul.bf16.gmra.mxu0 %v4148
    %v4849 = vpop.f32.mrf.mxu0
    %v4850 = vadd.f32 %v4801, %v4849
    %v4851 = vpop.f32.mrf.mxu0
    %v4852 = vadd.f32 %v4803, %v4851
    %4853 = vdwg.mxu0
    %4854 = vmatpush.bf16.msra.mxu0 %v4553
    %4855 = vmatpush.bf16.msra.mxu0 %v4552
    %4856 = vmatpush.bf16.msra.mxu0 %v4551
    %4857 = vmatpush.bf16.msra.mxu0 %v4550
    %4858 = vmatpush.bf16.msra.mxu0 %v4549
    %4859 = vmatpush.bf16.msra.mxu0 %v4548
    %4860 = vmatpush.bf16.msra.mxu0 %v4547
    %4861 = vmatpush.bf16.msra.mxu0 %v4546
    %4862 = vmatmul.bf16.gmra.mxu0 %v4086
    %v4863 = vpop.f32.mrf.mxu0
    %v4864 = vadd.f32 %v4815, %v4863
    %v4865 = vpop.f32.mrf.mxu0
    %v4866 = vadd.f32 %v4817, %v4865
    %4867 = vmatmul.bf16.gmra.mxu0 %v4095
    %v4868 = vpop.f32.mrf.mxu0
    %v4869 = vadd.f32 %v4820, %v4868
    %v4870 = vpop.f32.mrf.mxu0
    %v4871 = vadd.f32 %v4822, %v4870
    %4872 = vmatmul.bf16.gmra.mxu0 %v4104
    %v4873 = vpop.f32.mrf.mxu0
    %v4874 = vadd.f32 %v4825, %v4873
    %v4875 = vpop.f32.mrf.mxu0
    %v4876 = vadd.f32 %v4827, %v4875
    %4877 = vmatmul.bf16.gmra.mxu0 %v4113
    %v4878 = vpop.f32.mrf.mxu0
    %v4879 = vadd.f32 %v4830, %v4878
    %v4880 = vpop.f32.mrf.mxu0
    %v4881 = vadd.f32 %v4832, %v4880
    %4882 = vmatmul.bf16.gmra.mxu0 %v4122
    %v4883 = vpop.f32.mrf.mxu0
    %v4884 = vadd.f32 %v4835, %v4883
    %v4885 = vpop.f32.mrf.mxu0
    %v4886 = vadd.f32 %v4837, %v4885
    %4887 = vmatmul.bf16.gmra.mxu0 %v4131
    %v4888 = vpop.f32.mrf.mxu0
    %v4889 = vadd.f32 %v4840, %v4888
    %v4890 = vpop.f32.mrf.mxu0
    %v4891 = vadd.f32 %v4842, %v4890
    %4892 = vmatmul.bf16.gmra.mxu0 %v4140
    %v4893 = vpop.f32.mrf.mxu0
    %v4894 = vadd.f32 %v4845, %v4893
    %v4895 = vpop.f32.mrf.mxu0
    %v4896 = vadd.f32 %v4847, %v4895
    %4897 = vmatmul.bf16.gmra.mxu0 %v4149
    %v4898 = vpop.f32.mrf.mxu0
    %v4899 = vadd.f32 %v4850, %v4898
    %v4900 = vpop.f32.mrf.mxu0
    %v4901 = vadd.f32 %v4852, %v4900
    %4902 = vdwg.mxu0
    %4903 = vmatpush.bf16.msra.mxu0 %v4561
    %4904 = vmatpush.bf16.msra.mxu0 %v4560
    %4905 = vmatpush.bf16.msra.mxu0 %v4559
    %4906 = vmatpush.bf16.msra.mxu0 %v4558
    %4907 = vmatpush.bf16.msra.mxu0 %v4557
    %4908 = vmatpush.bf16.msra.mxu0 %v4556
    %4909 = vmatpush.bf16.msra.mxu0 %v4555
    %4910 = vmatpush.bf16.msra.mxu0 %v4554
    %4911 = vmatmul.bf16.gmra.mxu0 %v4087
    %v4912 = vpop.f32.mrf.mxu0
    %v4913 = vadd.f32 %v4864, %v4912
    %v4914 = vpop.f32.mrf.mxu0
    %v4915 = vadd.f32 %v4866, %v4914
    %4916 = vmatmul.bf16.gmra.mxu0 %v4096
    %v4917 = vpop.f32.mrf.mxu0
    %v4918 = vadd.f32 %v4869, %v4917
    %v4919 = vpop.f32.mrf.mxu0
    %v4920 = vadd.f32 %v4871, %v4919
    %4921 = vmatmul.bf16.gmra.mxu0 %v4105
    %v4922 = vpop.f32.mrf.mxu0
    %v4923 = vadd.f32 %v4874, %v4922
    %v4924 = vpop.f32.mrf.mxu0
    %v4925 = vadd.f32 %v4876, %v4924
    %4926 = vmatmul.bf16.gmra.mxu0 %v4114
    %v4927 = vpop.f32.mrf.mxu0
    %v4928 = vadd.f32 %v4879, %v4927
    %v4929 = vpop.f32.mrf.mxu0
    %v4930 = vadd.f32 %v4881, %v4929
    %4931 = vmatmul.bf16.gmra.mxu0 %v4123
    %v4932 = vpop.f32.mrf.mxu0
    %v4933 = vadd.f32 %v4884, %v4932
    %v4934 = vpop.f32.mrf.mxu0
    %v4935 = vadd.f32 %v4886, %v4934
    %4936 = vmatmul.bf16.gmra.mxu0 %v4132
    %v4937 = vpop.f32.mrf.mxu0
    %v4938 = vadd.f32 %v4889, %v4937
    %v4939 = vpop.f32.mrf.mxu0
    %v4940 = vadd.f32 %v4891, %v4939
    %4941 = vmatmul.bf16.gmra.mxu0 %v4141
    %v4942 = vpop.f32.mrf.mxu0
    %v4943 = vadd.f32 %v4894, %v4942
    %v4944 = vpop.f32.mrf.mxu0
    %v4945 = vadd.f32 %v4896, %v4944
    %4946 = vmatmul.bf16.gmra.mxu0 %v4150
    %v4947 = vpop.f32.mrf.mxu0
    %v4948 = vadd.f32 %v4899, %v4947
    %v4949 = vpop.f32.mrf.mxu0
    %v4950 = vadd.f32 %v4901, %v4949
    %4951 = vdwg.mxu0
    %4952 = vmatpush.bf16.msra.mxu0 %v4569
    %4953 = vmatpush.bf16.msra.mxu0 %v4568
    %4954 = vmatpush.bf16.msra.mxu0 %v4567
    %4955 = vmatpush.bf16.msra.mxu0 %v4566
    %4956 = vmatpush.bf16.msra.mxu0 %v4565
    %4957 = vmatpush.bf16.msra.mxu0 %v4564
    %4958 = vmatpush.bf16.msra.mxu0 %v4563
    %4959 = vmatpush.bf16.msra.mxu0 %v4562
    %4960 = vmatmul.bf16.gmra.mxu0 %v4088
    %v4961 = vpop.f32.mrf.mxu0
    %v4962 = vadd.f32 %v4913, %v4961
    %v4963 = vpop.f32.mrf.mxu0
    %v4964 = vadd.f32 %v4915, %v4963
    %4965 = vmatmul.bf16.gmra.mxu0 %v4097
    %v4966 = vpop.f32.mrf.mxu0
    %v4967 = vadd.f32 %v4918, %v4966
    %v4968 = vpop.f32.mrf.mxu0
    %v4969 = vadd.f32 %v4920, %v4968
    %4970 = vmatmul.bf16.gmra.mxu0 %v4106
    %v4971 = vpop.f32.mrf.mxu0
    %v4972 = vadd.f32 %v4923, %v4971
    %v4973 = vpop.f32.mrf.mxu0
    %v4974 = vadd.f32 %v4925, %v4973
    %4975 = vmatmul.bf16.gmra.mxu0 %v4115
    %v4976 = vpop.f32.mrf.mxu0
    %v4977 = vadd.f32 %v4928, %v4976
    %v4978 = vpop.f32.mrf.mxu0
    %v4979 = vadd.f32 %v4930, %v4978
    %4980 = vmatmul.bf16.gmra.mxu0 %v4124
    %v4981 = vpop.f32.mrf.mxu0
    %v4982 = vadd.f32 %v4933, %v4981
    %v4983 = vpop.f32.mrf.mxu0
    %v4984 = vadd.f32 %v4935, %v4983
    %4985 = vmatmul.bf16.gmra.mxu0 %v4133
    %v4986 = vpop.f32.mrf.mxu0
    %v4987 = vadd.f32 %v4938, %v4986
    %v4988 = vpop.f32.mrf.mxu0
    %v4989 = vadd.f32 %v4940, %v4988
    %4990 = vmatmul.bf16.gmra.mxu0 %v4142
    %v4991 = vpop.f32.mrf.mxu0
    %v4992 = vadd.f32 %v4943, %v4991
    %v4993 = vpop.f32.mrf.mxu0
    %v4994 = vadd.f32 %v4945, %v4993
    %4995 = vmatmul.bf16.gmra.mxu0 %v4151
    %v4996 = vpop.f32.mrf.mxu0
    %v4997 = vadd.f32 %v4948, %v4996
    %v4998 = vpop.f32.mrf.mxu0
    %v4999 = vadd.f32 %v4950, %v4998
    %5000 = vdwg.mxu0
    %5001 = vmatpush.bf16.msra.mxu0 %v4577
    %5002 = vmatpush.bf16.msra.mxu0 %v4576
    %5003 = vmatpush.bf16.msra.mxu0 %v4575
    %5004 = vmatpush.bf16.msra.mxu0 %v4574
    %5005 = vmatpush.bf16.msra.mxu0 %v4573
    %5006 = vmatpush.bf16.msra.mxu0 %v4572
    %5007 = vmatpush.bf16.msra.mxu0 %v4571
    %5008 = vmatpush.bf16.msra.mxu0 %v4570
    %5009 = vmatmul.bf16.gmra.mxu0 %v4089
    %v5010 = vpop.f32.mrf.mxu0
    %v5011 = vadd.f32 %v4962, %v5010
    %v5012 = vpop.f32.mrf.mxu0
    %v5013 = vadd.f32 %v4964, %v5012
    %5014 = vmatmul.bf16.gmra.mxu0 %v4098
    %v5015 = vpop.f32.mrf.mxu0
    %v5016 = vadd.f32 %v4967, %v5015
    %v5017 = vpop.f32.mrf.mxu0
    %v5018 = vadd.f32 %v4969, %v5017
    %5019 = vmatmul.bf16.gmra.mxu0 %v4107
    %v5020 = vpop.f32.mrf.mxu0
    %v5021 = vadd.f32 %v4972, %v5020
    %v5022 = vpop.f32.mrf.mxu0
    %v5023 = vadd.f32 %v4974, %v5022
    %5024 = vmatmul.bf16.gmra.mxu0 %v4116
    %v5025 = vpop.f32.mrf.mxu0
    %v5026 = vadd.f32 %v4977, %v5025
    %v5027 = vpop.f32.mrf.mxu0
    %v5028 = vadd.f32 %v4979, %v5027
    %5029 = vmatmul.bf16.gmra.mxu0 %v4125
    %v5030 = vpop.f32.mrf.mxu0
    %v5031 = vadd.f32 %v4982, %v5030
    %v5032 = vpop.f32.mrf.mxu0
    %v5033 = vadd.f32 %v4984, %v5032
    %5034 = vmatmul.bf16.gmra.mxu0 %v4134
    %v5035 = vpop.f32.mrf.mxu0
    %v5036 = vadd.f32 %v4987, %v5035
    %v5037 = vpop.f32.mrf.mxu0
    %v5038 = vadd.f32 %v4989, %v5037
    %5039 = vmatmul.bf16.gmra.mxu0 %v4143
    %v5040 = vpop.f32.mrf.mxu0
    %v5041 = vadd.f32 %v4992, %v5040
    %v5042 = vpop.f32.mrf.mxu0
    %v5043 = vadd.f32 %v4994, %v5042
    %5044 = vmatmul.bf16.gmra.mxu0 %v4152
    %v5045 = vpop.f32.mrf.mxu0
    %v5046 = vadd.f32 %v4997, %v5045
    %v5047 = vpop.f32.mrf.mxu0
    %v5048 = vadd.f32 %v4999, %v5047
    %5049 = vdwg.mxu0
    %5050 = vmatpush.bf16.msra.mxu0 %v4585
    %5051 = vmatpush.bf16.msra.mxu0 %v4584
    %5052 = vmatpush.bf16.msra.mxu0 %v4583
    %5053 = vmatpush.bf16.msra.mxu0 %v4582
    %5054 = vmatpush.bf16.msra.mxu0 %v4581
    %5055 = vmatpush.bf16.msra.mxu0 %v4580
    %5056 = vmatpush.bf16.msra.mxu0 %v4579
    %5057 = vmatpush.bf16.msra.mxu0 %v4578
    %5058 = vmatmul.bf16.gmra.mxu0 %v4090
    %v5059 = vpop.f32.mrf.mxu0
    %v5060 = vadd.f32 %v5011, %v5059
    %v5061 = vpop.f32.mrf.mxu0
    %v5062 = vadd.f32 %v5013, %v5061
    %5063 = vmatmul.bf16.gmra.mxu0 %v4099
    %v5064 = vpop.f32.mrf.mxu0
    %v5065 = vadd.f32 %v5016, %v5064
    %v5066 = vpop.f32.mrf.mxu0
    %v5067 = vadd.f32 %v5018, %v5066
    %5068 = vmatmul.bf16.gmra.mxu0 %v4108
    %v5069 = vpop.f32.mrf.mxu0
    %v5070 = vadd.f32 %v5021, %v5069
    %v5071 = vpop.f32.mrf.mxu0
    %v5072 = vadd.f32 %v5023, %v5071
    %5073 = vmatmul.bf16.gmra.mxu0 %v4117
    %v5074 = vpop.f32.mrf.mxu0
    %v5075 = vadd.f32 %v5026, %v5074
    %v5076 = vpop.f32.mrf.mxu0
    %v5077 = vadd.f32 %v5028, %v5076
    %5078 = vmatmul.bf16.gmra.mxu0 %v4126
    %v5079 = vpop.f32.mrf.mxu0
    %v5080 = vadd.f32 %v5031, %v5079
    %v5081 = vpop.f32.mrf.mxu0
    %v5082 = vadd.f32 %v5033, %v5081
    %5083 = vmatmul.bf16.gmra.mxu0 %v4135
    %v5084 = vpop.f32.mrf.mxu0
    %v5085 = vadd.f32 %v5036, %v5084
    %v5086 = vpop.f32.mrf.mxu0
    %v5087 = vadd.f32 %v5038, %v5086
    %5088 = vmatmul.bf16.gmra.mxu0 %v4144
    %v5089 = vpop.f32.mrf.mxu0
    %v5090 = vadd.f32 %v5041, %v5089
    %v5091 = vpop.f32.mrf.mxu0
    %v5092 = vadd.f32 %v5043, %v5091
    %5093 = vmatmul.bf16.gmra.mxu0 %v4153
    %v5094 = vpop.f32.mrf.mxu0
    %v5095 = vadd.f32 %v5046, %v5094
    %v5096 = vpop.f32.mrf.mxu0
    %v5097 = vadd.f32 %v5048, %v5096
    %5098 = vdwg.mxu0
    %v5099 = vld [vmem:[%s3 + $0x2] sm:$0x1]
    %v5100 = vld [vmem:[%s3 + $0x3] sm:$0x1]
    %v5101 = vadd.f32 %v5060, %v5062
    %v5102 = vadd.f32 %v5101, %v5065
    %v5103 = vadd.f32 %v5102, %v5067
    %v5104 = vadd.f32 %v5103, %v5070
    %v5105 = vadd.f32 %v5104, %v5072
    %v5106 = vadd.f32 %v5105, %v5075
    %v5107 = vadd.f32 %v5106, %v5077
    %v5108 = vadd.f32 %v5107, %v5080
    %v5109 = vadd.f32 %v5108, %v5082
    %v5110 = vadd.f32 %v5109, %v5085
    %v5111 = vadd.f32 %v5110, %v5087
    %v5112 = vadd.f32 %v5111, %v5090
    %v5113 = vadd.f32 %v5112, %v5092
    %v5114 = vadd.f32 %v5113, %v5095
    %v5115 = vadd.f32 %v5114, %v5097
    %v5116 = vrot.slane %v5115, 4
    %v5117 = vadd.f32 %v5115, %v5116
    %v5118 = vrot.slane %v5117, 2
    %v5119 = vadd.f32 %v5117, %v5118
    %v5120 = vrot.slane %v5119, 1
    %v5121 = vadd.f32 %v5119, %v5120
    %v5122 = vmul.f32 %v5060, %v5060
    %v5123 = vmul.f32 %v5062, %v5062
    %v5124 = vmul.f32 %v5065, %v5065
    %v5125 = vmul.f32 %v5067, %v5067
    %v5126 = vmul.f32 %v5070, %v5070
    %v5127 = vmul.f32 %v5072, %v5072
    %v5128 = vmul.f32 %v5075, %v5075
    %v5129 = vmul.f32 %v5077, %v5077
    %v5130 = vmul.f32 %v5080, %v5080
    %v5131 = vmul.f32 %v5082, %v5082
    %v5132 = vmul.f32 %v5085, %v5085
    %v5133 = vmul.f32 %v5087, %v5087
    %v5134 = vmul.f32 %v5090, %v5090
    %v5135 = vmul.f32 %v5092, %v5092
    %v5136 = vmul.f32 %v5095, %v5095
    %v5137 = vmul.f32 %v5097, %v5097
    %v5138 = vadd.f32 %v5122, %v5123
    %v5139 = vadd.f32 %v5138, %v5124
    %v5140 = vadd.f32 %v5139, %v5125
    %v5141 = vadd.f32 %v5140, %v5126
    %v5142 = vadd.f32 %v5141, %v5127
    %v5143 = vadd.f32 %v5142, %v5128
    %v5144 = vadd.f32 %v5143, %v5129
    %v5145 = vadd.f32 %v5144, %v5130
    %v5146 = vadd.f32 %v5145, %v5131
    %v5147 = vadd.f32 %v5146, %v5132
    %v5148 = vadd.f32 %v5147, %v5133
    %v5149 = vadd.f32 %v5148, %v5134
    %v5150 = vadd.f32 %v5149, %v5135
    %v5151 = vadd.f32 %v5150, %v5136
    %v5152 = vadd.f32 %v5151, %v5137
    %v5153 = vrot.slane %v5152, 4
    %v5154 = vadd.f32 %v5152, %v5153
    %v5155 = vrot.slane %v5154, 2
    %v5156 = vadd.f32 %v5154, %v5155
    %v5157 = vrot.slane %v5156, 1
    %v5158 = vadd.f32 %v5156, %v5157
    %v5159 = vmul.f32 %v5121, 0.0078125
    %v5160 = vmul.f32 %v5158, 0.0078125
    %v5161 = vmul.f32 %v5159, %v5159
    %v5162 = vsub.f32 %v5160, %v5161
    %v5163 = vmax.f32 %v5162, 0.0
    %v5164 = vadd.f32 %v5163, 1e-05
    %v5165 = vrsqrt.pop %v5164
    %v5166 = vmul.f32 %v5165, %v5164
    %v5167 = vmul.f32 %v5166, %v5165
    %v5168 = vmul.f32 0.5, %v5167
    %v5169 = vsub.f32 1.5, %v5168
    %v5170 = vmul.f32 %v5165, %v5169
    %vm5171 = vweird.f32 %v5164
    %vm5172 = vweird.f32 %v5165
    %vm5173 = vmor %vm5171, %vm5172
    %v5174 = vsel %vm5173, %v5165, %v5170
    %v5175 = vmul.f32 %v5099, %v5174
    %v5176 = vmul.f32 %v5159, %v5175
    %v5177 = vsub.f32 %v5100, %v5176
    %v5178 = vperm.slane %v5175, 0
    %v5179 = vmul.f32 %v5060, %v5178
    %v5180 = vmul.f32 %v5062, %v5178
    %v5181 = vmul.f32 %v5065, %v5178
    %v5182 = vmul.f32 %v5067, %v5178
    %v5183 = vmul.f32 %v5070, %v5178
    %v5184 = vmul.f32 %v5072, %v5178
    %v5185 = vmul.f32 %v5075, %v5178
    %v5186 = vmul.f32 %v5077, %v5178
    %v5187 = vmul.f32 %v5080, %v5178
    %v5188 = vmul.f32 %v5082, %v5178
    %v5189 = vmul.f32 %v5085, %v5178
    %v5190 = vmul.f32 %v5087, %v5178
    %v5191 = vmul.f32 %v5090, %v5178
    %v5192 = vmul.f32 %v5092, %v5178
    %v5193 = vmul.f32 %v5095, %v5178
    %v5194 = vmul.f32 %v5097, %v5178
    %v5195 = vperm.slane %v5177, 0
    %v5196 = vadd.f32 %v5179, %v5195
    %v5197 = vadd.f32 %v5180, %v5195
    %v5198 = vadd.f32 %v5181, %v5195
    %v5199 = vadd.f32 %v5182, %v5195
    %v5200 = vadd.f32 %v5183, %v5195
    %v5201 = vadd.f32 %v5184, %v5195
    %v5202 = vadd.f32 %v5185, %v5195
    %v5203 = vadd.f32 %v5186, %v5195
    %v5204 = vadd.f32 %v5187, %v5195
    %v5205 = vadd.f32 %v5188, %v5195
    %v5206 = vadd.f32 %v5189, %v5195
    %v5207 = vadd.f32 %v5190, %v5195
    %v5208 = vadd.f32 %v5191, %v5195
    %v5209 = vadd.f32 %v5192, %v5195
    %v5210 = vadd.f32 %v5193, %v5195
    %v5211 = vadd.f32 %v5194, %v5195
    %v5212 = vmax.f32 %v5196, 0.0
    %v5213 = vmax.f32 %v5197, 0.0
    %v5214 = vmax.f32 %v5198, 0.0
    %v5215 = vmax.f32 %v5199, 0.0
    %v5216 = vmax.f32 %v5200, 0.0
    %v5217 = vmax.f32 %v5201, 0.0
    %v5218 = vmax.f32 %v5202, 0.0
    %v5219 = vmax.f32 %v5203, 0.0
    %v5220 = vmax.f32 %v5204, 0.0
    %v5221 = vmax.f32 %v5205, 0.0
    %v5222 = vmax.f32 %v5206, 0.0
    %v5223 = vmax.f32 %v5207, 0.0
    %v5224 = vmax.f32 %v5208, 0.0
    %v5225 = vmax.f32 %v5209, 0.0
    %v5226 = vmax.f32 %v5210, 0.0
    %v5227 = vmax.f32 %v5211, 0.0
    %5228 = vst [vmem:[%s4] sm:$0xff] %v5212
    %5229 = vst [vmem:[%s4 + $0x8] sm:$0xff] %v5213
    %5230 = vst [vmem:[%s4 + $0x10] sm:$0xff] %v5214
    %5231 = vst [vmem:[%s4 + $0x18] sm:$0xff] %v5215
    %5232 = vst [vmem:[%s4 + $0x20] sm:$0xff] %v5216
    %5233 = vst [vmem:[%s4 + $0x28] sm:$0xff] %v5217
    %5234 = vst [vmem:[%s4 + $0x30] sm:$0xff] %v5218
    %5235 = vst [vmem:[%s4 + $0x38] sm:$0xff] %v5219
    %5236 = vst [vmem:[%s4 + $0x40] sm:$0xff] %v5220
    %5237 = vst [vmem:[%s4 + $0x48] sm:$0xff] %v5221
    %5238 = vst [vmem:[%s4 + $0x50] sm:$0xff] %v5222
    %5239 = vst [vmem:[%s4 + $0x58] sm:$0xff] %v5223
    %5240 = vst [vmem:[%s4 + $0x60] sm:$0xff] %v5224
    %5241 = vst [vmem:[%s4 + $0x68] sm:$0xff] %v5225
    %5242 = vst [vmem:[%s4 + $0x70] sm:$0xff] %v5226
    %5243 = vst [vmem:[%s4 + $0x78] sm:$0xff] %v5227
    // Predicated region
    $region22: #{down_forward.1} parent=1 // pred_check
      _
    $region23: #{down_forward.1} parent=1 // pred_check_branch
      %5245 = sbr.rel (0) target = $region25
    $region24: #{down_forward.1} parent=1 // pred_region
      _
    $region25: #{down_forward.1} parent=1 // pred_fallthru
      _
    // Predicated region
    $region26: #{down_forward.1} parent=1 // pred_check
      _
    $region27: #{down_forward.1} parent=1 // pred_check_branch
      %5247 = sbr.rel (0) target = $region29
    $region28: #{down_forward.1} parent=1 // pred_region
      _
    $region29: #{down_forward.1} parent=1 // pred_fallthru
      _
    %5248 = vsyncpa [#allocation5], 1

</llo_original>
